<compile_context>
chip_gen: v7x
topology: tpu7x:2x2x1
jax: 0.10.0
libtpu: 0.0.40
codegen_flags: <defaults>
</compile_context>

<pallas_src>
import jax
import jax.numpy as jnp
from jax.experimental import pallas as pl
from jax.experimental.pallas import tpu as pltpu

NODE_TYPE_SIZE = 9   # common.NodeType.SIZE -> nfeat
LANE = 128           # all feature dims padded to the 128-lane width
N_CONV_LAYERS = 6


def _round_up(v, m):
    return ((v + m - 1) // m) * m


def _pad2(a, rows, cols):
    return jnp.pad(a, ((0, rows - a.shape[0]), (0, cols - a.shape[1])))


# ---------------------------------------------------------------------------
# Fused kernel: 6 x (GINEConv -> ReLU [-> dropout=identity]) -> lin1/lin2/lin3
# Single grid step; all operands resident in VMEM; layer loop statically
# unrolled; all matmuls bf16 x bf16 -> f32 accumulate on the MXU.
# ---------------------------------------------------------------------------
def _gcn_fused_kernel(x_ref, gsrc_ref, sdst_ref, e_ref,
                      w1_ref, b1_ref, w2_ref, b2_ref,
                      hw1_ref, hb1_ref, hw2_ref, hb2_ref, hw3_ref, hb3_ref,
                      out_ref):
    f32 = jnp.float32
    bf16 = jnp.bfloat16

    gsrc = gsrc_ref[...]                 # (E, N) bf16 0/1 selector (exact)
    sdst = sdst_ref[...]                 # (N, E) bf16 0/1 selector (exact)
    h = x_ref[...].astype(f32)           # (N, P) running node state, f32

    for layer in range(N_CONV_LAYERS):   # static unroll: one grid step total
        e = e_ref[layer].astype(f32)     # (E, P) precomputed edge linear
        # gather x[src] as a bf16 one-hot matmul on the MXU (f32 accumulate)
        x_src = jnp.dot(gsrc, h.astype(bf16), preferred_element_type=f32)
        msg = jnp.maximum(x_src + e, 0.0)                     # relu(x_j + e)
        # scatter-sum over destination nodes as a bf16 one-hot matmul
        agg = jnp.dot(sdst, msg.astype(bf16), preferred_element_type=f32)
        # (1 + eps) * x + agg with eps = 0, then nn = Linear -> ReLU -> Linear
        t = h + agg
        t = jnp.maximum(
            jnp.dot(t.astype(bf16), w1_ref[layer],
                    preferred_element_type=f32) + b1_ref[layer], 0.0)
        t = jnp.dot(t.astype(bf16), w2_ref[layer],
                    preferred_element_type=f32) + b2_ref[layer]
        # outer F.relu(convK(...)); dropout = identity (eval semantics)
        h = jnp.maximum(t, 0.0)

    # MLP head: lin1 -> ReLU -> lin2 -> ReLU -> lin3  (lane-dense 128-wide out)
    z = jnp.maximum(jnp.dot(h.astype(bf16), hw1_ref[...],
                            preferred_element_type=f32) + hb1_ref[...], 0.0)
    z = jnp.maximum(jnp.dot(z.astype(bf16), hw2_ref[...],
                            preferred_element_type=f32) + hb2_ref[...], 0.0)
    out_ref[...] = jnp.dot(z.astype(bf16), hw3_ref[...],
                           preferred_element_type=f32) + hb3_ref[...]


# ---------------------------------------------------------------------------
# Wrapper
# ---------------------------------------------------------------------------
def gcn_forward(x, edge_index, edge_attr, params, output_dim):
    n = x.shape[0]
    e = edge_attr.shape[0]
    P = LANE
    n_pad = _round_up(max(n, 8), LANE)     # N is the lane dim of gather_src
    e_pad = _round_up(max(e, 8), LANE)     # E is the lane dim of scatter_dst

    src = edge_index[0].astype(jnp.int32)
    dst = edge_index[1].astype(jnp.int32)
    src_p = jnp.full((e_pad,), -1, jnp.int32).at[:e].set(src)
    dst_p = jnp.full((e_pad,), -1, jnp.int32).at[:e].set(dst)

    # 0/1 selector matrices, built directly in the layout the kernel consumes,
    # stored bf16 (exact for 0/1) and fed to the MXU as bf16 operands.
    gather_src = (jax.lax.broadcasted_iota(jnp.int32, (e_pad, n_pad), 1)
                  == src_p[:, None]).astype(jnp.bfloat16)            # (E, N)
    scatter_dst = (jax.lax.broadcasted_iota(jnp.int32, (n_pad, e_pad), 0)
                   == dst_p[None, :]).astype(jnp.bfloat16)           # (N, E)

    # One-hot node features: exact in bf16.
    x_p = _pad2(x.astype(jnp.float32), n_pad, P).astype(jnp.bfloat16)

    # Precompute GINEConv.lin (edge_dim -> in_ch) for all 6 layers here:
    # edge_dim is only 4, so doing it as a 128-deep MXU contraction in the
    # kernel would multiply ~97% zeros.  f32 compute, bf16 storage.
    # Padded edge rows get e == 0 (padding AFTER the bias add), so together
    # with all-zero gather rows / scatter columns they contribute nothing.
    ea_f32 = edge_attr.astype(jnp.float32)
    e_stack = jnp.stack(
        [_pad2(ea_f32 @ c["we"] + c["be"], e_pad, P) for c in params["convs"]],
        axis=0).astype(jnp.bfloat16)                                  # (6, E, P)

    pk = pack_params(params)

    vmem = pl.BlockSpec(memory_space=pltpu.MemorySpace.VMEM)
    out_pad = pl.pallas_call(
        _gcn_fused_kernel,
        out_shape=jax.ShapeDtypeStruct((n_pad, P), jnp.float32),
        in_specs=[vmem] * 14,
        out_specs=vmem,
        compiler_params=pltpu.CompilerParams(
            # Resident set at these sizes is ~1.5 MiB (selectors + e_stack +
            # weight stacks + h/out); explicit budget keeps us well under the
            # v7x 64 MiB physical / 32 MiB scoped default as well.
            vmem_limit_bytes=32 * 1024 * 1024,
        ),
    )(x_p, gather_src, scatter_dst, e_stack,
      pk["w1"], pk["b1"], pk["w2"], pk["b2"],
      pk["hw1"], pk["hb1"], pk["hw2"], pk["hb2"], pk["hw3"], pk["hb3"])

    return out_pad[:n, :output_dim]


# ---------------------------------------------------------------------------
# Deterministic parameter init (shapes from GCN.__init__) + lane-padded packing
# ---------------------------------------------------------------------------
def _linear(key, fan_in, fan_out):
    kw, kb = jax.random.split(key)
    bound = 1.0 / jnp.sqrt(float(fan_in))
    w = jax.random.uniform(kw, (fan_in, fan_out), jnp.float32, -bound, bound)
    b = jax.random.uniform(kb, (1, fan_out), jnp.float32, -bound, bound)
    return w, b


def init_params(key, nfeat, nhid, output, edge_dim):
    convs = []
    in_ch = nfeat
    for _ in range(N_CONV_LAYERS):
        key, k_e, k_1, k_2 = jax.random.split(key, 4)
        we, be = _linear(k_e, edge_dim, in_ch)   # GINEConv.lin (edge_dim -> in_ch)
        w1, b1 = _linear(k_1, in_ch, nhid)       # nn.Sequential Linear 1
        w2, b2 = _linear(k_2, nhid, nhid)        # nn.Sequential Linear 2
        convs.append(dict(we=we, be=be, w1=w1, b1=b1, w2=w2, b2=b2))
        in_ch = nhid
    key, k1, k2, k3 = jax.random.split(key, 4)
    hw1, hb1 = _linear(k1, nhid, 128)            # lin1
    hw2, hb2 = _linear(k2, 128, 64)              # lin2
    hw3, hb3 = _linear(k3, 64, output)           # lin3
    return {"convs": convs,
            "head": dict(w1=hw1, b1=hb1, w2=hw2, b2=hb2, w3=hw3, b3=hb3)}


def pack_params(params):
    """Zero-pad every feature dim to 128 lanes, stack conv weights on a leading
    (6,...) axis.  Weight matrices stored bf16 (MXU operands); biases stay f32
    (added after f32 accumulation).  Zero padding keeps real outputs exact."""
    P = LANE
    cs = params["convs"]
    hd = params["head"]
    bf = jnp.bfloat16
    return dict(
        w1=jnp.stack([_pad2(c["w1"], P, P) for c in cs], 0).astype(bf),
        b1=jnp.stack([_pad2(c["b1"], 1, P) for c in cs], 0),
        w2=jnp.stack([_pad2(c["w2"], P, P) for c in cs], 0).astype(bf),
        b2=jnp.stack([_pad2(c["b2"], 1, P) for c in cs], 0),
        hw1=_pad2(hd["w1"], P, P).astype(bf), hb1=_pad2(hd["b1"], 1, P),
        hw2=_pad2(hd["w2"], P, P).astype(bf), hb2=_pad2(hd["b2"], 1, P),
        hw3=_pad2(hd["w3"], P, P).astype(bf), hb3=_pad2(hd["b3"], 1, P),
    )


# ---------------------------------------------------------------------------
# Pure-JAX references for correctness checking
# ---------------------------------------------------------------------------
def gcn_reference_f32(x, edge_index, edge_attr, params):
    """Original module semantics (pure f32, eval-mode dropout = identity)."""
    src, dst = edge_index[0], edge_index[1]
    h = x
    for c in params["convs"]:
        e = edge_attr @ c["we"] + c["be"]
        msg = jax.nn.relu(h[src] + e)
        agg = jax.ops.segment_sum(msg, dst, num_segments=x.shape[0])
        t = h + agg
        t = jax.nn.relu(t @ c["w1"] + c["b1"])
        t = t @ c["w2"] + c["b2"]
        h = jax.nn.relu(t)
    hd = params["head"]
    z = jax.nn.relu(h @ hd["w1"] + hd["b1"])
    z = jax.nn.relu(z @ hd["w2"] + hd["b2"])
    return z @ hd["w3"] + hd["b3"]


def gcn_reference_bf16(x, edge_index, edge_attr, params):
    """Same semantics, mirroring the kernel's bf16-at-dot-boundary rounding."""
    def r(v):  # round-trip through bf16
        return v.astype(jnp.bfloat16).astype(jnp.float32)
    src, dst = edge_index[0], edge_index[1]
    h = r(x.astype(jnp.float32))
    for c in params["convs"]:
        e = r(edge_attr @ c["we"] + c["be"])
        msg = jax.nn.relu(r(h)[src] + e)
        agg = jax.ops.segment_sum(r(msg), dst, num_segments=x.shape[0])
        t = h + agg
        t = jax.nn.relu(r(t) @ r(c["w1"]) + c["b1"])
        t = r(t) @ r(c["w2"]) + c["b2"]
        h = jax.nn.relu(t)
    hd = params["head"]
    z = jax.nn.relu(r(h) @ r(hd["w1"]) + hd["b1"])
    z = jax.nn.relu(r(z) @ r(hd["w2"]) + hd["b2"])
    return r(z) @ r(hd["w3"]) + hd["b3"]


if __name__ == "__main__":
    # small shapes consistent with the module
    N, E = 64, 256
    nfeat, nhid, output, edge_dim = NODE_TYPE_SIZE, 32, 3, 4
    dropout = 0.5  # unused (eval semantics)

    key = jax.random.PRNGKey(0)
    key, k_nt, k_src, k_dst, k_rel, k_par = jax.random.split(key, 6)

    # node features = one-hot node type (as in build_graph)
    node_type = jax.random.randint(k_nt, (N,), 0, NODE_TYPE_SIZE)
    x = jax.nn.one_hot(node_type, NODE_TYPE_SIZE, dtype=jnp.float32)      # (N, 9)

    # synthetic world-edge graph
    src = jax.random.randint(k_src, (E,), 0, N, dtype=jnp.int32)
    dst = jax.random.randint(k_dst, (E,), 0, N, dtype=jnp.int32)
    edge_index = jnp.stack([src, dst], axis=0)                            # (2, E)

    # world edge features: relative position + its norm (normalized stand-in)
    rel = jax.random.normal(k_rel, (E, 3), jnp.float32)
    edge_attr = jnp.concatenate(
        [rel, jnp.linalg.norm(rel, axis=-1, keepdims=True)], axis=-1)     # (E, 4)

    params = init_params(k_par, nfeat, nhid, output, edge_dim)

    out = gcn_forward(x, edge_index, edge_attr, params, output)
    jax.block_until_ready(out)
    assert out.shape == (N, output) and out.dtype == jnp.float32

    # Tight check vs a reference that mirrors the kernel's bf16 dot rounding.
    ref_bf16 = gcn_reference_bf16(x, edge_index, edge_attr, params)
    err_bf16 = float(jnp.max(jnp.abs(out - ref_bf16)))
    assert err_bf16 < 1e-2, f"max abs error vs bf16-matched reference = {err_bf16}"

    # Loose sanity check vs the exact f32 module semantics (bf16 MXU drift).
    ref_f32 = gcn_reference_f32(x, edge_index, edge_attr, params)
    err_f32 = float(jnp.max(jnp.abs(out - ref_f32)))
    assert err_f32 < 0.5, f"max abs error vs f32 reference = {err_f32}"

    print("KERNEL_OK")
</pallas_src>

<mosaic_0001>
module attributes {stable_mosaic.version = 11 : i64} {
  func.func @_gcn_fused_kernel(%arg0: memref<128x128xbf16, #tpu.memory_space<vmem>>, %arg1: memref<256x128xbf16, #tpu.memory_space<vmem>>, %arg2: memref<128x256xbf16, #tpu.memory_space<vmem>>, %arg3: memref<6x256x128xbf16, #tpu.memory_space<vmem>>, %arg4: memref<6x128x128xbf16, #tpu.memory_space<vmem>>, %arg5: memref<6x1x128xf32, #tpu.memory_space<vmem>>, %arg6: memref<6x128x128xbf16, #tpu.memory_space<vmem>>, %arg7: memref<6x1x128xf32, #tpu.memory_space<vmem>>, %arg8: memref<128x128xbf16, #tpu.memory_space<vmem>>, %arg9: memref<1x128xf32, #tpu.memory_space<vmem>>, %arg10: memref<128x128xbf16, #tpu.memory_space<vmem>>, %arg11: memref<1x128xf32, #tpu.memory_space<vmem>>, %arg12: memref<128x128xbf16, #tpu.memory_space<vmem>>, %arg13: memref<1x128xf32, #tpu.memory_space<vmem>>, %arg14: memref<128x128xf32, #tpu.memory_space<vmem>>) attributes {dimension_semantics = [], scalar_prefetch = 0 : i64, scratch_operands = 0 : i64, tpu.core_type = #tpu.core_type<tc>} {
    %c0 = arith.constant 0 : index
    %c0_0 = arith.constant 0 : index
    %0 = vector.load %arg1[%c0, %c0_0] : memref<256x128xbf16, #tpu.memory_space<vmem>>, vector<256x128xbf16>
    %c0_1 = arith.constant 0 : index
    %c0_2 = arith.constant 0 : index
    %1 = vector.load %arg2[%c0_1, %c0_2] : memref<128x256xbf16, #tpu.memory_space<vmem>>, vector<128x256xbf16>
    %c0_3 = arith.constant 0 : index
    %c0_4 = arith.constant 0 : index
    %2 = vector.load %arg0[%c0_3, %c0_4] : memref<128x128xbf16, #tpu.memory_space<vmem>>, vector<128x128xbf16>
    %3 = arith.extf %2 : vector<128x128xbf16> to vector<128x128xf32>
    %c0_5 = arith.constant 0 : index
    %c0_6 = arith.constant 0 : index
    %c0_7 = arith.constant 0 : index
    %4 = vector.load %arg3[%c0_5, %c0_6, %c0_7] : memref<6x256x128xbf16, #tpu.memory_space<vmem>>, vector<1x256x128xbf16>
    %5 = vector.shape_cast %4 : vector<1x256x128xbf16> to vector<256x128xbf16>
    %6 = arith.extf %5 : vector<256x128xbf16> to vector<256x128xf32>
    %7 = arith.truncf %3 : vector<128x128xf32> to vector<128x128xbf16>
    %cst = arith.constant dense<0.000000e+00> : vector<256x128xf32>
    %8 = tpu.matmul %0, %7, %cst {dimension_numbers = #tpu.dot_dimension_numbers<[1], [0], [0], [1], [0, 0, 1, 1], [], []>} : vector<256x128xbf16>, vector<128x128xbf16>, vector<256x128xf32> -> vector<256x128xf32>
    %9 = arith.addf %8, %6 : vector<256x128xf32>
    %cst_8 = arith.constant 0.000000e+00 : f32
    %10 = vector.broadcast %cst_8 : f32 to vector<256x128xf32>
    %11 = arith.maximumf %9, %10 : vector<256x128xf32>
    %12 = arith.truncf %11 : vector<256x128xf32> to vector<256x128xbf16>
    %cst_9 = arith.constant dense<0.000000e+00> : vector<128x128xf32>
    %13 = tpu.matmul %1, %12, %cst_9 {dimension_numbers = #tpu.dot_dimension_numbers<[1], [0], [0], [1], [0, 0, 1, 1], [], []>} : vector<128x256xbf16>, vector<256x128xbf16>, vector<128x128xf32> -> vector<128x128xf32>
    %14 = arith.addf %3, %13 : vector<128x128xf32>
    %15 = arith.truncf %14 : vector<128x128xf32> to vector<128x128xbf16>
    %c0_10 = arith.constant 0 : index
    %c0_11 = arith.constant 0 : index
    %c0_12 = arith.constant 0 : index
    %16 = vector.load %arg4[%c0_10, %c0_11, %c0_12] : memref<6x128x128xbf16, #tpu.memory_space<vmem>>, vector<1x128x128xbf16>
    %17 = vector.shape_cast %16 : vector<1x128x128xbf16> to vector<128x128xbf16>
    %cst_13 = arith.constant dense<0.000000e+00> : vector<128x128xf32>
    %18 = tpu.matmul %15, %17, %cst_13 {dimension_numbers = #tpu.dot_dimension_numbers<[1], [0], [0], [1], [0, 0, 1, 1], [], []>} : vector<128x128xbf16>, vector<128x128xbf16>, vector<128x128xf32> -> vector<128x128xf32>
    %c0_14 = arith.constant 0 : index
    %c0_15 = arith.constant 0 : index
    %c0_16 = arith.constant 0 : index
    %19 = vector.load %arg5[%c0_14, %c0_15, %c0_16] : memref<6x1x128xf32, #tpu.memory_space<vmem>>, vector<1x1x128xf32>
    %20 = vector.shape_cast %19 : vector<1x1x128xf32> to vector<1x128xf32>
    %21 = vector.broadcast %20 : vector<1x128xf32> to vector<128x128xf32>
    %22 = arith.addf %18, %21 : vector<128x128xf32>
    %cst_17 = arith.constant 0.000000e+00 : f32
    %23 = vector.broadcast %cst_17 : f32 to vector<128x128xf32>
    %24 = arith.maximumf %22, %23 : vector<128x128xf32>
    %25 = arith.truncf %24 : vector<128x128xf32> to vector<128x128xbf16>
    %c0_18 = arith.constant 0 : index
    %c0_19 = arith.constant 0 : index
    %c0_20 = arith.constant 0 : index
    %26 = vector.load %arg6[%c0_18, %c0_19, %c0_20] : memref<6x128x128xbf16, #tpu.memory_space<vmem>>, vector<1x128x128xbf16>
    %27 = vector.shape_cast %26 : vector<1x128x128xbf16> to vector<128x128xbf16>
    %cst_21 = arith.constant dense<0.000000e+00> : vector<128x128xf32>
    %28 = tpu.matmul %25, %27, %cst_21 {dimension_numbers = #tpu.dot_dimension_numbers<[1], [0], [0], [1], [0, 0, 1, 1], [], []>} : vector<128x128xbf16>, vector<128x128xbf16>, vector<128x128xf32> -> vector<128x128xf32>
    %c0_22 = arith.constant 0 : index
    %c0_23 = arith.constant 0 : index
    %c0_24 = arith.constant 0 : index
    %29 = vector.load %arg7[%c0_22, %c0_23, %c0_24] : memref<6x1x128xf32, #tpu.memory_space<vmem>>, vector<1x1x128xf32>
    %30 = vector.shape_cast %29 : vector<1x1x128xf32> to vector<1x128xf32>
    %31 = vector.broadcast %30 : vector<1x128xf32> to vector<128x128xf32>
    %32 = arith.addf %28, %31 : vector<128x128xf32>
    %cst_25 = arith.constant 0.000000e+00 : f32
    %33 = vector.broadcast %cst_25 : f32 to vector<128x128xf32>
    %34 = arith.maximumf %32, %33 : vector<128x128xf32>
    %c1 = arith.constant 1 : index
    %c0_26 = arith.constant 0 : index
    %c0_27 = arith.constant 0 : index
    %35 = vector.load %arg3[%c1, %c0_26, %c0_27] : memref<6x256x128xbf16, #tpu.memory_space<vmem>>, vector<1x256x128xbf16>
    %36 = vector.shape_cast %35 : vector<1x256x128xbf16> to vector<256x128xbf16>
    %37 = arith.extf %36 : vector<256x128xbf16> to vector<256x128xf32>
    %38 = arith.truncf %34 : vector<128x128xf32> to vector<128x128xbf16>
    %cst_28 = arith.constant dense<0.000000e+00> : vector<256x128xf32>
    %39 = tpu.matmul %0, %38, %cst_28 {dimension_numbers = #tpu.dot_dimension_numbers<[1], [0], [0], [1], [0, 0, 1, 1], [], []>} : vector<256x128xbf16>, vector<128x128xbf16>, vector<256x128xf32> -> vector<256x128xf32>
    %40 = arith.addf %39, %37 : vector<256x128xf32>
    %cst_29 = arith.constant 0.000000e+00 : f32
    %41 = vector.broadcast %cst_29 : f32 to vector<256x128xf32>
    %42 = arith.maximumf %40, %41 : vector<256x128xf32>
    %43 = arith.truncf %42 : vector<256x128xf32> to vector<256x128xbf16>
    %cst_30 = arith.constant dense<0.000000e+00> : vector<128x128xf32>
    %44 = tpu.matmul %1, %43, %cst_30 {dimension_numbers = #tpu.dot_dimension_numbers<[1], [0], [0], [1], [0, 0, 1, 1], [], []>} : vector<128x256xbf16>, vector<256x128xbf16>, vector<128x128xf32> -> vector<128x128xf32>
    %45 = arith.addf %34, %44 : vector<128x128xf32>
    %46 = arith.truncf %45 : vector<128x128xf32> to vector<128x128xbf16>
    %c1_31 = arith.constant 1 : index
    %c0_32 = arith.constant 0 : index
    %c0_33 = arith.constant 0 : index
    %47 = vector.load %arg4[%c1_31, %c0_32, %c0_33] : memref<6x128x128xbf16, #tpu.memory_space<vmem>>, vector<1x128x128xbf16>
    %48 = vector.shape_cast %47 : vector<1x128x128xbf16> to vector<128x128xbf16>
    %cst_34 = arith.constant dense<0.000000e+00> : vector<128x128xf32>
    %49 = tpu.matmul %46, %48, %cst_34 {dimension_numbers = #tpu.dot_dimension_numbers<[1], [0], [0], [1], [0, 0, 1, 1], [], []>} : vector<128x128xbf16>, vector<128x128xbf16>, vector<128x128xf32> -> vector<128x128xf32>
    %c1_35 = arith.constant 1 : index
    %c0_36 = arith.constant 0 : index
    %c0_37 = arith.constant 0 : index
    %50 = vector.load %arg5[%c1_35, %c0_36, %c0_37] : memref<6x1x128xf32, #tpu.memory_space<vmem>>, vector<1x1x128xf32>
    %51 = vector.shape_cast %50 : vector<1x1x128xf32> to vector<1x128xf32>
    %52 = vector.broadcast %51 : vector<1x128xf32> to vector<128x128xf32>
    %53 = arith.addf %49, %52 : vector<128x128xf32>
    %cst_38 = arith.constant 0.000000e+00 : f32
    %54 = vector.broadcast %cst_38 : f32 to vector<128x128xf32>
    %55 = arith.maximumf %53, %54 : vector<128x128xf32>
    %56 = arith.truncf %55 : vector<128x128xf32> to vector<128x128xbf16>
    %c1_39 = arith.constant 1 : index
    %c0_40 = arith.constant 0 : index
    %c0_41 = arith.constant 0 : index
    %57 = vector.load %arg6[%c1_39, %c0_40, %c0_41] : memref<6x128x128xbf16, #tpu.memory_space<vmem>>, vector<1x128x128xbf16>
    %58 = vector.shape_cast %57 : vector<1x128x128xbf16> to vector<128x128xbf16>
    %cst_42 = arith.constant dense<0.000000e+00> : vector<128x128xf32>
    %59 = tpu.matmul %56, %58, %cst_42 {dimension_numbers = #tpu.dot_dimension_numbers<[1], [0], [0], [1], [0, 0, 1, 1], [], []>} : vector<128x128xbf16>, vector<128x128xbf16>, vector<128x128xf32> -> vector<128x128xf32>
    %c1_43 = arith.constant 1 : index
    %c0_44 = arith.constant 0 : index
    %c0_45 = arith.constant 0 : index
    %60 = vector.load %arg7[%c1_43, %c0_44, %c0_45] : memref<6x1x128xf32, #tpu.memory_space<vmem>>, vector<1x1x128xf32>
    %61 = vector.shape_cast %60 : vector<1x1x128xf32> to vector<1x128xf32>
    %62 = vector.broadcast %61 : vector<1x128xf32> to vector<128x128xf32>
    %63 = arith.addf %59, %62 : vector<128x128xf32>
    %cst_46 = arith.constant 0.000000e+00 : f32
    %64 = vector.broadcast %cst_46 : f32 to vector<128x128xf32>
    %65 = arith.maximumf %63, %64 : vector<128x128xf32>
    %c2 = arith.constant 2 : index
    %c0_47 = arith.constant 0 : index
    %c0_48 = arith.constant 0 : index
    %66 = vector.load %arg3[%c2, %c0_47, %c0_48] : memref<6x256x128xbf16, #tpu.memory_space<vmem>>, vector<1x256x128xbf16>
    %67 = vector.shape_cast %66 : vector<1x256x128xbf16> to vector<256x128xbf16>
    %68 = arith.extf %67 : vector<256x128xbf16> to vector<256x128xf32>
    %69 = arith.truncf %65 : vector<128x128xf32> to vector<128x128xbf16>
    %cst_49 = arith.constant dense<0.000000e+00> : vector<256x128xf32>
    %70 = tpu.matmul %0, %69, %cst_49 {dimension_numbers = #tpu.dot_dimension_numbers<[1], [0], [0], [1], [0, 0, 1, 1], [], []>} : vector<256x128xbf16>, vector<128x128xbf16>, vector<256x128xf32> -> vector<256x128xf32>
    %71 = arith.addf %70, %68 : vector<256x128xf32>
    %cst_50 = arith.constant 0.000000e+00 : f32
    %72 = vector.broadcast %cst_50 : f32 to vector<256x128xf32>
    %73 = arith.maximumf %71, %72 : vector<256x128xf32>
    %74 = arith.truncf %73 : vector<256x128xf32> to vector<256x128xbf16>
    %cst_51 = arith.constant dense<0.000000e+00> : vector<128x128xf32>
    %75 = tpu.matmul %1, %74, %cst_51 {dimension_numbers = #tpu.dot_dimension_numbers<[1], [0], [0], [1], [0, 0, 1, 1], [], []>} : vector<128x256xbf16>, vector<256x128xbf16>, vector<128x128xf32> -> vector<128x128xf32>
    %76 = arith.addf %65, %75 : vector<128x128xf32>
    %77 = arith.truncf %76 : vector<128x128xf32> to vector<128x128xbf16>
    %c2_52 = arith.constant 2 : index
    %c0_53 = arith.constant 0 : index
    %c0_54 = arith.constant 0 : index
    %78 = vector.load %arg4[%c2_52, %c0_53, %c0_54] : memref<6x128x128xbf16, #tpu.memory_space<vmem>>, vector<1x128x128xbf16>
    %79 = vector.shape_cast %78 : vector<1x128x128xbf16> to vector<128x128xbf16>
    %cst_55 = arith.constant dense<0.000000e+00> : vector<128x128xf32>
    %80 = tpu.matmul %77, %79, %cst_55 {dimension_numbers = #tpu.dot_dimension_numbers<[1], [0], [0], [1], [0, 0, 1, 1], [], []>} : vector<128x128xbf16>, vector<128x128xbf16>, vector<128x128xf32> -> vector<128x128xf32>
    %c2_56 = arith.constant 2 : index
    %c0_57 = arith.constant 0 : index
    %c0_58 = arith.constant 0 : index
    %81 = vector.load %arg5[%c2_56, %c0_57, %c0_58] : memref<6x1x128xf32, #tpu.memory_space<vmem>>, vector<1x1x128xf32>
    %82 = vector.shape_cast %81 : vector<1x1x128xf32> to vector<1x128xf32>
    %83 = vector.broadcast %82 : vector<1x128xf32> to vector<128x128xf32>
    %84 = arith.addf %80, %83 : vector<128x128xf32>
    %cst_59 = arith.constant 0.000000e+00 : f32
    %85 = vector.broadcast %cst_59 : f32 to vector<128x128xf32>
    %86 = arith.maximumf %84, %85 : vector<128x128xf32>
    %87 = arith.truncf %86 : vector<128x128xf32> to vector<128x128xbf16>
    %c2_60 = arith.constant 2 : index
    %c0_61 = arith.constant 0 : index
    %c0_62 = arith.constant 0 : index
    %88 = vector.load %arg6[%c2_60, %c0_61, %c0_62] : memref<6x128x128xbf16, #tpu.memory_space<vmem>>, vector<1x128x128xbf16>
    %89 = vector.shape_cast %88 : vector<1x128x128xbf16> to vector<128x128xbf16>
    %cst_63 = arith.constant dense<0.000000e+00> : vector<128x128xf32>
    %90 = tpu.matmul %87, %89, %cst_63 {dimension_numbers = #tpu.dot_dimension_numbers<[1], [0], [0], [1], [0, 0, 1, 1], [], []>} : vector<128x128xbf16>, vector<128x128xbf16>, vector<128x128xf32> -> vector<128x128xf32>
    %c2_64 = arith.constant 2 : index
    %c0_65 = arith.constant 0 : index
    %c0_66 = arith.constant 0 : index
    %91 = vector.load %arg7[%c2_64, %c0_65, %c0_66] : memref<6x1x128xf32, #tpu.memory_space<vmem>>, vector<1x1x128xf32>
    %92 = vector.shape_cast %91 : vector<1x1x128xf32> to vector<1x128xf32>
    %93 = vector.broadcast %92 : vector<1x128xf32> to vector<128x128xf32>
    %94 = arith.addf %90, %93 : vector<128x128xf32>
    %cst_67 = arith.constant 0.000000e+00 : f32
    %95 = vector.broadcast %cst_67 : f32 to vector<128x128xf32>
    %96 = arith.maximumf %94, %95 : vector<128x128xf32>
    %c3 = arith.constant 3 : index
    %c0_68 = arith.constant 0 : index
    %c0_69 = arith.constant 0 : index
    %97 = vector.load %arg3[%c3, %c0_68, %c0_69] : memref<6x256x128xbf16, #tpu.memory_space<vmem>>, vector<1x256x128xbf16>
    %98 = vector.shape_cast %97 : vector<1x256x128xbf16> to vector<256x128xbf16>
    %99 = arith.extf %98 : vector<256x128xbf16> to vector<256x128xf32>
    %100 = arith.truncf %96 : vector<128x128xf32> to vector<128x128xbf16>
    %cst_70 = arith.constant dense<0.000000e+00> : vector<256x128xf32>
    %101 = tpu.matmul %0, %100, %cst_70 {dimension_numbers = #tpu.dot_dimension_numbers<[1], [0], [0], [1], [0, 0, 1, 1], [], []>} : vector<256x128xbf16>, vector<128x128xbf16>, vector<256x128xf32> -> vector<256x128xf32>
    %102 = arith.addf %101, %99 : vector<256x128xf32>
    %cst_71 = arith.constant 0.000000e+00 : f32
    %103 = vector.broadcast %cst_71 : f32 to vector<256x128xf32>
    %104 = arith.maximumf %102, %103 : vector<256x128xf32>
    %105 = arith.truncf %104 : vector<256x128xf32> to vector<256x128xbf16>
    %cst_72 = arith.constant dense<0.000000e+00> : vector<128x128xf32>
    %106 = tpu.matmul %1, %105, %cst_72 {dimension_numbers = #tpu.dot_dimension_numbers<[1], [0], [0], [1], [0, 0, 1, 1], [], []>} : vector<128x256xbf16>, vector<256x128xbf16>, vector<128x128xf32> -> vector<128x128xf32>
    %107 = arith.addf %96, %106 : vector<128x128xf32>
    %108 = arith.truncf %107 : vector<128x128xf32> to vector<128x128xbf16>
    %c3_73 = arith.constant 3 : index
    %c0_74 = arith.constant 0 : index
    %c0_75 = arith.constant 0 : index
    %109 = vector.load %arg4[%c3_73, %c0_74, %c0_75] : memref<6x128x128xbf16, #tpu.memory_space<vmem>>, vector<1x128x128xbf16>
    %110 = vector.shape_cast %109 : vector<1x128x128xbf16> to vector<128x128xbf16>
    %cst_76 = arith.constant dense<0.000000e+00> : vector<128x128xf32>
    %111 = tpu.matmul %108, %110, %cst_76 {dimension_numbers = #tpu.dot_dimension_numbers<[1], [0], [0], [1], [0, 0, 1, 1], [], []>} : vector<128x128xbf16>, vector<128x128xbf16>, vector<128x128xf32> -> vector<128x128xf32>
    %c3_77 = arith.constant 3 : index
    %c0_78 = arith.constant 0 : index
    %c0_79 = arith.constant 0 : index
    %112 = vector.load %arg5[%c3_77, %c0_78, %c0_79] : memref<6x1x128xf32, #tpu.memory_space<vmem>>, vector<1x1x128xf32>
    %113 = vector.shape_cast %112 : vector<1x1x128xf32> to vector<1x128xf32>
    %114 = vector.broadcast %113 : vector<1x128xf32> to vector<128x128xf32>
    %115 = arith.addf %111, %114 : vector<128x128xf32>
    %cst_80 = arith.constant 0.000000e+00 : f32
    %116 = vector.broadcast %cst_80 : f32 to vector<128x128xf32>
    %117 = arith.maximumf %115, %116 : vector<128x128xf32>
    %118 = arith.truncf %117 : vector<128x128xf32> to vector<128x128xbf16>
    %c3_81 = arith.constant 3 : index
    %c0_82 = arith.constant 0 : index
    %c0_83 = arith.constant 0 : index
    %119 = vector.load %arg6[%c3_81, %c0_82, %c0_83] : memref<6x128x128xbf16, #tpu.memory_space<vmem>>, vector<1x128x128xbf16>
    %120 = vector.shape_cast %119 : vector<1x128x128xbf16> to vector<128x128xbf16>
    %cst_84 = arith.constant dense<0.000000e+00> : vector<128x128xf32>
    %121 = tpu.matmul %118, %120, %cst_84 {dimension_numbers = #tpu.dot_dimension_numbers<[1], [0], [0], [1], [0, 0, 1, 1], [], []>} : vector<128x128xbf16>, vector<128x128xbf16>, vector<128x128xf32> -> vector<128x128xf32>
    %c3_85 = arith.constant 3 : index
    %c0_86 = arith.constant 0 : index
    %c0_87 = arith.constant 0 : index
    %122 = vector.load %arg7[%c3_85, %c0_86, %c0_87] : memref<6x1x128xf32, #tpu.memory_space<vmem>>, vector<1x1x128xf32>
    %123 = vector.shape_cast %122 : vector<1x1x128xf32> to vector<1x128xf32>
    %124 = vector.broadcast %123 : vector<1x128xf32> to vector<128x128xf32>
    %125 = arith.addf %121, %124 : vector<128x128xf32>
    %cst_88 = arith.constant 0.000000e+00 : f32
    %126 = vector.broadcast %cst_88 : f32 to vector<128x128xf32>
    %127 = arith.maximumf %125, %126 : vector<128x128xf32>
    %c4 = arith.constant 4 : index
    %c0_89 = arith.constant 0 : index
    %c0_90 = arith.constant 0 : index
    %128 = vector.load %arg3[%c4, %c0_89, %c0_90] : memref<6x256x128xbf16, #tpu.memory_space<vmem>>, vector<1x256x128xbf16>
    %129 = vector.shape_cast %128 : vector<1x256x128xbf16> to vector<256x128xbf16>
    %130 = arith.extf %129 : vector<256x128xbf16> to vector<256x128xf32>
    %131 = arith.truncf %127 : vector<128x128xf32> to vector<128x128xbf16>
    %cst_91 = arith.constant dense<0.000000e+00> : vector<256x128xf32>
    %132 = tpu.matmul %0, %131, %cst_91 {dimension_numbers = #tpu.dot_dimension_numbers<[1], [0], [0], [1], [0, 0, 1, 1], [], []>} : vector<256x128xbf16>, vector<128x128xbf16>, vector<256x128xf32> -> vector<256x128xf32>
    %133 = arith.addf %132, %130 : vector<256x128xf32>
    %cst_92 = arith.constant 0.000000e+00 : f32
    %134 = vector.broadcast %cst_92 : f32 to vector<256x128xf32>
    %135 = arith.maximumf %133, %134 : vector<256x128xf32>
    %136 = arith.truncf %135 : vector<256x128xf32> to vector<256x128xbf16>
    %cst_93 = arith.constant dense<0.000000e+00> : vector<128x128xf32>
    %137 = tpu.matmul %1, %136, %cst_93 {dimension_numbers = #tpu.dot_dimension_numbers<[1], [0], [0], [1], [0, 0, 1, 1], [], []>} : vector<128x256xbf16>, vector<256x128xbf16>, vector<128x128xf32> -> vector<128x128xf32>
    %138 = arith.addf %127, %137 : vector<128x128xf32>
    %139 = arith.truncf %138 : vector<128x128xf32> to vector<128x128xbf16>
    %c4_94 = arith.constant 4 : index
    %c0_95 = arith.constant 0 : index
    %c0_96 = arith.constant 0 : index
    %140 = vector.load %arg4[%c4_94, %c0_95, %c0_96] : memref<6x128x128xbf16, #tpu.memory_space<vmem>>, vector<1x128x128xbf16>
    %141 = vector.shape_cast %140 : vector<1x128x128xbf16> to vector<128x128xbf16>
    %cst_97 = arith.constant dense<0.000000e+00> : vector<128x128xf32>
    %142 = tpu.matmul %139, %141, %cst_97 {dimension_numbers = #tpu.dot_dimension_numbers<[1], [0], [0], [1], [0, 0, 1, 1], [], []>} : vector<128x128xbf16>, vector<128x128xbf16>, vector<128x128xf32> -> vector<128x128xf32>
    %c4_98 = arith.constant 4 : index
    %c0_99 = arith.constant 0 : index
    %c0_100 = arith.constant 0 : index
    %143 = vector.load %arg5[%c4_98, %c0_99, %c0_100] : memref<6x1x128xf32, #tpu.memory_space<vmem>>, vector<1x1x128xf32>
    %144 = vector.shape_cast %143 : vector<1x1x128xf32> to vector<1x128xf32>
    %145 = vector.broadcast %144 : vector<1x128xf32> to vector<128x128xf32>
    %146 = arith.addf %142, %145 : vector<128x128xf32>
    %cst_101 = arith.constant 0.000000e+00 : f32
    %147 = vector.broadcast %cst_101 : f32 to vector<128x128xf32>
    %148 = arith.maximumf %146, %147 : vector<128x128xf32>
    %149 = arith.truncf %148 : vector<128x128xf32> to vector<128x128xbf16>
    %c4_102 = arith.constant 4 : index
    %c0_103 = arith.constant 0 : index
    %c0_104 = arith.constant 0 : index
    %150 = vector.load %arg6[%c4_102, %c0_103, %c0_104] : memref<6x128x128xbf16, #tpu.memory_space<vmem>>, vector<1x128x128xbf16>
    %151 = vector.shape_cast %150 : vector<1x128x128xbf16> to vector<128x128xbf16>
    %cst_105 = arith.constant dense<0.000000e+00> : vector<128x128xf32>
    %152 = tpu.matmul %149, %151, %cst_105 {dimension_numbers = #tpu.dot_dimension_numbers<[1], [0], [0], [1], [0, 0, 1, 1], [], []>} : vector<128x128xbf16>, vector<128x128xbf16>, vector<128x128xf32> -> vector<128x128xf32>
    %c4_106 = arith.constant 4 : index
    %c0_107 = arith.constant 0 : index
    %c0_108 = arith.constant 0 : index
    %153 = vector.load %arg7[%c4_106, %c0_107, %c0_108] : memref<6x1x128xf32, #tpu.memory_space<vmem>>, vector<1x1x128xf32>
    %154 = vector.shape_cast %153 : vector<1x1x128xf32> to vector<1x128xf32>
    %155 = vector.broadcast %154 : vector<1x128xf32> to vector<128x128xf32>
    %156 = arith.addf %152, %155 : vector<128x128xf32>
    %cst_109 = arith.constant 0.000000e+00 : f32
    %157 = vector.broadcast %cst_109 : f32 to vector<128x128xf32>
    %158 = arith.maximumf %156, %157 : vector<128x128xf32>
    %c5 = arith.constant 5 : index
    %c0_110 = arith.constant 0 : index
    %c0_111 = arith.constant 0 : index
    %159 = vector.load %arg3[%c5, %c0_110, %c0_111] : memref<6x256x128xbf16, #tpu.memory_space<vmem>>, vector<1x256x128xbf16>
    %160 = vector.shape_cast %159 : vector<1x256x128xbf16> to vector<256x128xbf16>
    %161 = arith.extf %160 : vector<256x128xbf16> to vector<256x128xf32>
    %162 = arith.truncf %158 : vector<128x128xf32> to vector<128x128xbf16>
    %cst_112 = arith.constant dense<0.000000e+00> : vector<256x128xf32>
    %163 = tpu.matmul %0, %162, %cst_112 {dimension_numbers = #tpu.dot_dimension_numbers<[1], [0], [0], [1], [0, 0, 1, 1], [], []>} : vector<256x128xbf16>, vector<128x128xbf16>, vector<256x128xf32> -> vector<256x128xf32>
    %164 = arith.addf %163, %161 : vector<256x128xf32>
    %cst_113 = arith.constant 0.000000e+00 : f32
    %165 = vector.broadcast %cst_113 : f32 to vector<256x128xf32>
    %166 = arith.maximumf %164, %165 : vector<256x128xf32>
    %167 = arith.truncf %166 : vector<256x128xf32> to vector<256x128xbf16>
    %cst_114 = arith.constant dense<0.000000e+00> : vector<128x128xf32>
    %168 = tpu.matmul %1, %167, %cst_114 {dimension_numbers = #tpu.dot_dimension_numbers<[1], [0], [0], [1], [0, 0, 1, 1], [], []>} : vector<128x256xbf16>, vector<256x128xbf16>, vector<128x128xf32> -> vector<128x128xf32>
    %169 = arith.addf %158, %168 : vector<128x128xf32>
    %170 = arith.truncf %169 : vector<128x128xf32> to vector<128x128xbf16>
    %c5_115 = arith.constant 5 : index
    %c0_116 = arith.constant 0 : index
    %c0_117 = arith.constant 0 : index
    %171 = vector.load %arg4[%c5_115, %c0_116, %c0_117] : memref<6x128x128xbf16, #tpu.memory_space<vmem>>, vector<1x128x128xbf16>
    %172 = vector.shape_cast %171 : vector<1x128x128xbf16> to vector<128x128xbf16>
    %cst_118 = arith.constant dense<0.000000e+00> : vector<128x128xf32>
    %173 = tpu.matmul %170, %172, %cst_118 {dimension_numbers = #tpu.dot_dimension_numbers<[1], [0], [0], [1], [0, 0, 1, 1], [], []>} : vector<128x128xbf16>, vector<128x128xbf16>, vector<128x128xf32> -> vector<128x128xf32>
    %c5_119 = arith.constant 5 : index
    %c0_120 = arith.constant 0 : index
    %c0_121 = arith.constant 0 : index
    %174 = vector.load %arg5[%c5_119, %c0_120, %c0_121] : memref<6x1x128xf32, #tpu.memory_space<vmem>>, vector<1x1x128xf32>
    %175 = vector.shape_cast %174 : vector<1x1x128xf32> to vector<1x128xf32>
    %176 = vector.broadcast %175 : vector<1x128xf32> to vector<128x128xf32>
    %177 = arith.addf %173, %176 : vector<128x128xf32>
    %cst_122 = arith.constant 0.000000e+00 : f32
    %178 = vector.broadcast %cst_122 : f32 to vector<128x128xf32>
    %179 = arith.maximumf %177, %178 : vector<128x128xf32>
    %180 = arith.truncf %179 : vector<128x128xf32> to vector<128x128xbf16>
    %c5_123 = arith.constant 5 : index
    %c0_124 = arith.constant 0 : index
    %c0_125 = arith.constant 0 : index
    %181 = vector.load %arg6[%c5_123, %c0_124, %c0_125] : memref<6x128x128xbf16, #tpu.memory_space<vmem>>, vector<1x128x128xbf16>
    %182 = vector.shape_cast %181 : vector<1x128x128xbf16> to vector<128x128xbf16>
    %cst_126 = arith.constant dense<0.000000e+00> : vector<128x128xf32>
    %183 = tpu.matmul %180, %182, %cst_126 {dimension_numbers = #tpu.dot_dimension_numbers<[1], [0], [0], [1], [0, 0, 1, 1], [], []>} : vector<128x128xbf16>, vector<128x128xbf16>, vector<128x128xf32> -> vector<128x128xf32>
    %c5_127 = arith.constant 5 : index
    %c0_128 = arith.constant 0 : index
    %c0_129 = arith.constant 0 : index
    %184 = vector.load %arg7[%c5_127, %c0_128, %c0_129] : memref<6x1x128xf32, #tpu.memory_space<vmem>>, vector<1x1x128xf32>
    %185 = vector.shape_cast %184 : vector<1x1x128xf32> to vector<1x128xf32>
    %186 = vector.broadcast %185 : vector<1x128xf32> to vector<128x128xf32>
    %187 = arith.addf %183, %186 : vector<128x128xf32>
    %cst_130 = arith.constant 0.000000e+00 : f32
    %188 = vector.broadcast %cst_130 : f32 to vector<128x128xf32>
    %189 = arith.maximumf %187, %188 : vector<128x128xf32>
    %190 = arith.truncf %189 : vector<128x128xf32> to vector<128x128xbf16>
    %c0_131 = arith.constant 0 : index
    %c0_132 = arith.constant 0 : index
    %191 = vector.load %arg8[%c0_131, %c0_132] : memref<128x128xbf16, #tpu.memory_space<vmem>>, vector<128x128xbf16>
    %cst_133 = arith.constant dense<0.000000e+00> : vector<128x128xf32>
    %192 = tpu.matmul %190, %191, %cst_133 {dimension_numbers = #tpu.dot_dimension_numbers<[1], [0], [0], [1], [0, 0, 1, 1], [], []>} : vector<128x128xbf16>, vector<128x128xbf16>, vector<128x128xf32> -> vector<128x128xf32>
    %c0_134 = arith.constant 0 : index
    %c0_135 = arith.constant 0 : index
    %193 = vector.load %arg9[%c0_134, %c0_135] : memref<1x128xf32, #tpu.memory_space<vmem>>, vector<1x128xf32>
    %194 = vector.broadcast %193 : vector<1x128xf32> to vector<128x128xf32>
    %195 = arith.addf %192, %194 : vector<128x128xf32>
    %cst_136 = arith.constant 0.000000e+00 : f32
    %196 = vector.broadcast %cst_136 : f32 to vector<128x128xf32>
    %197 = arith.maximumf %195, %196 : vector<128x128xf32>
    %198 = arith.truncf %197 : vector<128x128xf32> to vector<128x128xbf16>
    %c0_137 = arith.constant 0 : index
    %c0_138 = arith.constant 0 : index
    %199 = vector.load %arg10[%c0_137, %c0_138] : memref<128x128xbf16, #tpu.memory_space<vmem>>, vector<128x128xbf16>
    %cst_139 = arith.constant dense<0.000000e+00> : vector<128x128xf32>
    %200 = tpu.matmul %198, %199, %cst_139 {dimension_numbers = #tpu.dot_dimension_numbers<[1], [0], [0], [1], [0, 0, 1, 1], [], []>} : vector<128x128xbf16>, vector<128x128xbf16>, vector<128x128xf32> -> vector<128x128xf32>
    %c0_140 = arith.constant 0 : index
    %c0_141 = arith.constant 0 : index
    %201 = vector.load %arg11[%c0_140, %c0_141] : memref<1x128xf32, #tpu.memory_space<vmem>>, vector<1x128xf32>
    %202 = vector.broadcast %201 : vector<1x128xf32> to vector<128x128xf32>
    %203 = arith.addf %200, %202 : vector<128x128xf32>
    %cst_142 = arith.constant 0.000000e+00 : f32
    %204 = vector.broadcast %cst_142 : f32 to vector<128x128xf32>
    %205 = arith.maximumf %203, %204 : vector<128x128xf32>
    %206 = arith.truncf %205 : vector<128x128xf32> to vector<128x128xbf16>
    %c0_143 = arith.constant 0 : index
    %c0_144 = arith.constant 0 : index
    %207 = vector.load %arg12[%c0_143, %c0_144] : memref<128x128xbf16, #tpu.memory_space<vmem>>, vector<128x128xbf16>
    %cst_145 = arith.constant dense<0.000000e+00> : vector<128x128xf32>
    %208 = tpu.matmul %206, %207, %cst_145 {dimension_numbers = #tpu.dot_dimension_numbers<[1], [0], [0], [1], [0, 0, 1, 1], [], []>} : vector<128x128xbf16>, vector<128x128xbf16>, vector<128x128xf32> -> vector<128x128xf32>
    %c0_146 = arith.constant 0 : index
    %c0_147 = arith.constant 0 : index
    %209 = vector.load %arg13[%c0_146, %c0_147] : memref<1x128xf32, #tpu.memory_space<vmem>>, vector<1x128xf32>
    %210 = vector.broadcast %209 : vector<1x128xf32> to vector<128x128xf32>
    %211 = arith.addf %208, %210 : vector<128x128xf32>
    %c0_148 = arith.constant 0 : index
    %c0_149 = arith.constant 0 : index
    %212 = vector.load %arg14[%c0_148, %c0_149] : memref<128x128xf32, #tpu.memory_space<vmem>>, vector<128x128xf32>
    tpu.vector_store %arg14[%c0_148, %c0_149], %211 {strides = array<i32>} : memref<128x128xf32, #tpu.memory_space<vmem>>, vector<128x128xf32>,
    return
  }
}

</mosaic_0001>

<llo_original>
// kernel: tpu_custom_call.1
$region0: #{tpu_custom_call.1}
  #allocation0 [shape = 'u32[]', space=smem, size = 0x4, offset = 0x4, fixed_abs, tag = 'smem constant byte address 0x4 - core index']
  #allocation1 [shape = 'u32[144,128]{1,0:T(1,128)}', space=vmem, size = 0x12000, scoped, tag = 'internal scratch']
  %s0 = inlined_call_operand.hbm [shape: bf16[128,128], index: 0, kind: input, shape index: {}]
  %s1 = inlined_call_operand.hbm [shape: bf16[256,128], index: 1, kind: input, shape index: {}]
  %s2 = inlined_call_operand.hbm [shape: bf16[128,256], index: 2, kind: input, shape index: {}]
  %s3 = inlined_call_operand.hbm [shape: bf16[6,256,128], index: 3, kind: input, shape index: {}]
  %s4 = inlined_call_operand.hbm [shape: bf16[6,128,128], index: 4, kind: input, shape index: {}]
  %s5 = inlined_call_operand.vmem [shape: f32[6,1,128], index: 5, kind: input, shape index: {}]
  %s6 = inlined_call_operand.hbm [shape: bf16[6,128,128], index: 6, kind: input, shape index: {}]
  %s7 = inlined_call_operand.vmem [shape: f32[6,1,128], index: 7, kind: input, shape index: {}]
  %s8 = inlined_call_operand.hbm [shape: bf16[128,128], index: 8, kind: input, shape index: {}]
  %s9 = inlined_call_operand.vmem [shape: f32[1,128], index: 9, kind: input, shape index: {}]
  %s10 = inlined_call_operand.hbm [shape: bf16[128,128], index: 10, kind: input, shape index: {}]
  %s11 = inlined_call_operand.vmem [shape: f32[1,128], index: 11, kind: input, shape index: {}]
  %s12 = inlined_call_operand.hbm [shape: bf16[128,128], index: 12, kind: input, shape index: {}]
  %s13 = inlined_call_operand.vmem [shape: f32[1,128], index: 13, kind: input, shape index: {}]
  %s14 = inlined_call_operand.hbm [shape: f32[128,128], index: 14, kind: output, shape index: {}]
  %s15 = sld [smem:[#allocation0]]
  $region102: #{tpu_custom_call.1} parent=0
    _
  %s17 = ssub.s32 1, %s15
  %s18 = scalar_select 0, %s17, %s15
  $region1: #{tpu_custom_call.1} parent=0
    #allocation2 [shape = 'u8[32768]{0}', space=vmem, size = 0x8000, scoped, tag = 'input window, operand 0, single buffered']
    #allocation3 [shape = 's32[1]{0}', space=sflag, size = 0x4, scoped, tag = 'scoped memory for tpu_custom_call.1']
    #allocation4 [shape = 's32[1]{0}', space=sflag, size = 0x4, scoped, tag = 'scoped memory for tpu_custom_call.1']
    #allocation5 [shape = 'u8[65536]{0}', space=vmem, size = 0x10000, scoped, tag = 'input window, operand 1, single buffered']
    #allocation6 [shape = 's32[1]{0}', space=sflag, size = 0x4, scoped, tag = 'scoped memory for tpu_custom_call.1']
    #allocation7 [shape = 'u8[65536]{0}', space=vmem, size = 0x10000, scoped, tag = 'input window, operand 2, single buffered']
    #allocation8 [shape = 'u8[393216]{0}', space=vmem, size = 0x60000, scoped, tag = 'input window, operand 3, single buffered']
    #allocation9 [shape = 's32[1]{0}', space=sflag, size = 0x4, scoped, tag = 'scoped memory for tpu_custom_call.1']
    #allocation10 [shape = 'u8[196608]{0}', space=vmem, size = 0x30000, scoped, tag = 'input window, operand 4, single buffered']
    #allocation11 [shape = 'u8[196608]{0}', space=vmem, size = 0x30000, scoped, tag = 'input window, operand 6, single buffered']
    #allocation12 [shape = 's32[1]{0}', space=sflag, size = 0x4, scoped, tag = 'scoped memory for tpu_custom_call.1']
    #allocation13 [shape = 'u8[32768]{0}', space=vmem, size = 0x8000, scoped, tag = 'input window, operand 8, single buffered']
    #allocation14 [shape = 'u8[32768]{0}', space=vmem, size = 0x8000, scoped, tag = 'input window, operand 10, single buffered']
    #allocation15 [shape = 's32[1]{0}', space=sflag, size = 0x4, scoped, tag = 'scoped memory for tpu_custom_call.1']
    #allocation16 [shape = 'u8[32768]{0}', space=vmem, size = 0x8000, scoped, tag = 'input window, operand 12, single buffered']
    #allocation17 [shape = 'u8[65536]{0}', space=vmem, size = 0x10000, scoped, tag = 'output window, operand 0, single buffered']
    %19 = vsyncpa [#allocation3], 0
    %20 = vsyncpa [#allocation6], 0
    %21 = vsyncpa [#allocation9], 0
    %22 = vsyncpa [#allocation12], 0
    %23 = vsyncpa [#allocation15], 0
    %24 = vsyncpa [#allocation4], 0
    // Predicated region
    $region2: #{tpu_custom_call.1} parent=1 // pred_check
      _
    $region3: #{tpu_custom_call.1} parent=1 // pred_check_branch
      %26 = sbr.rel (0) target = $region5
    $region4: #{tpu_custom_call.1} parent=1 // pred_region
      %s28 = ssub.s32 1024, 1024
      %29 = vsyncadd [#allocation3], %s28
      %s30 = sshll.u32 [#allocation2], 4
      %s31 = int_to_ptr.vmem [resolvable:$true] %s30
      %36 = dma.hbm_to_vmem [thread:$0]  %s0, 1024, %s31, [#allocation3], 64, 64, 4
    $region5: #{tpu_custom_call.1} parent=1 // pred_fallthru
      _
    // Predicated region
    $region6: #{tpu_custom_call.1} parent=1 // pred_check
      _
    $region7: #{tpu_custom_call.1} parent=1 // pred_check_branch
      %38 = sbr.rel (0) target = $region9
    $region8: #{tpu_custom_call.1} parent=1 // pred_region
      %s40 = ssub.s32 2048, 2048
      %41 = vsyncadd [#allocation6], %s40
      %s42 = sshll.u32 [#allocation5], 4
      %s43 = int_to_ptr.vmem [resolvable:$true] %s42
      %48 = dma.hbm_to_vmem [thread:$0]  %s1, 2048, %s43, [#allocation6], 64, 64, 4
    $region9: #{tpu_custom_call.1} parent=1 // pred_fallthru
      _
    // Predicated region
    $region10: #{tpu_custom_call.1} parent=1 // pred_check
      _
    $region11: #{tpu_custom_call.1} parent=1 // pred_check_branch
      %50 = sbr.rel (0) target = $region13
    $region12: #{tpu_custom_call.1} parent=1 // pred_region
      %s52 = ssub.s32 2048, 2048
      %53 = vsyncadd [#allocation6], %s52
      %s54 = sshll.u32 [#allocation7], 4
      %s55 = int_to_ptr.vmem [resolvable:$true] %s54
      %60 = dma.hbm_to_vmem [thread:$0]  %s2, 2048, %s55, [#allocation6], 128, 128, 8
    $region13: #{tpu_custom_call.1} parent=1 // pred_fallthru
      _
    // Predicated region
    $region14: #{tpu_custom_call.1} parent=1 // pred_check
      _
    $region15: #{tpu_custom_call.1} parent=1 // pred_check_branch
      %62 = sbr.rel (0) target = $region17
    $region16: #{tpu_custom_call.1} parent=1 // pred_region
      %s64 = ssub.s32 12288, 12288
      %65 = vsyncadd [#allocation9], %s64
      %s66 = sshll.u32 [#allocation8], 4
      %s67 = int_to_ptr.vmem [resolvable:$true] %s66
      %72 = dma.hbm_to_vmem [thread:$0]  %s3, 12288, %s67, [#allocation9], 64, 64, 4
    $region17: #{tpu_custom_call.1} parent=1 // pred_fallthru
      _
    // Predicated region
    $region18: #{tpu_custom_call.1} parent=1 // pred_check
      _
    $region19: #{tpu_custom_call.1} parent=1 // pred_check_branch
      %74 = sbr.rel (0) target = $region21
    $region20: #{tpu_custom_call.1} parent=1 // pred_region
      %s76 = ssub.s32 6144, 6144
      %77 = vsyncadd [#allocation9], %s76
      %s78 = sshll.u32 [#allocation10], 4
      %s79 = int_to_ptr.vmem [resolvable:$true] %s78
      %84 = dma.hbm_to_vmem [thread:$0]  %s4, 6144, %s79, [#allocation9], 64, 64, 4
    $region21: #{tpu_custom_call.1} parent=1 // pred_fallthru
      _
    // Predicated region
    $region22: #{tpu_custom_call.1} parent=1 // pred_check
      _
    $region23: #{tpu_custom_call.1} parent=1 // pred_check_branch
      %86 = sbr.rel (0) target = $region25
    $region24: #{tpu_custom_call.1} parent=1 // pred_region
      _
    $region25: #{tpu_custom_call.1} parent=1 // pred_fallthru
      _
    // Predicated region
    $region26: #{tpu_custom_call.1} parent=1 // pred_check
      _
    $region27: #{tpu_custom_call.1} parent=1 // pred_check_branch
      %88 = sbr.rel (0) target = $region29
    $region28: #{tpu_custom_call.1} parent=1 // pred_region
      %s90 = ssub.s32 6144, 6144
      %91 = vsyncadd [#allocation12], %s90
      %s92 = sshll.u32 [#allocation11], 4
      %s93 = int_to_ptr.vmem [resolvable:$true] %s92
      %98 = dma.hbm_to_vmem [thread:$0]  %s6, 6144, %s93, [#allocation12], 64, 64, 4
    $region29: #{tpu_custom_call.1} parent=1 // pred_fallthru
      _
    // Predicated region
    $region30: #{tpu_custom_call.1} parent=1 // pred_check
      _
    $region31: #{tpu_custom_call.1} parent=1 // pred_check_branch
      %100 = sbr.rel (0) target = $region33
    $region32: #{tpu_custom_call.1} parent=1 // pred_region
      _
    $region33: #{tpu_custom_call.1} parent=1 // pred_fallthru
      _
    // Predicated region
    $region34: #{tpu_custom_call.1} parent=1 // pred_check
      _
    $region35: #{tpu_custom_call.1} parent=1 // pred_check_branch
      %102 = sbr.rel (0) target = $region37
    $region36: #{tpu_custom_call.1} parent=1 // pred_region
      %s104 = ssub.s32 1024, 1024
      %105 = vsyncadd [#allocation12], %s104
      %s106 = sshll.u32 [#allocation13], 4
      %s107 = int_to_ptr.vmem [resolvable:$true] %s106
      %112 = dma.hbm_to_vmem [thread:$0]  %s8, 1024, %s107, [#allocation12], 64, 64, 4
    $region37: #{tpu_custom_call.1} parent=1 // pred_fallthru
      _
    // Predicated region
    $region38: #{tpu_custom_call.1} parent=1 // pred_check
      _
    $region39: #{tpu_custom_call.1} parent=1 // pred_check_branch
      %114 = sbr.rel (0) target = $region41
    $region40: #{tpu_custom_call.1} parent=1 // pred_region
      _
    $region41: #{tpu_custom_call.1} parent=1 // pred_fallthru
      _
    // Predicated region
    $region42: #{tpu_custom_call.1} parent=1 // pred_check
      _
    $region43: #{tpu_custom_call.1} parent=1 // pred_check_branch
      %116 = sbr.rel (0) target = $region45
    $region44: #{tpu_custom_call.1} parent=1 // pred_region
      %s118 = ssub.s32 1024, 1024
      %119 = vsyncadd [#allocation15], %s118
      %s120 = sshll.u32 [#allocation14], 4
      %s121 = int_to_ptr.vmem [resolvable:$true] %s120
      %126 = dma.hbm_to_vmem [thread:$0]  %s10, 1024, %s121, [#allocation15], 64, 64, 4
    $region45: #{tpu_custom_call.1} parent=1 // pred_fallthru
      _
    // Predicated region
    $region46: #{tpu_custom_call.1} parent=1 // pred_check
      _
    $region47: #{tpu_custom_call.1} parent=1 // pred_check_branch
      %128 = sbr.rel (0) target = $region49
    $region48: #{tpu_custom_call.1} parent=1 // pred_region
      _
    $region49: #{tpu_custom_call.1} parent=1 // pred_fallthru
      _
    // Predicated region
    $region50: #{tpu_custom_call.1} parent=1 // pred_check
      _
    $region51: #{tpu_custom_call.1} parent=1 // pred_check_branch
      %130 = sbr.rel (0) target = $region53
    $region52: #{tpu_custom_call.1} parent=1 // pred_region
      %s132 = ssub.s32 1024, 1024
      %133 = vsyncadd [#allocation15], %s132
      %s134 = sshll.u32 [#allocation16], 4
      %s135 = int_to_ptr.vmem [resolvable:$true] %s134
      %140 = dma.hbm_to_vmem [thread:$0]  %s12, 1024, %s135, [#allocation15], 64, 64, 4
    $region53: #{tpu_custom_call.1} parent=1 // pred_fallthru
      _
    // Predicated region
    $region54: #{tpu_custom_call.1} parent=1 // pred_check
      _
    $region55: #{tpu_custom_call.1} parent=1 // pred_check_branch
      %142 = sbr.rel (0) target = $region57
    $region56: #{tpu_custom_call.1} parent=1 // pred_region
      _
    $region57: #{tpu_custom_call.1} parent=1 // pred_fallthru
      _
    // Predicated region
    $region58: #{tpu_custom_call.1} parent=1 // pred_check
      _
    $region59: #{tpu_custom_call.1} parent=1 // pred_check_branch
      %144 = sbr.rel (0) target = $region61
    $region60: #{tpu_custom_call.1} parent=1 // pred_region
      %145 = dma.done [#allocation3], 1024
    $region61: #{tpu_custom_call.1} parent=1 // pred_fallthru
      _
    // Predicated region
    $region62: #{tpu_custom_call.1} parent=1 // pred_check
      _
    $region63: #{tpu_custom_call.1} parent=1 // pred_check_branch
      %147 = sbr.rel (0) target = $region65
    $region64: #{tpu_custom_call.1} parent=1 // pred_region
      %148 = dma.done [#allocation6], 2048
    $region65: #{tpu_custom_call.1} parent=1 // pred_fallthru
      _
    // Predicated region
    $region66: #{tpu_custom_call.1} parent=1 // pred_check
      _
    $region67: #{tpu_custom_call.1} parent=1 // pred_check_branch
      %150 = sbr.rel (0) target = $region69
    $region68: #{tpu_custom_call.1} parent=1 // pred_region
      %151 = dma.done [#allocation6], 2048
    $region69: #{tpu_custom_call.1} parent=1 // pred_fallthru
      _
    // Predicated region
    $region70: #{tpu_custom_call.1} parent=1 // pred_check
      _
    $region71: #{tpu_custom_call.1} parent=1 // pred_check_branch
      %153 = sbr.rel (0) target = $region73
    $region72: #{tpu_custom_call.1} parent=1 // pred_region
      %154 = dma.done [#allocation9], 12288
    $region73: #{tpu_custom_call.1} parent=1 // pred_fallthru
      _
    // Predicated region
    $region74: #{tpu_custom_call.1} parent=1 // pred_check
      _
    $region75: #{tpu_custom_call.1} parent=1 // pred_check_branch
      %156 = sbr.rel (0) target = $region77
    $region76: #{tpu_custom_call.1} parent=1 // pred_region
      %157 = dma.done [#allocation9], 6144
    $region77: #{tpu_custom_call.1} parent=1 // pred_fallthru
      _
    // Predicated region
    $region78: #{tpu_custom_call.1} parent=1 // pred_check
      _
    $region79: #{tpu_custom_call.1} parent=1 // pred_check_branch
      %159 = sbr.rel (0) target = $region81
    $region80: #{tpu_custom_call.1} parent=1 // pred_region
      %160 = dma.done [#allocation12], 6144
    $region81: #{tpu_custom_call.1} parent=1 // pred_fallthru
      _
    // Predicated region
    $region82: #{tpu_custom_call.1} parent=1 // pred_check
      _
    $region83: #{tpu_custom_call.1} parent=1 // pred_check_branch
      %162 = sbr.rel (0) target = $region85
    $region84: #{tpu_custom_call.1} parent=1 // pred_region
      %163 = dma.done [#allocation12], 1024
    $region85: #{tpu_custom_call.1} parent=1 // pred_fallthru
      _
    // Predicated region
    $region86: #{tpu_custom_call.1} parent=1 // pred_check
      _
    $region87: #{tpu_custom_call.1} parent=1 // pred_check_branch
      %165 = sbr.rel (0) target = $region89
    $region88: #{tpu_custom_call.1} parent=1 // pred_region
      %166 = dma.done [#allocation15], 1024
    $region89: #{tpu_custom_call.1} parent=1 // pred_fallthru
      _
    // Predicated region
    $region90: #{tpu_custom_call.1} parent=1 // pred_check
      _
    $region91: #{tpu_custom_call.1} parent=1 // pred_check_branch
      %168 = sbr.rel (0) target = $region93
    $region92: #{tpu_custom_call.1} parent=1 // pred_region
      %169 = dma.done [#allocation15], 1024
    $region93: #{tpu_custom_call.1} parent=1 // pred_fallthru
      _
    %v171 = vld [vmem:[#allocation5] sm:$0xf]
    %v172 = vld [vmem:[#allocation5 + $0x4] sm:$0xf]
    %v173 = vld [vmem:[#allocation5 + $0x8] sm:$0xf]
    %v174 = vld [vmem:[#allocation5 + $0xc] sm:$0xf]
    %v175 = vld [vmem:[#allocation5 + $0x10] sm:$0xf]
    %v176 = vld [vmem:[#allocation5 + $0x14] sm:$0xf]
    %v177 = vld [vmem:[#allocation5 + $0x18] sm:$0xf]
    %v178 = vld [vmem:[#allocation5 + $0x1c] sm:$0xf]
    %v179 = vld [vmem:[#allocation5 + $0x20] sm:$0xf]
    %v180 = vld [vmem:[#allocation5 + $0x24] sm:$0xf]
    %v181 = vld [vmem:[#allocation5 + $0x28] sm:$0xf]
    %v182 = vld [vmem:[#allocation5 + $0x2c] sm:$0xf]
    %v183 = vld [vmem:[#allocation5 + $0x30] sm:$0xf]
    %v184 = vld [vmem:[#allocation5 + $0x34] sm:$0xf]
    %v185 = vld [vmem:[#allocation5 + $0x38] sm:$0xf]
    %v186 = vld [vmem:[#allocation5 + $0x3c] sm:$0xf]
    %v187 = vld [vmem:[#allocation5 + $0x40] sm:$0xf]
    %v188 = vld [vmem:[#allocation5 + $0x44] sm:$0xf]
    %v189 = vld [vmem:[#allocation5 + $0x48] sm:$0xf]
    %v190 = vld [vmem:[#allocation5 + $0x4c] sm:$0xf]
    %v191 = vld [vmem:[#allocation5 + $0x50] sm:$0xf]
    %v192 = vld [vmem:[#allocation5 + $0x54] sm:$0xf]
    %v193 = vld [vmem:[#allocation5 + $0x58] sm:$0xf]
    %v194 = vld [vmem:[#allocation5 + $0x5c] sm:$0xf]
    %v195 = vld [vmem:[#allocation5 + $0x60] sm:$0xf]
    %v196 = vld [vmem:[#allocation5 + $0x64] sm:$0xf]
    %v197 = vld [vmem:[#allocation5 + $0x68] sm:$0xf]
    %v198 = vld [vmem:[#allocation5 + $0x6c] sm:$0xf]
    %v199 = vld [vmem:[#allocation5 + $0x70] sm:$0xf]
    %v200 = vld [vmem:[#allocation5 + $0x74] sm:$0xf]
    %v201 = vld [vmem:[#allocation5 + $0x78] sm:$0xf]
    %v202 = vld [vmem:[#allocation5 + $0x7c] sm:$0xf]
    %v203 = vld [vmem:[#allocation7] sm:$0xff]
    %v204 = vld [vmem:[#allocation7 + $0x8] sm:$0xff]
    %v205 = vld [vmem:[#allocation7 + $0x10] sm:$0xff]
    %v206 = vld [vmem:[#allocation7 + $0x18] sm:$0xff]
    %v207 = vld [vmem:[#allocation7 + $0x20] sm:$0xff]
    %v208 = vld [vmem:[#allocation7 + $0x28] sm:$0xff]
    %v209 = vld [vmem:[#allocation7 + $0x30] sm:$0xff]
    %v210 = vld [vmem:[#allocation7 + $0x38] sm:$0xff]
    %v211 = vld [vmem:[#allocation7 + $0x40] sm:$0xff]
    %v212 = vld [vmem:[#allocation7 + $0x48] sm:$0xff]
    %v213 = vld [vmem:[#allocation7 + $0x50] sm:$0xff]
    %v214 = vld [vmem:[#allocation7 + $0x58] sm:$0xff]
    %v215 = vld [vmem:[#allocation7 + $0x60] sm:$0xff]
    %v216 = vld [vmem:[#allocation7 + $0x68] sm:$0xff]
    %v217 = vld [vmem:[#allocation7 + $0x70] sm:$0xff]
    %v218 = vld [vmem:[#allocation7 + $0x78] sm:$0xff]
    %v219 = vld [vmem:[#allocation2] sm:$0xf]
    %v220 = vld [vmem:[#allocation2 + $0x4] sm:$0xf]
    %v221 = vld [vmem:[#allocation2 + $0x8] sm:$0xf]
    %v222 = vld [vmem:[#allocation2 + $0xc] sm:$0xf]
    %v223 = vld [vmem:[#allocation2 + $0x10] sm:$0xf]
    %v224 = vld [vmem:[#allocation2 + $0x14] sm:$0xf]
    %v225 = vld [vmem:[#allocation2 + $0x18] sm:$0xf]
    %v226 = vld [vmem:[#allocation2 + $0x1c] sm:$0xf]
    %v227 = vld [vmem:[#allocation2 + $0x20] sm:$0xf]
    %v228 = vld [vmem:[#allocation2 + $0x24] sm:$0xf]
    %v229 = vld [vmem:[#allocation2 + $0x28] sm:$0xf]
    %v230 = vld [vmem:[#allocation2 + $0x2c] sm:$0xf]
    %v231 = vld [vmem:[#allocation2 + $0x30] sm:$0xf]
    %v232 = vld [vmem:[#allocation2 + $0x34] sm:$0xf]
    %v233 = vld [vmem:[#allocation2 + $0x38] sm:$0xf]
    %v234 = vld [vmem:[#allocation2 + $0x3c] sm:$0xf]
    %v235 = vunpack.c.l.bf16 %v219
    %v236 = vunpack.c.l.bf16 %v220
    %v237 = vunpack.c.l.bf16 %v221
    %v238 = vunpack.c.l.bf16 %v222
    %v239 = vunpack.c.l.bf16 %v223
    %v240 = vunpack.c.l.bf16 %v224
    %v241 = vunpack.c.l.bf16 %v225
    %v242 = vunpack.c.l.bf16 %v226
    %v243 = vunpack.c.l.bf16 %v227
    %v244 = vunpack.c.l.bf16 %v228
    %v245 = vunpack.c.l.bf16 %v229
    %v246 = vunpack.c.l.bf16 %v230
    %v247 = vunpack.c.l.bf16 %v231
    %v248 = vunpack.c.l.bf16 %v232
    %v249 = vunpack.c.l.bf16 %v233
    %v250 = vunpack.c.l.bf16 %v234
    %v251 = vld [vmem:[#allocation8] sm:$0xf]
    %v252 = vld [vmem:[#allocation8 + $0x4] sm:$0xf]
    %v253 = vld [vmem:[#allocation8 + $0x8] sm:$0xf]
    %v254 = vld [vmem:[#allocation8 + $0xc] sm:$0xf]
    %v255 = vld [vmem:[#allocation8 + $0x10] sm:$0xf]
    %v256 = vld [vmem:[#allocation8 + $0x14] sm:$0xf]
    %v257 = vld [vmem:[#allocation8 + $0x18] sm:$0xf]
    %v258 = vld [vmem:[#allocation8 + $0x1c] sm:$0xf]
    %v259 = vld [vmem:[#allocation8 + $0x20] sm:$0xf]
    %v260 = vld [vmem:[#allocation8 + $0x24] sm:$0xf]
    %v261 = vld [vmem:[#allocation8 + $0x28] sm:$0xf]
    %v262 = vld [vmem:[#allocation8 + $0x2c] sm:$0xf]
    %v263 = vld [vmem:[#allocation8 + $0x30] sm:$0xf]
    %v264 = vld [vmem:[#allocation8 + $0x34] sm:$0xf]
    %v265 = vld [vmem:[#allocation8 + $0x38] sm:$0xf]
    %v266 = vld [vmem:[#allocation8 + $0x3c] sm:$0xf]
    %v267 = vld [vmem:[#allocation8 + $0x40] sm:$0xf]
    %v268 = vld [vmem:[#allocation8 + $0x44] sm:$0xf]
    %v269 = vld [vmem:[#allocation8 + $0x48] sm:$0xf]
    %v270 = vld [vmem:[#allocation8 + $0x4c] sm:$0xf]
    %v271 = vld [vmem:[#allocation8 + $0x50] sm:$0xf]
    %v272 = vld [vmem:[#allocation8 + $0x54] sm:$0xf]
    %v273 = vld [vmem:[#allocation8 + $0x58] sm:$0xf]
    %v274 = vld [vmem:[#allocation8 + $0x5c] sm:$0xf]
    %v275 = vld [vmem:[#allocation8 + $0x60] sm:$0xf]
    %v276 = vld [vmem:[#allocation8 + $0x64] sm:$0xf]
    %v277 = vld [vmem:[#allocation8 + $0x68] sm:$0xf]
    %v278 = vld [vmem:[#allocation8 + $0x6c] sm:$0xf]
    %v279 = vld [vmem:[#allocation8 + $0x70] sm:$0xf]
    %v280 = vld [vmem:[#allocation8 + $0x74] sm:$0xf]
    %v281 = vld [vmem:[#allocation8 + $0x78] sm:$0xf]
    %v282 = vld [vmem:[#allocation8 + $0x7c] sm:$0xf]
    %v283 = vunpack.c.l.bf16 %v251
    %v284 = vunpack.c.l.bf16 %v252
    %v285 = vunpack.c.l.bf16 %v253
    %v286 = vunpack.c.l.bf16 %v254
    %v287 = vunpack.c.l.bf16 %v255
    %v288 = vunpack.c.l.bf16 %v256
    %v289 = vunpack.c.l.bf16 %v257
    %v290 = vunpack.c.l.bf16 %v258
    %v291 = vunpack.c.l.bf16 %v259
    %v292 = vunpack.c.l.bf16 %v260
    %v293 = vunpack.c.l.bf16 %v261
    %v294 = vunpack.c.l.bf16 %v262
    %v295 = vunpack.c.l.bf16 %v263
    %v296 = vunpack.c.l.bf16 %v264
    %v297 = vunpack.c.l.bf16 %v265
    %v298 = vunpack.c.l.bf16 %v266
    %v299 = vunpack.c.l.bf16 %v267
    %v300 = vunpack.c.l.bf16 %v268
    %v301 = vunpack.c.l.bf16 %v269
    %v302 = vunpack.c.l.bf16 %v270
    %v303 = vunpack.c.l.bf16 %v271
    %v304 = vunpack.c.l.bf16 %v272
    %v305 = vunpack.c.l.bf16 %v273
    %v306 = vunpack.c.l.bf16 %v274
    %v307 = vunpack.c.l.bf16 %v275
    %v308 = vunpack.c.l.bf16 %v276
    %v309 = vunpack.c.l.bf16 %v277
    %v310 = vunpack.c.l.bf16 %v278
    %v311 = vunpack.c.l.bf16 %v279
    %v312 = vunpack.c.l.bf16 %v280
    %v313 = vunpack.c.l.bf16 %v281
    %v314 = vunpack.c.l.bf16 %v282
    %v347 = vunpack.c.l.b16 %v171
    %v348 = vunpack.c.l.b16 %v172
    %v349 = vunpack.c.l.b16 %v173
    %v350 = vunpack.c.l.b16 %v174
    %v351 = vunpack.c.l.b16 %v175
    %v352 = vunpack.c.l.b16 %v176
    %v353 = vunpack.c.l.b16 %v177
    %v354 = vunpack.c.l.b16 %v178
    %v355 = vunpack.c.l.b16 %v179
    %v356 = vunpack.c.l.b16 %v180
    %v357 = vunpack.c.l.b16 %v181
    %v358 = vunpack.c.l.b16 %v182
    %v359 = vunpack.c.l.b16 %v183
    %v360 = vunpack.c.l.b16 %v184
    %v361 = vunpack.c.l.b16 %v185
    %v362 = vunpack.c.l.b16 %v186
    %v363 = vunpack.c.l.b16 %v187
    %v364 = vunpack.c.l.b16 %v188
    %v365 = vunpack.c.l.b16 %v189
    %v366 = vunpack.c.l.b16 %v190
    %v367 = vunpack.c.l.b16 %v191
    %v368 = vunpack.c.l.b16 %v192
    %v369 = vunpack.c.l.b16 %v193
    %v370 = vunpack.c.l.b16 %v194
    %v371 = vunpack.c.l.b16 %v195
    %v372 = vunpack.c.l.b16 %v196
    %v373 = vunpack.c.l.b16 %v197
    %v374 = vunpack.c.l.b16 %v198
    %v375 = vunpack.c.l.b16 %v199
    %v376 = vunpack.c.l.b16 %v200
    %v377 = vunpack.c.l.b16 %v201
    %v378 = vunpack.c.l.b16 %v202
    %v379 = vpack.c.b16 %v348, %v347
    %v380 = vpack.c.b16 %v350, %v349
    %v381 = vpack.c.b16 %v352, %v351
    %v382 = vpack.c.b16 %v354, %v353
    %v383 = vpack.c.b16 %v356, %v355
    %v384 = vpack.c.b16 %v358, %v357
    %v385 = vpack.c.b16 %v360, %v359
    %v386 = vpack.c.b16 %v362, %v361
    %v387 = vpack.c.b16 %v364, %v363
    %v388 = vpack.c.b16 %v366, %v365
    %v389 = vpack.c.b16 %v368, %v367
    %v390 = vpack.c.b16 %v370, %v369
    %v391 = vpack.c.b16 %v372, %v371
    %v392 = vpack.c.b16 %v374, %v373
    %v393 = vpack.c.b16 %v376, %v375
    %v394 = vpack.c.b16 %v378, %v377
    %v427 = vunpack.c.l.b16 %v219
    %v428 = vunpack.c.l.b16 %v220
    %v429 = vunpack.c.l.b16 %v221
    %v430 = vunpack.c.l.b16 %v222
    %v431 = vunpack.c.l.b16 %v223
    %v432 = vunpack.c.l.b16 %v224
    %v433 = vunpack.c.l.b16 %v225
    %v434 = vunpack.c.l.b16 %v226
    %v435 = vunpack.c.l.b16 %v227
    %v436 = vunpack.c.l.b16 %v228
    %v437 = vunpack.c.l.b16 %v229
    %v438 = vunpack.c.l.b16 %v230
    %v439 = vunpack.c.l.b16 %v231
    %v440 = vunpack.c.l.b16 %v232
    %v441 = vunpack.c.l.b16 %v233
    %v442 = vunpack.c.l.b16 %v234
    %v443 = vpack.c.b16 %v428, %v427
    %v444 = vpack.c.b16 %v430, %v429
    %v445 = vpack.c.b16 %v432, %v431
    %v446 = vpack.c.b16 %v434, %v433
    %v447 = vpack.c.b16 %v436, %v435
    %v448 = vpack.c.b16 %v438, %v437
    %v449 = vpack.c.b16 %v440, %v439
    %v450 = vpack.c.b16 %v442, %v441
    %459 = vmatprep.subr.bf16.mxu0 0
    %460 = vmatpush1.bf16.msra.mxu0 %v443
    %461 = vmatprep.subr.bf16.mxu0 0
    %462 = vmatpush1.bf16.msra.mxu0 %v444
    %463 = vmatprep.subr.bf16.mxu0 0
    %464 = vmatpush1.bf16.msra.mxu0 %v445
    %465 = vmatprep.subr.bf16.mxu0 0
    %466 = vmatpush1.bf16.msra.mxu0 %v446
    %467 = vmatprep.subr.bf16.mxu0 0
    %468 = vmatpush1.bf16.msra.mxu0 %v447
    %469 = vmatprep.subr.bf16.mxu0 0
    %470 = vmatpush1.bf16.msra.mxu0 %v448
    %471 = vmatprep.subr.bf16.mxu0 0
    %472 = vmatpush1.bf16.msra.mxu0 %v449
    %473 = vmatprep.subr.bf16.mxu0 0
    %474 = vmatpush1.bf16.msra.mxu0 %v450
    %475 = vmatprep.subr.bf16.mxu0 0
    %476 = vmatpush1.bf16.msra.mxu0 0
    %477 = vmatprep.subr.bf16.mxu0 0
    %478 = vmatpush1.bf16.msra.mxu0 0
    %479 = vmatprep.subr.bf16.mxu0 0
    %480 = vmatpush1.bf16.msra.mxu0 0
    %481 = vmatprep.subr.bf16.mxu0 0
    %482 = vmatpush1.bf16.msra.mxu0 0
    %483 = vmatprep.subr.bf16.mxu0 0
    %484 = vmatpush1.bf16.msra.mxu0 0
    %485 = vmatprep.subr.bf16.mxu0 0
    %486 = vmatpush1.bf16.msra.mxu0 0
    %487 = vmatprep.subr.bf16.mxu0 0
    %488 = vmatpush1.bf16.msra.mxu0 0
    %489 = vmatprep.subr.bf16.mxu0 0
    %490 = vmatpush1.bf16.msra.mxu0 0
    %491 = vmatprep.mubr.bf16.mxu0 0
    %492 = vmatmul.mubr.bf16.gmra.mrb[0].mxu0 %v379
    %v493 = vpop.f32.mrb[0].mxu0
    %v494 = vadd.f32 %v283, %v493
    %v495 = vpop.f32.mrb[0].mxu0
    %v496 = vpop.f32.mrb[0].mxu0
    %v497 = vadd.f32 %v284, %v496
    %v498 = vpop.f32.mrb[0].mxu0
    %499 = vmatprep.mubr.bf16.mxu0 0
    %500 = vmatmul.mubr.bf16.gmra.mrb[0].mxu0 %v380
    %v501 = vpop.f32.mrb[0].mxu0
    %v502 = vadd.f32 %v285, %v501
    %v503 = vpop.f32.mrb[0].mxu0
    %v504 = vpop.f32.mrb[0].mxu0
    %v505 = vadd.f32 %v286, %v504
    %v506 = vpop.f32.mrb[0].mxu0
    %507 = vmatprep.mubr.bf16.mxu0 0
    %508 = vmatmul.mubr.bf16.gmra.mrb[0].mxu0 %v381
    %v509 = vpop.f32.mrb[0].mxu0
    %v510 = vadd.f32 %v287, %v509
    %v511 = vpop.f32.mrb[0].mxu0
    %v512 = vpop.f32.mrb[0].mxu0
    %v513 = vadd.f32 %v288, %v512
    %v514 = vpop.f32.mrb[0].mxu0
    %515 = vmatprep.mubr.bf16.mxu0 0
    %516 = vmatmul.mubr.bf16.gmra.mrb[0].mxu0 %v382
    %v517 = vpop.f32.mrb[0].mxu0
    %v518 = vadd.f32 %v289, %v517
    %v519 = vpop.f32.mrb[0].mxu0
    %v520 = vpop.f32.mrb[0].mxu0
    %v521 = vadd.f32 %v290, %v520
    %v522 = vpop.f32.mrb[0].mxu0
    %523 = vmatprep.mubr.bf16.mxu0 0
    %524 = vmatmul.mubr.bf16.gmra.mrb[0].mxu0 %v383
    %v525 = vpop.f32.mrb[0].mxu0
    %v526 = vadd.f32 %v291, %v525
    %v527 = vpop.f32.mrb[0].mxu0
    %v528 = vpop.f32.mrb[0].mxu0
    %v529 = vadd.f32 %v292, %v528
    %v530 = vpop.f32.mrb[0].mxu0
    %531 = vmatprep.mubr.bf16.mxu0 0
    %532 = vmatmul.mubr.bf16.gmra.mrb[0].mxu0 %v384
    %v533 = vpop.f32.mrb[0].mxu0
    %v534 = vadd.f32 %v293, %v533
    %v535 = vpop.f32.mrb[0].mxu0
    %v536 = vpop.f32.mrb[0].mxu0
    %v537 = vadd.f32 %v294, %v536
    %v538 = vpop.f32.mrb[0].mxu0
    %539 = vmatprep.mubr.bf16.mxu0 0
    %540 = vmatmul.mubr.bf16.gmra.mrb[0].mxu0 %v385
    %v541 = vpop.f32.mrb[0].mxu0
    %v542 = vadd.f32 %v295, %v541
    %v543 = vpop.f32.mrb[0].mxu0
    %v544 = vpop.f32.mrb[0].mxu0
    %v545 = vadd.f32 %v296, %v544
    %v546 = vpop.f32.mrb[0].mxu0
    %547 = vmatprep.mubr.bf16.mxu0 0
    %548 = vmatmul.mubr.bf16.gmra.mrb[0].mxu0 %v386
    %v549 = vpop.f32.mrb[0].mxu0
    %v550 = vadd.f32 %v297, %v549
    %v551 = vpop.f32.mrb[0].mxu0
    %v552 = vpop.f32.mrb[0].mxu0
    %v553 = vadd.f32 %v298, %v552
    %v554 = vpop.f32.mrb[0].mxu0
    %555 = vmatprep.mubr.bf16.mxu0 0
    %556 = vmatmul.mubr.bf16.gmra.mrb[0].mxu0 %v387
    %v557 = vpop.f32.mrb[0].mxu0
    %v558 = vadd.f32 %v299, %v557
    %v559 = vpop.f32.mrb[0].mxu0
    %v560 = vpop.f32.mrb[0].mxu0
    %v561 = vadd.f32 %v300, %v560
    %v562 = vpop.f32.mrb[0].mxu0
    %563 = vmatprep.mubr.bf16.mxu0 0
    %564 = vmatmul.mubr.bf16.gmra.mrb[0].mxu0 %v388
    %v565 = vpop.f32.mrb[0].mxu0
    %v566 = vadd.f32 %v301, %v565
    %v567 = vpop.f32.mrb[0].mxu0
    %v568 = vpop.f32.mrb[0].mxu0
    %v569 = vadd.f32 %v302, %v568
    %v570 = vpop.f32.mrb[0].mxu0
    %571 = vmatprep.mubr.bf16.mxu0 0
    %572 = vmatmul.mubr.bf16.gmra.mrb[0].mxu0 %v389
    %v573 = vpop.f32.mrb[0].mxu0
    %v574 = vadd.f32 %v303, %v573
    %v575 = vpop.f32.mrb[0].mxu0
    %v576 = vpop.f32.mrb[0].mxu0
    %v577 = vadd.f32 %v304, %v576
    %v578 = vpop.f32.mrb[0].mxu0
    %579 = vmatprep.mubr.bf16.mxu0 0
    %580 = vmatmul.mubr.bf16.gmra.mrb[0].mxu0 %v390
    %v581 = vpop.f32.mrb[0].mxu0
    %v582 = vadd.f32 %v305, %v581
    %v583 = vpop.f32.mrb[0].mxu0
    %v584 = vpop.f32.mrb[0].mxu0
    %v585 = vadd.f32 %v306, %v584
    %v586 = vpop.f32.mrb[0].mxu0
    %587 = vmatprep.mubr.bf16.mxu0 0
    %588 = vmatmul.mubr.bf16.gmra.mrb[0].mxu0 %v391
    %v589 = vpop.f32.mrb[0].mxu0
    %v590 = vadd.f32 %v307, %v589
    %v591 = vpop.f32.mrb[0].mxu0
    %v592 = vpop.f32.mrb[0].mxu0
    %v593 = vadd.f32 %v308, %v592
    %v594 = vpop.f32.mrb[0].mxu0
    %595 = vmatprep.mubr.bf16.mxu0 0
    %596 = vmatmul.mubr.bf16.gmra.mrb[0].mxu0 %v392
    %v597 = vpop.f32.mrb[0].mxu0
    %v598 = vadd.f32 %v309, %v597
    %v599 = vpop.f32.mrb[0].mxu0
    %v600 = vpop.f32.mrb[0].mxu0
    %v601 = vadd.f32 %v310, %v600
    %v602 = vpop.f32.mrb[0].mxu0
    %603 = vmatprep.mubr.bf16.mxu0 0
    %604 = vmatmul.mubr.bf16.gmra.mrb[0].mxu0 %v393
    %v605 = vpop.f32.mrb[0].mxu0
    %v606 = vadd.f32 %v311, %v605
    %v607 = vpop.f32.mrb[0].mxu0
    %v608 = vpop.f32.mrb[0].mxu0
    %v609 = vadd.f32 %v312, %v608
    %v610 = vpop.f32.mrb[0].mxu0
    %611 = vmatprep.mubr.bf16.mxu0 0
    %612 = vmatmul.mubr.bf16.gmra.mrb[0].mxu0 %v394
    %v613 = vpop.f32.mrb[0].mxu0
    %v614 = vadd.f32 %v313, %v613
    %v615 = vpop.f32.mrb[0].mxu0
    %v616 = vpop.f32.mrb[0].mxu0
    %v617 = vadd.f32 %v314, %v616
    %v618 = vpop.f32.mrb[0].mxu0
    %619 = vdwg.mxu0
    %v620 = vmax.f32 %v494, 0.0
    %v621 = vmax.f32 %v497, 0.0
    %v622 = vmax.f32 %v502, 0.0
    %v623 = vmax.f32 %v505, 0.0
    %v624 = vmax.f32 %v510, 0.0
    %v625 = vmax.f32 %v513, 0.0
    %v626 = vmax.f32 %v518, 0.0
    %v627 = vmax.f32 %v521, 0.0
    %v628 = vmax.f32 %v526, 0.0
    %v629 = vmax.f32 %v529, 0.0
    %v630 = vmax.f32 %v534, 0.0
    %v631 = vmax.f32 %v537, 0.0
    %v632 = vmax.f32 %v542, 0.0
    %v633 = vmax.f32 %v545, 0.0
    %v634 = vmax.f32 %v550, 0.0
    %v635 = vmax.f32 %v553, 0.0
    %v636 = vmax.f32 %v558, 0.0
    %v637 = vmax.f32 %v561, 0.0
    %v638 = vmax.f32 %v566, 0.0
    %v639 = vmax.f32 %v569, 0.0
    %v640 = vmax.f32 %v574, 0.0
    %v641 = vmax.f32 %v577, 0.0
    %v642 = vmax.f32 %v582, 0.0
    %v643 = vmax.f32 %v585, 0.0
    %v644 = vmax.f32 %v590, 0.0
    %v645 = vmax.f32 %v593, 0.0
    %v646 = vmax.f32 %v598, 0.0
    %v647 = vmax.f32 %v601, 0.0
    %v648 = vmax.f32 %v606, 0.0
    %v649 = vmax.f32 %v609, 0.0
    %v650 = vmax.f32 %v614, 0.0
    %v651 = vmax.f32 %v617, 0.0
    %v652 = vpack.c.bf16 %v621, %v620
    %v653 = vpack.c.bf16 %v623, %v622
    %v654 = vpack.c.bf16 %v625, %v624
    %v655 = vpack.c.bf16 %v627, %v626
    %v656 = vpack.c.bf16 %v629, %v628
    %v657 = vpack.c.bf16 %v631, %v630
    %v658 = vpack.c.bf16 %v633, %v632
    %v659 = vpack.c.bf16 %v635, %v634
    %v660 = vpack.c.bf16 %v637, %v636
    %v661 = vpack.c.bf16 %v639, %v638
    %v662 = vpack.c.bf16 %v641, %v640
    %v663 = vpack.c.bf16 %v643, %v642
    %v664 = vpack.c.bf16 %v645, %v644
    %v665 = vpack.c.bf16 %v647, %v646
    %v666 = vpack.c.bf16 %v649, %v648
    %v667 = vpack.c.bf16 %v651, %v650
    %v684 = vunpack.c.l.b16 %v203
    %v685 = vunpack.c.h.b16 %v203
    %v686 = vunpack.c.l.b16 %v204
    %v687 = vunpack.c.h.b16 %v204
    %v688 = vunpack.c.l.b16 %v205
    %v689 = vunpack.c.h.b16 %v205
    %v690 = vunpack.c.l.b16 %v206
    %v691 = vunpack.c.h.b16 %v206
    %v692 = vunpack.c.l.b16 %v207
    %v693 = vunpack.c.h.b16 %v207
    %v694 = vunpack.c.l.b16 %v208
    %v695 = vunpack.c.h.b16 %v208
    %v696 = vunpack.c.l.b16 %v209
    %v697 = vunpack.c.h.b16 %v209
    %v698 = vunpack.c.l.b16 %v210
    %v699 = vunpack.c.h.b16 %v210
    %v700 = vunpack.c.l.b16 %v211
    %v701 = vunpack.c.h.b16 %v211
    %v702 = vunpack.c.l.b16 %v212
    %v703 = vunpack.c.h.b16 %v212
    %v704 = vunpack.c.l.b16 %v213
    %v705 = vunpack.c.h.b16 %v213
    %v706 = vunpack.c.l.b16 %v214
    %v707 = vunpack.c.h.b16 %v214
    %v708 = vunpack.c.l.b16 %v215
    %v709 = vunpack.c.h.b16 %v215
    %v710 = vunpack.c.l.b16 %v216
    %v711 = vunpack.c.h.b16 %v216
    %v712 = vunpack.c.l.b16 %v217
    %v713 = vunpack.c.h.b16 %v217
    %v714 = vunpack.c.l.b16 %v218
    %v715 = vunpack.c.h.b16 %v218
    %v716 = vpack.c.b16 %v686, %v684
    %v717 = vpack.c.b16 %v687, %v685
    %v718 = vpack.c.b16 %v690, %v688
    %v719 = vpack.c.b16 %v691, %v689
    %v720 = vpack.c.b16 %v694, %v692
    %v721 = vpack.c.b16 %v695, %v693
    %v722 = vpack.c.b16 %v698, %v696
    %v723 = vpack.c.b16 %v699, %v697
    %v724 = vpack.c.b16 %v702, %v700
    %v725 = vpack.c.b16 %v703, %v701
    %v726 = vpack.c.b16 %v706, %v704
    %v727 = vpack.c.b16 %v707, %v705
    %v728 = vpack.c.b16 %v710, %v708
    %v729 = vpack.c.b16 %v711, %v709
    %v730 = vpack.c.b16 %v714, %v712
    %v731 = vpack.c.b16 %v715, %v713
    %748 = vmatprep.subr.bf16.mxu0 0
    %749 = vmatpush1.bf16.msra.mxu0 %v652
    %750 = vmatprep.subr.bf16.mxu0 0
    %751 = vmatpush1.bf16.msra.mxu0 %v653
    %752 = vmatprep.subr.bf16.mxu0 0
    %753 = vmatpush1.bf16.msra.mxu0 %v654
    %754 = vmatprep.subr.bf16.mxu0 0
    %755 = vmatpush1.bf16.msra.mxu0 %v655
    %756 = vmatprep.subr.bf16.mxu0 0
    %757 = vmatpush1.bf16.msra.mxu0 %v656
    %758 = vmatprep.subr.bf16.mxu0 0
    %759 = vmatpush1.bf16.msra.mxu0 %v657
    %760 = vmatprep.subr.bf16.mxu0 0
    %761 = vmatpush1.bf16.msra.mxu0 %v658
    %762 = vmatprep.subr.bf16.mxu0 0
    %763 = vmatpush1.bf16.msra.mxu0 %v659
    %764 = vmatprep.subr.bf16.mxu0 0
    %765 = vmatpush1.bf16.msra.mxu0 %v660
    %766 = vmatprep.subr.bf16.mxu0 0
    %767 = vmatpush1.bf16.msra.mxu0 %v661
    %768 = vmatprep.subr.bf16.mxu0 0
    %769 = vmatpush1.bf16.msra.mxu0 %v662
    %770 = vmatprep.subr.bf16.mxu0 0
    %771 = vmatpush1.bf16.msra.mxu0 %v663
    %772 = vmatprep.subr.bf16.mxu0 0
    %773 = vmatpush1.bf16.msra.mxu0 %v664
    %774 = vmatprep.subr.bf16.mxu0 0
    %775 = vmatpush1.bf16.msra.mxu0 %v665
    %776 = vmatprep.subr.bf16.mxu0 0
    %777 = vmatpush1.bf16.msra.mxu0 %v666
    %778 = vmatprep.subr.bf16.mxu0 0
    %779 = vmatpush1.bf16.msra.mxu0 %v667
    %780 = vmatprep.mubr.bf16.mxu0 %v717
    %781 = vmatmul.mubr.bf16.gmra.mrb[0].mxu0 %v716
    %v782 = vpop.f32.mrb[0].mxu0
    %v783 = vadd.f32 0.0, %v782
    %v784 = vpop.f32.mrb[0].mxu0
    %v785 = vpop.f32.mrb[0].mxu0
    %v786 = vadd.f32 0.0, %v785
    %v787 = vpop.f32.mrb[0].mxu0
    %788 = vmatprep.mubr.bf16.mxu0 %v719
    %789 = vmatmul.mubr.bf16.gmra.mrb[0].mxu0 %v718
    %v790 = vpop.f32.mrb[0].mxu0
    %v791 = vadd.f32 0.0, %v790
    %v792 = vpop.f32.mrb[0].mxu0
    %v793 = vpop.f32.mrb[0].mxu0
    %v794 = vadd.f32 0.0, %v793
    %v795 = vpop.f32.mrb[0].mxu0
    %796 = vmatprep.mubr.bf16.mxu0 %v721
    %797 = vmatmul.mubr.bf16.gmra.mrb[0].mxu0 %v720
    %v798 = vpop.f32.mrb[0].mxu0
    %v799 = vadd.f32 0.0, %v798
    %v800 = vpop.f32.mrb[0].mxu0
    %v801 = vpop.f32.mrb[0].mxu0
    %v802 = vadd.f32 0.0, %v801
    %v803 = vpop.f32.mrb[0].mxu0
    %804 = vmatprep.mubr.bf16.mxu0 %v723
    %805 = vmatmul.mubr.bf16.gmra.mrb[0].mxu0 %v722
    %v806 = vpop.f32.mrb[0].mxu0
    %v807 = vadd.f32 0.0, %v806
    %v808 = vpop.f32.mrb[0].mxu0
    %v809 = vpop.f32.mrb[0].mxu0
    %v810 = vadd.f32 0.0, %v809
    %v811 = vpop.f32.mrb[0].mxu0
    %812 = vmatprep.mubr.bf16.mxu0 %v725
    %813 = vmatmul.mubr.bf16.gmra.mrb[0].mxu0 %v724
    %v814 = vpop.f32.mrb[0].mxu0
    %v815 = vadd.f32 0.0, %v814
    %v816 = vpop.f32.mrb[0].mxu0
    %v817 = vpop.f32.mrb[0].mxu0
    %v818 = vadd.f32 0.0, %v817
    %v819 = vpop.f32.mrb[0].mxu0
    %820 = vmatprep.mubr.bf16.mxu0 %v727
    %821 = vmatmul.mubr.bf16.gmra.mrb[0].mxu0 %v726
    %v822 = vpop.f32.mrb[0].mxu0
    %v823 = vadd.f32 0.0, %v822
    %v824 = vpop.f32.mrb[0].mxu0
    %v825 = vpop.f32.mrb[0].mxu0
    %v826 = vadd.f32 0.0, %v825
    %v827 = vpop.f32.mrb[0].mxu0
    %828 = vmatprep.mubr.bf16.mxu0 %v729
    %829 = vmatmul.mubr.bf16.gmra.mrb[0].mxu0 %v728
    %v830 = vpop.f32.mrb[0].mxu0
    %v831 = vadd.f32 0.0, %v830
    %v832 = vpop.f32.mrb[0].mxu0
    %v833 = vpop.f32.mrb[0].mxu0
    %v834 = vadd.f32 0.0, %v833
    %v835 = vpop.f32.mrb[0].mxu0
    %836 = vmatprep.mubr.bf16.mxu0 %v731
    %837 = vmatmul.mubr.bf16.gmra.mrb[0].mxu0 %v730
    %v838 = vpop.f32.mrb[0].mxu0
    %v839 = vadd.f32 0.0, %v838
    %v840 = vpop.f32.mrb[0].mxu0
    %v841 = vpop.f32.mrb[0].mxu0
    %v842 = vadd.f32 0.0, %v841
    %v843 = vpop.f32.mrb[0].mxu0
    %844 = vdwg.mxu0
    %v845 = vadd.f32 %v235, %v783
    %v846 = vadd.f32 %v236, %v786
    %v847 = vadd.f32 %v237, %v791
    %v848 = vadd.f32 %v238, %v794
    %v849 = vadd.f32 %v239, %v799
    %v850 = vadd.f32 %v240, %v802
    %v851 = vadd.f32 %v241, %v807
    %v852 = vadd.f32 %v242, %v810
    %v853 = vadd.f32 %v243, %v815
    %v854 = vadd.f32 %v244, %v818
    %v855 = vadd.f32 %v245, %v823
    %v856 = vadd.f32 %v246, %v826
    %v857 = vadd.f32 %v247, %v831
    %v858 = vadd.f32 %v248, %v834
    %v859 = vadd.f32 %v249, %v839
    %v860 = vadd.f32 %v250, %v842
    %v861 = vpack.c.bf16 %v846, %v845
    %v862 = vpack.c.bf16 %v848, %v847
    %v863 = vpack.c.bf16 %v850, %v849
    %v864 = vpack.c.bf16 %v852, %v851
    %v865 = vpack.c.bf16 %v854, %v853
    %v866 = vpack.c.bf16 %v856, %v855
    %v867 = vpack.c.bf16 %v858, %v857
    %v868 = vpack.c.bf16 %v860, %v859
    %v869 = vld [vmem:[#allocation10] sm:$0xf]
    %v870 = vld [vmem:[#allocation10 + $0x4] sm:$0xf]
    %v871 = vld [vmem:[#allocation10 + $0x8] sm:$0xf]
    %v872 = vld [vmem:[#allocation10 + $0xc] sm:$0xf]
    %v873 = vld [vmem:[#allocation10 + $0x10] sm:$0xf]
    %v874 = vld [vmem:[#allocation10 + $0x14] sm:$0xf]
    %v875 = vld [vmem:[#allocation10 + $0x18] sm:$0xf]
    %v876 = vld [vmem:[#allocation10 + $0x1c] sm:$0xf]
    %v877 = vld [vmem:[#allocation10 + $0x20] sm:$0xf]
    %v878 = vld [vmem:[#allocation10 + $0x24] sm:$0xf]
    %v879 = vld [vmem:[#allocation10 + $0x28] sm:$0xf]
    %v880 = vld [vmem:[#allocation10 + $0x2c] sm:$0xf]
    %v881 = vld [vmem:[#allocation10 + $0x30] sm:$0xf]
    %v882 = vld [vmem:[#allocation10 + $0x34] sm:$0xf]
    %v883 = vld [vmem:[#allocation10 + $0x38] sm:$0xf]
    %v884 = vld [vmem:[#allocation10 + $0x3c] sm:$0xf]
    %v885 = vld [vmem:[%s5] sm:$0x1]
    %v887 = vlaneseq
    %v888 = vshrl.u32 %v887, 7
    %v889 = vsub.s32 0, %v888
    %v890 = vrot.slane %v885, %v889
    %v908 = vunpack.c.l.b16 %v869
    %v909 = vunpack.c.l.b16 %v870
    %v910 = vunpack.c.l.b16 %v871
    %v911 = vunpack.c.l.b16 %v872
    %v912 = vunpack.c.l.b16 %v873
    %v913 = vunpack.c.l.b16 %v874
    %v914 = vunpack.c.l.b16 %v875
    %v915 = vunpack.c.l.b16 %v876
    %v916 = vunpack.c.l.b16 %v877
    %v917 = vunpack.c.l.b16 %v878
    %v918 = vunpack.c.l.b16 %v879
    %v919 = vunpack.c.l.b16 %v880
    %v920 = vunpack.c.l.b16 %v881
    %v921 = vunpack.c.l.b16 %v882
    %v922 = vunpack.c.l.b16 %v883
    %v923 = vunpack.c.l.b16 %v884
    %v924 = vpack.c.b16 %v909, %v908
    %v925 = vpack.c.b16 %v911, %v910
    %v926 = vpack.c.b16 %v913, %v912
    %v927 = vpack.c.b16 %v915, %v914
    %v928 = vpack.c.b16 %v917, %v916
    %v929 = vpack.c.b16 %v919, %v918
    %v930 = vpack.c.b16 %v921, %v920
    %v931 = vpack.c.b16 %v923, %v922
    %940 = vmatprep.subr.bf16.mxu0 0
    %941 = vmatpush1.bf16.msra.mxu0 %v924
    %942 = vmatprep.subr.bf16.mxu0 0
    %943 = vmatpush1.bf16.msra.mxu0 %v925
    %944 = vmatprep.subr.bf16.mxu0 0
    %945 = vmatpush1.bf16.msra.mxu0 %v926
    %946 = vmatprep.subr.bf16.mxu0 0
    %947 = vmatpush1.bf16.msra.mxu0 %v927
    %948 = vmatprep.subr.bf16.mxu0 0
    %949 = vmatpush1.bf16.msra.mxu0 %v928
    %950 = vmatprep.subr.bf16.mxu0 0
    %951 = vmatpush1.bf16.msra.mxu0 %v929
    %952 = vmatprep.subr.bf16.mxu0 0
    %953 = vmatpush1.bf16.msra.mxu0 %v930
    %954 = vmatprep.subr.bf16.mxu0 0
    %955 = vmatpush1.bf16.msra.mxu0 %v931
    %956 = vmatprep.subr.bf16.mxu0 0
    %957 = vmatpush1.bf16.msra.mxu0 0
    %958 = vmatprep.subr.bf16.mxu0 0
    %959 = vmatpush1.bf16.msra.mxu0 0
    %960 = vmatprep.subr.bf16.mxu0 0
    %961 = vmatpush1.bf16.msra.mxu0 0
    %962 = vmatprep.subr.bf16.mxu0 0
    %963 = vmatpush1.bf16.msra.mxu0 0
    %964 = vmatprep.subr.bf16.mxu0 0
    %965 = vmatpush1.bf16.msra.mxu0 0
    %966 = vmatprep.subr.bf16.mxu0 0
    %967 = vmatpush1.bf16.msra.mxu0 0
    %968 = vmatprep.subr.bf16.mxu0 0
    %969 = vmatpush1.bf16.msra.mxu0 0
    %970 = vmatprep.subr.bf16.mxu0 0
    %971 = vmatpush1.bf16.msra.mxu0 0
    %972 = vmatprep.mubr.bf16.mxu0 0
    %973 = vmatmul.mubr.bf16.gmra.mrb[0].mxu0 %v861
    %v974 = vpop.f32.mrb[0].mxu0
    %v975 = vadd.f32 %v890, %v974
    %v976 = vpop.f32.mrb[0].mxu0
    %v977 = vpop.f32.mrb[0].mxu0
    %v978 = vadd.f32 %v890, %v977
    %v979 = vpop.f32.mrb[0].mxu0
    %980 = vmatprep.mubr.bf16.mxu0 0
    %981 = vmatmul.mubr.bf16.gmra.mrb[0].mxu0 %v862
    %v982 = vpop.f32.mrb[0].mxu0
    %v983 = vadd.f32 %v890, %v982
    %v984 = vpop.f32.mrb[0].mxu0
    %v985 = vpop.f32.mrb[0].mxu0
    %v986 = vadd.f32 %v890, %v985
    %v987 = vpop.f32.mrb[0].mxu0
    %988 = vmatprep.mubr.bf16.mxu0 0
    %989 = vmatmul.mubr.bf16.gmra.mrb[0].mxu0 %v863
    %v990 = vpop.f32.mrb[0].mxu0
    %v991 = vadd.f32 %v890, %v990
    %v992 = vpop.f32.mrb[0].mxu0
    %v993 = vpop.f32.mrb[0].mxu0
    %v994 = vadd.f32 %v890, %v993
    %v995 = vpop.f32.mrb[0].mxu0
    %996 = vmatprep.mubr.bf16.mxu0 0
    %997 = vmatmul.mubr.bf16.gmra.mrb[0].mxu0 %v864
    %v998 = vpop.f32.mrb[0].mxu0
    %v999 = vadd.f32 %v890, %v998
    %v1000 = vpop.f32.mrb[0].mxu0
    %v1001 = vpop.f32.mrb[0].mxu0
    %v1002 = vadd.f32 %v890, %v1001
    %v1003 = vpop.f32.mrb[0].mxu0
    %1004 = vmatprep.mubr.bf16.mxu0 0
    %1005 = vmatmul.mubr.bf16.gmra.mrb[0].mxu0 %v865
    %v1006 = vpop.f32.mrb[0].mxu0
    %v1007 = vadd.f32 %v890, %v1006
    %v1008 = vpop.f32.mrb[0].mxu0
    %v1009 = vpop.f32.mrb[0].mxu0
    %v1010 = vadd.f32 %v890, %v1009
    %v1011 = vpop.f32.mrb[0].mxu0
    %1012 = vmatprep.mubr.bf16.mxu0 0
    %1013 = vmatmul.mubr.bf16.gmra.mrb[0].mxu0 %v866
    %v1014 = vpop.f32.mrb[0].mxu0
    %v1015 = vadd.f32 %v890, %v1014
    %v1016 = vpop.f32.mrb[0].mxu0
    %v1017 = vpop.f32.mrb[0].mxu0
    %v1018 = vadd.f32 %v890, %v1017
    %v1019 = vpop.f32.mrb[0].mxu0
    %1020 = vmatprep.mubr.bf16.mxu0 0
    %1021 = vmatmul.mubr.bf16.gmra.mrb[0].mxu0 %v867
    %v1022 = vpop.f32.mrb[0].mxu0
    %v1023 = vadd.f32 %v890, %v1022
    %v1024 = vpop.f32.mrb[0].mxu0
    %v1025 = vpop.f32.mrb[0].mxu0
    %v1026 = vadd.f32 %v890, %v1025
    %v1027 = vpop.f32.mrb[0].mxu0
    %1028 = vmatprep.mubr.bf16.mxu0 0
    %1029 = vmatmul.mubr.bf16.gmra.mrb[0].mxu0 %v868
    %v1030 = vpop.f32.mrb[0].mxu0
    %v1031 = vadd.f32 %v890, %v1030
    %v1032 = vpop.f32.mrb[0].mxu0
    %v1033 = vpop.f32.mrb[0].mxu0
    %v1034 = vadd.f32 %v890, %v1033
    %v1035 = vpop.f32.mrb[0].mxu0
    %1036 = vdwg.mxu0
    %v1037 = vmax.f32 %v975, 0.0
    %v1038 = vmax.f32 %v978, 0.0
    %v1039 = vmax.f32 %v983, 0.0
    %v1040 = vmax.f32 %v986, 0.0
    %v1041 = vmax.f32 %v991, 0.0
    %v1042 = vmax.f32 %v994, 0.0
    %v1043 = vmax.f32 %v999, 0.0
    %v1044 = vmax.f32 %v1002, 0.0
    %v1045 = vmax.f32 %v1007, 0.0
    %v1046 = vmax.f32 %v1010, 0.0
    %v1047 = vmax.f32 %v1015, 0.0
    %v1048 = vmax.f32 %v1018, 0.0
    %v1049 = vmax.f32 %v1023, 0.0
    %v1050 = vmax.f32 %v1026, 0.0
    %v1051 = vmax.f32 %v1031, 0.0
    %v1052 = vmax.f32 %v1034, 0.0
    %v1053 = vpack.c.bf16 %v1038, %v1037
    %v1054 = vpack.c.bf16 %v1040, %v1039
    %v1055 = vpack.c.bf16 %v1042, %v1041
    %v1056 = vpack.c.bf16 %v1044, %v1043
    %v1057 = vpack.c.bf16 %v1046, %v1045
    %v1058 = vpack.c.bf16 %v1048, %v1047
    %v1059 = vpack.c.bf16 %v1050, %v1049
    %v1060 = vpack.c.bf16 %v1052, %v1051
    %v1061 = vld [vmem:[#allocation11] sm:$0xf]
    %v1062 = vld [vmem:[#allocation11 + $0x4] sm:$0xf]
    %v1063 = vld [vmem:[#allocation11 + $0x8] sm:$0xf]
    %v1064 = vld [vmem:[#allocation11 + $0xc] sm:$0xf]
    %v1065 = vld [vmem:[#allocation11 + $0x10] sm:$0xf]
    %v1066 = vld [vmem:[#allocation11 + $0x14] sm:$0xf]
    %v1067 = vld [vmem:[#allocation11 + $0x18] sm:$0xf]
    %v1068 = vld [vmem:[#allocation11 + $0x1c] sm:$0xf]
    %v1069 = vld [vmem:[#allocation11 + $0x20] sm:$0xf]
    %v1070 = vld [vmem:[#allocation11 + $0x24] sm:$0xf]
    %v1071 = vld [vmem:[#allocation11 + $0x28] sm:$0xf]
    %v1072 = vld [vmem:[#allocation11 + $0x2c] sm:$0xf]
    %v1073 = vld [vmem:[#allocation11 + $0x30] sm:$0xf]
    %v1074 = vld [vmem:[#allocation11 + $0x34] sm:$0xf]
    %v1075 = vld [vmem:[#allocation11 + $0x38] sm:$0xf]
    %v1076 = vld [vmem:[#allocation11 + $0x3c] sm:$0xf]
    %v1077 = vld [vmem:[%s7] sm:$0x1]
    %v1079 = vlaneseq
    %v1080 = vshrl.u32 %v1079, 7
    %v1081 = vsub.s32 0, %v1080
    %v1082 = vrot.slane %v1077, %v1081
    %v1100 = vunpack.c.l.b16 %v1061
    %v1101 = vunpack.c.l.b16 %v1062
    %v1102 = vunpack.c.l.b16 %v1063
    %v1103 = vunpack.c.l.b16 %v1064
    %v1104 = vunpack.c.l.b16 %v1065
    %v1105 = vunpack.c.l.b16 %v1066
    %v1106 = vunpack.c.l.b16 %v1067
    %v1107 = vunpack.c.l.b16 %v1068
    %v1108 = vunpack.c.l.b16 %v1069
    %v1109 = vunpack.c.l.b16 %v1070
    %v1110 = vunpack.c.l.b16 %v1071
    %v1111 = vunpack.c.l.b16 %v1072
    %v1112 = vunpack.c.l.b16 %v1073
    %v1113 = vunpack.c.l.b16 %v1074
    %v1114 = vunpack.c.l.b16 %v1075
    %v1115 = vunpack.c.l.b16 %v1076
    %v1116 = vpack.c.b16 %v1101, %v1100
    %v1117 = vpack.c.b16 %v1103, %v1102
    %v1118 = vpack.c.b16 %v1105, %v1104
    %v1119 = vpack.c.b16 %v1107, %v1106
    %v1120 = vpack.c.b16 %v1109, %v1108
    %v1121 = vpack.c.b16 %v1111, %v1110
    %v1122 = vpack.c.b16 %v1113, %v1112
    %v1123 = vpack.c.b16 %v1115, %v1114
    %1132 = vmatprep.subr.bf16.mxu0 0
    %1133 = vmatpush1.bf16.msra.mxu0 %v1116
    %1134 = vmatprep.subr.bf16.mxu0 0
    %1135 = vmatpush1.bf16.msra.mxu0 %v1117
    %1136 = vmatprep.subr.bf16.mxu0 0
    %1137 = vmatpush1.bf16.msra.mxu0 %v1118
    %1138 = vmatprep.subr.bf16.mxu0 0
    %1139 = vmatpush1.bf16.msra.mxu0 %v1119
    %1140 = vmatprep.subr.bf16.mxu0 0
    %1141 = vmatpush1.bf16.msra.mxu0 %v1120
    %1142 = vmatprep.subr.bf16.mxu0 0
    %1143 = vmatpush1.bf16.msra.mxu0 %v1121
    %1144 = vmatprep.subr.bf16.mxu0 0
    %1145 = vmatpush1.bf16.msra.mxu0 %v1122
    %1146 = vmatprep.subr.bf16.mxu0 0
    %1147 = vmatpush1.bf16.msra.mxu0 %v1123
    %1148 = vmatprep.subr.bf16.mxu0 0
    %1149 = vmatpush1.bf16.msra.mxu0 0
    %1150 = vmatprep.subr.bf16.mxu0 0
    %1151 = vmatpush1.bf16.msra.mxu0 0
    %1152 = vmatprep.subr.bf16.mxu0 0
    %1153 = vmatpush1.bf16.msra.mxu0 0
    %1154 = vmatprep.subr.bf16.mxu0 0
    %1155 = vmatpush1.bf16.msra.mxu0 0
    %1156 = vmatprep.subr.bf16.mxu0 0
    %1157 = vmatpush1.bf16.msra.mxu0 0
    %1158 = vmatprep.subr.bf16.mxu0 0
    %1159 = vmatpush1.bf16.msra.mxu0 0
    %1160 = vmatprep.subr.bf16.mxu0 0
    %1161 = vmatpush1.bf16.msra.mxu0 0
    %1162 = vmatprep.subr.bf16.mxu0 0
    %1163 = vmatpush1.bf16.msra.mxu0 0
    %1164 = vmatprep.mubr.bf16.mxu0 0
    %1165 = vmatmul.mubr.bf16.gmra.mrb[0].mxu0 %v1053
    %v1166 = vpop.f32.mrb[0].mxu0
    %v1167 = vadd.f32 %v1082, %v1166
    %v1168 = vpop.f32.mrb[0].mxu0
    %v1169 = vpop.f32.mrb[0].mxu0
    %v1170 = vadd.f32 %v1082, %v1169
    %v1171 = vpop.f32.mrb[0].mxu0
    %1172 = vmatprep.mubr.bf16.mxu0 0
    %1173 = vmatmul.mubr.bf16.gmra.mrb[0].mxu0 %v1054
    %v1174 = vpop.f32.mrb[0].mxu0
    %v1175 = vadd.f32 %v1082, %v1174
    %v1176 = vpop.f32.mrb[0].mxu0
    %v1177 = vpop.f32.mrb[0].mxu0
    %v1178 = vadd.f32 %v1082, %v1177
    %v1179 = vpop.f32.mrb[0].mxu0
    %1180 = vmatprep.mubr.bf16.mxu0 0
    %1181 = vmatmul.mubr.bf16.gmra.mrb[0].mxu0 %v1055
    %v1182 = vpop.f32.mrb[0].mxu0
    %v1183 = vadd.f32 %v1082, %v1182
    %v1184 = vpop.f32.mrb[0].mxu0
    %v1185 = vpop.f32.mrb[0].mxu0
    %v1186 = vadd.f32 %v1082, %v1185
    %v1187 = vpop.f32.mrb[0].mxu0
    %1188 = vmatprep.mubr.bf16.mxu0 0
    %1189 = vmatmul.mubr.bf16.gmra.mrb[0].mxu0 %v1056
    %v1190 = vpop.f32.mrb[0].mxu0
    %v1191 = vadd.f32 %v1082, %v1190
    %v1192 = vpop.f32.mrb[0].mxu0
    %v1193 = vpop.f32.mrb[0].mxu0
    %v1194 = vadd.f32 %v1082, %v1193
    %v1195 = vpop.f32.mrb[0].mxu0
    %1196 = vmatprep.mubr.bf16.mxu0 0
    %1197 = vmatmul.mubr.bf16.gmra.mrb[0].mxu0 %v1057
    %v1198 = vpop.f32.mrb[0].mxu0
    %v1199 = vadd.f32 %v1082, %v1198
    %v1200 = vpop.f32.mrb[0].mxu0
    %v1201 = vpop.f32.mrb[0].mxu0
    %v1202 = vadd.f32 %v1082, %v1201
    %v1203 = vpop.f32.mrb[0].mxu0
    %1204 = vmatprep.mubr.bf16.mxu0 0
    %1205 = vmatmul.mubr.bf16.gmra.mrb[0].mxu0 %v1058
    %v1206 = vpop.f32.mrb[0].mxu0
    %v1207 = vadd.f32 %v1082, %v1206
    %v1208 = vpop.f32.mrb[0].mxu0
    %v1209 = vpop.f32.mrb[0].mxu0
    %v1210 = vadd.f32 %v1082, %v1209
    %v1211 = vpop.f32.mrb[0].mxu0
    %1212 = vmatprep.mubr.bf16.mxu0 0
    %1213 = vmatmul.mubr.bf16.gmra.mrb[0].mxu0 %v1059
    %v1214 = vpop.f32.mrb[0].mxu0
    %v1215 = vadd.f32 %v1082, %v1214
    %v1216 = vpop.f32.mrb[0].mxu0
    %v1217 = vpop.f32.mrb[0].mxu0
    %v1218 = vadd.f32 %v1082, %v1217
    %v1219 = vpop.f32.mrb[0].mxu0
    %1220 = vmatprep.mubr.bf16.mxu0 0
    %1221 = vmatmul.mubr.bf16.gmra.mrb[0].mxu0 %v1060
    %v1222 = vpop.f32.mrb[0].mxu0
    %v1223 = vadd.f32 %v1082, %v1222
    %v1224 = vpop.f32.mrb[0].mxu0
    %v1225 = vpop.f32.mrb[0].mxu0
    %v1226 = vadd.f32 %v1082, %v1225
    %v1227 = vpop.f32.mrb[0].mxu0
    %1228 = vdwg.mxu0
    %v1229 = vmax.f32 %v1167, 0.0
    %v1230 = vmax.f32 %v1170, 0.0
    %v1231 = vmax.f32 %v1175, 0.0
    %v1232 = vmax.f32 %v1178, 0.0
    %v1233 = vmax.f32 %v1183, 0.0
    %v1234 = vmax.f32 %v1186, 0.0
    %v1235 = vmax.f32 %v1191, 0.0
    %v1236 = vmax.f32 %v1194, 0.0
    %v1237 = vmax.f32 %v1199, 0.0
    %v1238 = vmax.f32 %v1202, 0.0
    %v1239 = vmax.f32 %v1207, 0.0
    %v1240 = vmax.f32 %v1210, 0.0
    %v1241 = vmax.f32 %v1215, 0.0
    %v1242 = vmax.f32 %v1218, 0.0
    %v1243 = vmax.f32 %v1223, 0.0
    %v1244 = vmax.f32 %v1226, 0.0
    %s1245 = scalar_lea.vmem [#allocation8], 128
    %v1246 = vld [vmem:[%s1245] sm:$0xf]
    %v1247 = vld [vmem:[%s1245 + $0x4] sm:$0xf]
    %v1248 = vld [vmem:[%s1245 + $0x8] sm:$0xf]
    %v1249 = vld [vmem:[%s1245 + $0xc] sm:$0xf]
    %v1250 = vld [vmem:[%s1245 + $0x10] sm:$0xf]
    %v1251 = vld [vmem:[%s1245 + $0x14] sm:$0xf]
    %v1252 = vld [vmem:[%s1245 + $0x18] sm:$0xf]
    %v1253 = vld [vmem:[%s1245 + $0x1c] sm:$0xf]
    %v1254 = vld [vmem:[%s1245 + $0x20] sm:$0xf]
    %v1255 = vld [vmem:[%s1245 + $0x24] sm:$0xf]
    %v1256 = vld [vmem:[%s1245 + $0x28] sm:$0xf]
    %v1257 = vld [vmem:[%s1245 + $0x2c] sm:$0xf]
    %v1258 = vld [vmem:[%s1245 + $0x30] sm:$0xf]
    %v1259 = vld [vmem:[%s1245 + $0x34] sm:$0xf]
    %v1260 = vld [vmem:[%s1245 + $0x38] sm:$0xf]
    %v1261 = vld [vmem:[%s1245 + $0x3c] sm:$0xf]
    %v1262 = vld [vmem:[%s1245 + $0x40] sm:$0xf]
    %v1263 = vld [vmem:[%s1245 + $0x44] sm:$0xf]
    %v1264 = vld [vmem:[%s1245 + $0x48] sm:$0xf]
    %v1265 = vld [vmem:[%s1245 + $0x4c] sm:$0xf]
    %v1266 = vld [vmem:[%s1245 + $0x50] sm:$0xf]
    %v1267 = vld [vmem:[%s1245 + $0x54] sm:$0xf]
    %v1268 = vld [vmem:[%s1245 + $0x58] sm:$0xf]
    %v1269 = vld [vmem:[%s1245 + $0x5c] sm:$0xf]
    %v1270 = vld [vmem:[%s1245 + $0x60] sm:$0xf]
    %v1271 = vld [vmem:[%s1245 + $0x64] sm:$0xf]
    %v1272 = vld [vmem:[%s1245 + $0x68] sm:$0xf]
    %v1273 = vld [vmem:[%s1245 + $0x6c] sm:$0xf]
    %v1274 = vld [vmem:[%s1245 + $0x70] sm:$0xf]
    %v1275 = vld [vmem:[%s1245 + $0x74] sm:$0xf]
    %v1276 = vld [vmem:[%s1245 + $0x78] sm:$0xf]
    %v1277 = vld [vmem:[%s1245 + $0x7c] sm:$0xf]
    %v1278 = vunpack.c.l.bf16 %v1246
    %v1279 = vunpack.c.l.bf16 %v1247
    %v1280 = vunpack.c.l.bf16 %v1248
    %v1281 = vunpack.c.l.bf16 %v1249
    %v1282 = vunpack.c.l.bf16 %v1250
    %v1283 = vunpack.c.l.bf16 %v1251
    %v1284 = vunpack.c.l.bf16 %v1252
    %v1285 = vunpack.c.l.bf16 %v1253
    %v1286 = vunpack.c.l.bf16 %v1254
    %v1287 = vunpack.c.l.bf16 %v1255
    %v1288 = vunpack.c.l.bf16 %v1256
    %v1289 = vunpack.c.l.bf16 %v1257
    %v1290 = vunpack.c.l.bf16 %v1258
    %v1291 = vunpack.c.l.bf16 %v1259
    %v1292 = vunpack.c.l.bf16 %v1260
    %v1293 = vunpack.c.l.bf16 %v1261
    %v1294 = vunpack.c.l.bf16 %v1262
    %v1295 = vunpack.c.l.bf16 %v1263
    %v1296 = vunpack.c.l.bf16 %v1264
    %v1297 = vunpack.c.l.bf16 %v1265
    %v1298 = vunpack.c.l.bf16 %v1266
    %v1299 = vunpack.c.l.bf16 %v1267
    %v1300 = vunpack.c.l.bf16 %v1268
    %v1301 = vunpack.c.l.bf16 %v1269
    %v1302 = vunpack.c.l.bf16 %v1270
    %v1303 = vunpack.c.l.bf16 %v1271
    %v1304 = vunpack.c.l.bf16 %v1272
    %v1305 = vunpack.c.l.bf16 %v1273
    %v1306 = vunpack.c.l.bf16 %v1274
    %v1307 = vunpack.c.l.bf16 %v1275
    %v1308 = vunpack.c.l.bf16 %v1276
    %v1309 = vunpack.c.l.bf16 %v1277
    %v1310 = vpack.c.bf16 %v1230, %v1229
    %v1311 = vpack.c.bf16 %v1232, %v1231
    %v1312 = vpack.c.bf16 %v1234, %v1233
    %v1313 = vpack.c.bf16 %v1236, %v1235
    %v1314 = vpack.c.bf16 %v1238, %v1237
    %v1315 = vpack.c.bf16 %v1240, %v1239
    %v1316 = vpack.c.bf16 %v1242, %v1241
    %v1317 = vpack.c.bf16 %v1244, %v1243
    %1318 = vmatprep.subr.bf16.mxu0 0
    %1319 = vmatpush1.bf16.msra.mxu0 %v1310
    %1320 = vmatprep.subr.bf16.mxu0 0
    %1321 = vmatpush1.bf16.msra.mxu0 %v1311
    %1322 = vmatprep.subr.bf16.mxu0 0
    %1323 = vmatpush1.bf16.msra.mxu0 %v1312
    %1324 = vmatprep.subr.bf16.mxu0 0
    %1325 = vmatpush1.bf16.msra.mxu0 %v1313
    %1326 = vmatprep.subr.bf16.mxu0 0
    %1327 = vmatpush1.bf16.msra.mxu0 %v1314
    %1328 = vmatprep.subr.bf16.mxu0 0
    %1329 = vmatpush1.bf16.msra.mxu0 %v1315
    %1330 = vmatprep.subr.bf16.mxu0 0
    %1331 = vmatpush1.bf16.msra.mxu0 %v1316
    %1332 = vmatprep.subr.bf16.mxu0 0
    %1333 = vmatpush1.bf16.msra.mxu0 %v1317
    %1334 = vmatprep.subr.bf16.mxu0 0
    %1335 = vmatpush1.bf16.msra.mxu0 0
    %1336 = vmatprep.subr.bf16.mxu0 0
    %1337 = vmatpush1.bf16.msra.mxu0 0
    %1338 = vmatprep.subr.bf16.mxu0 0
    %1339 = vmatpush1.bf16.msra.mxu0 0
    %1340 = vmatprep.subr.bf16.mxu0 0
    %1341 = vmatpush1.bf16.msra.mxu0 0
    %1342 = vmatprep.subr.bf16.mxu0 0
    %1343 = vmatpush1.bf16.msra.mxu0 0
    %1344 = vmatprep.subr.bf16.mxu0 0
    %1345 = vmatpush1.bf16.msra.mxu0 0
    %1346 = vmatprep.subr.bf16.mxu0 0
    %1347 = vmatpush1.bf16.msra.mxu0 0
    %1348 = vmatprep.subr.bf16.mxu0 0
    %1349 = vmatpush1.bf16.msra.mxu0 0
    %1350 = vmatprep.mubr.bf16.mxu0 0
    %1351 = vmatmul.mubr.bf16.gmra.mrb[0].mxu0 %v379
    %v1352 = vpop.f32.mrb[0].mxu0
    %v1353 = vadd.f32 %v1278, %v1352
    %v1354 = vpop.f32.mrb[0].mxu0
    %v1355 = vpop.f32.mrb[0].mxu0
    %v1356 = vadd.f32 %v1279, %v1355
    %v1357 = vpop.f32.mrb[0].mxu0
    %1358 = vmatprep.mubr.bf16.mxu0 0
    %1359 = vmatmul.mubr.bf16.gmra.mrb[0].mxu0 %v380
    %v1360 = vpop.f32.mrb[0].mxu0
    %v1361 = vadd.f32 %v1280, %v1360
    %v1362 = vpop.f32.mrb[0].mxu0
    %v1363 = vpop.f32.mrb[0].mxu0
    %v1364 = vadd.f32 %v1281, %v1363
    %v1365 = vpop.f32.mrb[0].mxu0
    %1366 = vmatprep.mubr.bf16.mxu0 0
    %1367 = vmatmul.mubr.bf16.gmra.mrb[0].mxu0 %v381
    %v1368 = vpop.f32.mrb[0].mxu0
    %v1369 = vadd.f32 %v1282, %v1368
    %v1370 = vpop.f32.mrb[0].mxu0
    %v1371 = vpop.f32.mrb[0].mxu0
    %v1372 = vadd.f32 %v1283, %v1371
    %v1373 = vpop.f32.mrb[0].mxu0
    %1374 = vmatprep.mubr.bf16.mxu0 0
    %1375 = vmatmul.mubr.bf16.gmra.mrb[0].mxu0 %v382
    %v1376 = vpop.f32.mrb[0].mxu0
    %v1377 = vadd.f32 %v1284, %v1376
    %v1378 = vpop.f32.mrb[0].mxu0
    %v1379 = vpop.f32.mrb[0].mxu0
    %v1380 = vadd.f32 %v1285, %v1379
    %v1381 = vpop.f32.mrb[0].mxu0
    %1382 = vmatprep.mubr.bf16.mxu0 0
    %1383 = vmatmul.mubr.bf16.gmra.mrb[0].mxu0 %v383
    %v1384 = vpop.f32.mrb[0].mxu0
    %v1385 = vadd.f32 %v1286, %v1384
    %v1386 = vpop.f32.mrb[0].mxu0
    %v1387 = vpop.f32.mrb[0].mxu0
    %v1388 = vadd.f32 %v1287, %v1387
    %v1389 = vpop.f32.mrb[0].mxu0
    %1390 = vmatprep.mubr.bf16.mxu0 0
    %1391 = vmatmul.mubr.bf16.gmra.mrb[0].mxu0 %v384
    %v1392 = vpop.f32.mrb[0].mxu0
    %v1393 = vadd.f32 %v1288, %v1392
    %v1394 = vpop.f32.mrb[0].mxu0
    %v1395 = vpop.f32.mrb[0].mxu0
    %v1396 = vadd.f32 %v1289, %v1395
    %v1397 = vpop.f32.mrb[0].mxu0
    %1398 = vmatprep.mubr.bf16.mxu0 0
    %1399 = vmatmul.mubr.bf16.gmra.mrb[0].mxu0 %v385
    %v1400 = vpop.f32.mrb[0].mxu0
    %v1401 = vadd.f32 %v1290, %v1400
    %v1402 = vpop.f32.mrb[0].mxu0
    %v1403 = vpop.f32.mrb[0].mxu0
    %v1404 = vadd.f32 %v1291, %v1403
    %v1405 = vpop.f32.mrb[0].mxu0
    %1406 = vmatprep.mubr.bf16.mxu0 0
    %1407 = vmatmul.mubr.bf16.gmra.mrb[0].mxu0 %v386
    %v1408 = vpop.f32.mrb[0].mxu0
    %v1409 = vadd.f32 %v1292, %v1408
    %v1410 = vpop.f32.mrb[0].mxu0
    %v1411 = vpop.f32.mrb[0].mxu0
    %v1412 = vadd.f32 %v1293, %v1411
    %v1413 = vpop.f32.mrb[0].mxu0
    %1414 = vmatprep.mubr.bf16.mxu0 0
    %1415 = vmatmul.mubr.bf16.gmra.mrb[0].mxu0 %v387
    %v1416 = vpop.f32.mrb[0].mxu0
    %v1417 = vadd.f32 %v1294, %v1416
    %v1418 = vpop.f32.mrb[0].mxu0
    %v1419 = vpop.f32.mrb[0].mxu0
    %v1420 = vadd.f32 %v1295, %v1419
    %v1421 = vpop.f32.mrb[0].mxu0
    %1422 = vmatprep.mubr.bf16.mxu0 0
    %1423 = vmatmul.mubr.bf16.gmra.mrb[0].mxu0 %v388
    %v1424 = vpop.f32.mrb[0].mxu0
    %v1425 = vadd.f32 %v1296, %v1424
    %v1426 = vpop.f32.mrb[0].mxu0
    %v1427 = vpop.f32.mrb[0].mxu0
    %v1428 = vadd.f32 %v1297, %v1427
    %v1429 = vpop.f32.mrb[0].mxu0
    %1430 = vmatprep.mubr.bf16.mxu0 0
    %1431 = vmatmul.mubr.bf16.gmra.mrb[0].mxu0 %v389
    %v1432 = vpop.f32.mrb[0].mxu0
    %v1433 = vadd.f32 %v1298, %v1432
    %v1434 = vpop.f32.mrb[0].mxu0
    %v1435 = vpop.f32.mrb[0].mxu0
    %v1436 = vadd.f32 %v1299, %v1435
    %v1437 = vpop.f32.mrb[0].mxu0
    %1438 = vmatprep.mubr.bf16.mxu0 0
    %1439 = vmatmul.mubr.bf16.gmra.mrb[0].mxu0 %v390
    %v1440 = vpop.f32.mrb[0].mxu0
    %v1441 = vadd.f32 %v1300, %v1440
    %v1442 = vpop.f32.mrb[0].mxu0
    %v1443 = vpop.f32.mrb[0].mxu0
    %v1444 = vadd.f32 %v1301, %v1443
    %v1445 = vpop.f32.mrb[0].mxu0
    %1446 = vmatprep.mubr.bf16.mxu0 0
    %1447 = vmatmul.mubr.bf16.gmra.mrb[0].mxu0 %v391
    %v1448 = vpop.f32.mrb[0].mxu0
    %v1449 = vadd.f32 %v1302, %v1448
    %v1450 = vpop.f32.mrb[0].mxu0
    %v1451 = vpop.f32.mrb[0].mxu0
    %v1452 = vadd.f32 %v1303, %v1451
    %v1453 = vpop.f32.mrb[0].mxu0
    %1454 = vmatprep.mubr.bf16.mxu0 0
    %1455 = vmatmul.mubr.bf16.gmra.mrb[0].mxu0 %v392
    %v1456 = vpop.f32.mrb[0].mxu0
    %v1457 = vadd.f32 %v1304, %v1456
    %v1458 = vpop.f32.mrb[0].mxu0
    %v1459 = vpop.f32.mrb[0].mxu0
    %v1460 = vadd.f32 %v1305, %v1459
    %v1461 = vpop.f32.mrb[0].mxu0
    %1462 = vmatprep.mubr.bf16.mxu0 0
    %1463 = vmatmul.mubr.bf16.gmra.mrb[0].mxu0 %v393
    %v1464 = vpop.f32.mrb[0].mxu0
    %v1465 = vadd.f32 %v1306, %v1464
    %v1466 = vpop.f32.mrb[0].mxu0
    %v1467 = vpop.f32.mrb[0].mxu0
    %v1468 = vadd.f32 %v1307, %v1467
    %v1469 = vpop.f32.mrb[0].mxu0
    %1470 = vmatprep.mubr.bf16.mxu0 0
    %1471 = vmatmul.mubr.bf16.gmra.mrb[0].mxu0 %v394
    %v1472 = vpop.f32.mrb[0].mxu0
    %v1473 = vadd.f32 %v1308, %v1472
    %v1474 = vpop.f32.mrb[0].mxu0
    %v1475 = vpop.f32.mrb[0].mxu0
    %v1476 = vadd.f32 %v1309, %v1475
    %v1477 = vpop.f32.mrb[0].mxu0
    %1478 = vdwg.mxu0
    %v1479 = vmax.f32 %v1353, 0.0
    %v1480 = vmax.f32 %v1356, 0.0
    %v1481 = vmax.f32 %v1361, 0.0
    %v1482 = vmax.f32 %v1364, 0.0
    %v1483 = vmax.f32 %v1369, 0.0
    %v1484 = vmax.f32 %v1372, 0.0
    %v1485 = vmax.f32 %v1377, 0.0
    %v1486 = vmax.f32 %v1380, 0.0
    %v1487 = vmax.f32 %v1385, 0.0
    %v1488 = vmax.f32 %v1388, 0.0
    %v1489 = vmax.f32 %v1393, 0.0
    %v1490 = vmax.f32 %v1396, 0.0
    %v1491 = vmax.f32 %v1401, 0.0
    %v1492 = vmax.f32 %v1404, 0.0
    %v1493 = vmax.f32 %v1409, 0.0
    %v1494 = vmax.f32 %v1412, 0.0
    %v1495 = vmax.f32 %v1417, 0.0
    %v1496 = vmax.f32 %v1420, 0.0
    %v1497 = vmax.f32 %v1425, 0.0
    %v1498 = vmax.f32 %v1428, 0.0
    %v1499 = vmax.f32 %v1433, 0.0
    %v1500 = vmax.f32 %v1436, 0.0
    %v1501 = vmax.f32 %v1441, 0.0
    %v1502 = vmax.f32 %v1444, 0.0
    %v1503 = vmax.f32 %v1449, 0.0
    %v1504 = vmax.f32 %v1452, 0.0
    %v1505 = vmax.f32 %v1457, 0.0
    %v1506 = vmax.f32 %v1460, 0.0
    %v1507 = vmax.f32 %v1465, 0.0
    %v1508 = vmax.f32 %v1468, 0.0
    %v1509 = vmax.f32 %v1473, 0.0
    %v1510 = vmax.f32 %v1476, 0.0
    %v1511 = vpack.c.bf16 %v1480, %v1479
    %v1512 = vpack.c.bf16 %v1482, %v1481
    %v1513 = vpack.c.bf16 %v1484, %v1483
    %v1514 = vpack.c.bf16 %v1486, %v1485
    %v1515 = vpack.c.bf16 %v1488, %v1487
    %v1516 = vpack.c.bf16 %v1490, %v1489
    %v1517 = vpack.c.bf16 %v1492, %v1491
    %v1518 = vpack.c.bf16 %v1494, %v1493
    %v1519 = vpack.c.bf16 %v1496, %v1495
    %v1520 = vpack.c.bf16 %v1498, %v1497
    %v1521 = vpack.c.bf16 %v1500, %v1499
    %v1522 = vpack.c.bf16 %v1502, %v1501
    %v1523 = vpack.c.bf16 %v1504, %v1503
    %v1524 = vpack.c.bf16 %v1506, %v1505
    %v1525 = vpack.c.bf16 %v1508, %v1507
    %v1526 = vpack.c.bf16 %v1510, %v1509
    %1527 = vmatprep.subr.bf16.mxu0 0
    %1528 = vmatpush1.bf16.msra.mxu0 %v1511
    %1529 = vmatprep.subr.bf16.mxu0 0
    %1530 = vmatpush1.bf16.msra.mxu0 %v1512
    %1531 = vmatprep.subr.bf16.mxu0 0
    %1532 = vmatpush1.bf16.msra.mxu0 %v1513
    %1533 = vmatprep.subr.bf16.mxu0 0
    %1534 = vmatpush1.bf16.msra.mxu0 %v1514
    %1535 = vmatprep.subr.bf16.mxu0 0
    %1536 = vmatpush1.bf16.msra.mxu0 %v1515
    %1537 = vmatprep.subr.bf16.mxu0 0
    %1538 = vmatpush1.bf16.msra.mxu0 %v1516
    %1539 = vmatprep.subr.bf16.mxu0 0
    %1540 = vmatpush1.bf16.msra.mxu0 %v1517
    %1541 = vmatprep.subr.bf16.mxu0 0
    %1542 = vmatpush1.bf16.msra.mxu0 %v1518
    %1543 = vmatprep.subr.bf16.mxu0 0
    %1544 = vmatpush1.bf16.msra.mxu0 %v1519
    %1545 = vmatprep.subr.bf16.mxu0 0
    %1546 = vmatpush1.bf16.msra.mxu0 %v1520
    %1547 = vmatprep.subr.bf16.mxu0 0
    %1548 = vmatpush1.bf16.msra.mxu0 %v1521
    %1549 = vmatprep.subr.bf16.mxu0 0
    %1550 = vmatpush1.bf16.msra.mxu0 %v1522
    %1551 = vmatprep.subr.bf16.mxu0 0
    %1552 = vmatpush1.bf16.msra.mxu0 %v1523
    %1553 = vmatprep.subr.bf16.mxu0 0
    %1554 = vmatpush1.bf16.msra.mxu0 %v1524
    %1555 = vmatprep.subr.bf16.mxu0 0
    %1556 = vmatpush1.bf16.msra.mxu0 %v1525
    %1557 = vmatprep.subr.bf16.mxu0 0
    %1558 = vmatpush1.bf16.msra.mxu0 %v1526
    %1559 = vmatprep.mubr.bf16.mxu0 %v717
    %1560 = vmatmul.mubr.bf16.gmra.mrb[0].mxu0 %v716
    %v1561 = vpop.f32.mrb[0].mxu0
    %v1562 = vadd.f32 0.0, %v1561
    %v1563 = vpop.f32.mrb[0].mxu0
    %v1564 = vpop.f32.mrb[0].mxu0
    %v1565 = vadd.f32 0.0, %v1564
    %v1566 = vpop.f32.mrb[0].mxu0
    %1567 = vmatprep.mubr.bf16.mxu0 %v719
    %1568 = vmatmul.mubr.bf16.gmra.mrb[0].mxu0 %v718
    %v1569 = vpop.f32.mrb[0].mxu0
    %v1570 = vadd.f32 0.0, %v1569
    %v1571 = vpop.f32.mrb[0].mxu0
    %v1572 = vpop.f32.mrb[0].mxu0
    %v1573 = vadd.f32 0.0, %v1572
    %v1574 = vpop.f32.mrb[0].mxu0
    %1575 = vmatprep.mubr.bf16.mxu0 %v721
    %1576 = vmatmul.mubr.bf16.gmra.mrb[0].mxu0 %v720
    %v1577 = vpop.f32.mrb[0].mxu0
    %v1578 = vadd.f32 0.0, %v1577
    %v1579 = vpop.f32.mrb[0].mxu0
    %v1580 = vpop.f32.mrb[0].mxu0
    %v1581 = vadd.f32 0.0, %v1580
    %v1582 = vpop.f32.mrb[0].mxu0
    %1583 = vmatprep.mubr.bf16.mxu0 %v723
    %1584 = vmatmul.mubr.bf16.gmra.mrb[0].mxu0 %v722
    %v1585 = vpop.f32.mrb[0].mxu0
    %v1586 = vadd.f32 0.0, %v1585
    %v1587 = vpop.f32.mrb[0].mxu0
    %v1588 = vpop.f32.mrb[0].mxu0
    %v1589 = vadd.f32 0.0, %v1588
    %v1590 = vpop.f32.mrb[0].mxu0
    %1591 = vmatprep.mubr.bf16.mxu0 %v725
    %1592 = vmatmul.mubr.bf16.gmra.mrb[0].mxu0 %v724
    %v1593 = vpop.f32.mrb[0].mxu0
    %v1594 = vadd.f32 0.0, %v1593
    %v1595 = vpop.f32.mrb[0].mxu0
    %v1596 = vpop.f32.mrb[0].mxu0
    %v1597 = vadd.f32 0.0, %v1596
    %v1598 = vpop.f32.mrb[0].mxu0
    %1599 = vmatprep.mubr.bf16.mxu0 %v727
    %1600 = vmatmul.mubr.bf16.gmra.mrb[0].mxu0 %v726
    %v1601 = vpop.f32.mrb[0].mxu0
    %v1602 = vadd.f32 0.0, %v1601
    %v1603 = vpop.f32.mrb[0].mxu0
    %v1604 = vpop.f32.mrb[0].mxu0
    %v1605 = vadd.f32 0.0, %v1604
    %v1606 = vpop.f32.mrb[0].mxu0
    %1607 = vmatprep.mubr.bf16.mxu0 %v729
    %1608 = vmatmul.mubr.bf16.gmra.mrb[0].mxu0 %v728
    %v1609 = vpop.f32.mrb[0].mxu0
    %v1610 = vadd.f32 0.0, %v1609
    %v1611 = vpop.f32.mrb[0].mxu0
    %v1612 = vpop.f32.mrb[0].mxu0
    %v1613 = vadd.f32 0.0, %v1612
    %v1614 = vpop.f32.mrb[0].mxu0
    %1615 = vmatprep.mubr.bf16.mxu0 %v731
    %1616 = vmatmul.mubr.bf16.gmra.mrb[0].mxu0 %v730
    %v1617 = vpop.f32.mrb[0].mxu0
    %v1618 = vadd.f32 0.0, %v1617
    %v1619 = vpop.f32.mrb[0].mxu0
    %v1620 = vpop.f32.mrb[0].mxu0
    %v1621 = vadd.f32 0.0, %v1620
    %v1622 = vpop.f32.mrb[0].mxu0
    %1623 = vdwg.mxu0
    %v1624 = vadd.f32 %v1229, %v1562
    %v1625 = vadd.f32 %v1230, %v1565
    %v1626 = vadd.f32 %v1231, %v1570
    %v1627 = vadd.f32 %v1232, %v1573
    %v1628 = vadd.f32 %v1233, %v1578
    %v1629 = vadd.f32 %v1234, %v1581
    %v1630 = vadd.f32 %v1235, %v1586
    %v1631 = vadd.f32 %v1236, %v1589
    %v1632 = vadd.f32 %v1237, %v1594
    %v1633 = vadd.f32 %v1238, %v1597
    %v1634 = vadd.f32 %v1239, %v1602
    %v1635 = vadd.f32 %v1240, %v1605
    %v1636 = vadd.f32 %v1241, %v1610
    %v1637 = vadd.f32 %v1242, %v1613
    %v1638 = vadd.f32 %v1243, %v1618
    %v1639 = vadd.f32 %v1244, %v1621
    %v1640 = vpack.c.bf16 %v1625, %v1624
    %v1641 = vpack.c.bf16 %v1627, %v1626
    %v1642 = vpack.c.bf16 %v1629, %v1628
    %v1643 = vpack.c.bf16 %v1631, %v1630
    %v1644 = vpack.c.bf16 %v1633, %v1632
    %v1645 = vpack.c.bf16 %v1635, %v1634
    %v1646 = vpack.c.bf16 %v1637, %v1636
    %v1647 = vpack.c.bf16 %v1639, %v1638
    %s1648 = scalar_lea.vmem [#allocation10], 64
    %v1649 = vld [vmem:[%s1648] sm:$0xf]
    %v1650 = vld [vmem:[%s1648 + $0x4] sm:$0xf]
    %v1651 = vld [vmem:[%s1648 + $0x8] sm:$0xf]
    %v1652 = vld [vmem:[%s1648 + $0xc] sm:$0xf]
    %v1653 = vld [vmem:[%s1648 + $0x10] sm:$0xf]
    %v1654 = vld [vmem:[%s1648 + $0x14] sm:$0xf]
    %v1655 = vld [vmem:[%s1648 + $0x18] sm:$0xf]
    %v1656 = vld [vmem:[%s1648 + $0x1c] sm:$0xf]
    %v1657 = vld [vmem:[%s1648 + $0x20] sm:$0xf]
    %v1658 = vld [vmem:[%s1648 + $0x24] sm:$0xf]
    %v1659 = vld [vmem:[%s1648 + $0x28] sm:$0xf]
    %v1660 = vld [vmem:[%s1648 + $0x2c] sm:$0xf]
    %v1661 = vld [vmem:[%s1648 + $0x30] sm:$0xf]
    %v1662 = vld [vmem:[%s1648 + $0x34] sm:$0xf]
    %v1663 = vld [vmem:[%s1648 + $0x38] sm:$0xf]
    %v1664 = vld [vmem:[%s1648 + $0x3c] sm:$0xf]
    %s1665 = scalar_lea.vmem %s5, 1
    %v1666 = vld [vmem:[%s1665] sm:$0x1]
    %v1668 = vlaneseq
    %v1669 = vshrl.u32 %v1668, 7
    %v1670 = vsub.s32 0, %v1669
    %v1671 = vrot.slane %v1666, %v1670
    %v1689 = vunpack.c.l.b16 %v1649
    %v1690 = vunpack.c.l.b16 %v1650
    %v1691 = vunpack.c.l.b16 %v1651
    %v1692 = vunpack.c.l.b16 %v1652
    %v1693 = vunpack.c.l.b16 %v1653
    %v1694 = vunpack.c.l.b16 %v1654
    %v1695 = vunpack.c.l.b16 %v1655
    %v1696 = vunpack.c.l.b16 %v1656
    %v1697 = vunpack.c.l.b16 %v1657
    %v1698 = vunpack.c.l.b16 %v1658
    %v1699 = vunpack.c.l.b16 %v1659
    %v1700 = vunpack.c.l.b16 %v1660
    %v1701 = vunpack.c.l.b16 %v1661
    %v1702 = vunpack.c.l.b16 %v1662
    %v1703 = vunpack.c.l.b16 %v1663
    %v1704 = vunpack.c.l.b16 %v1664
    %v1705 = vpack.c.b16 %v1690, %v1689
    %v1706 = vpack.c.b16 %v1692, %v1691
    %v1707 = vpack.c.b16 %v1694, %v1693
    %v1708 = vpack.c.b16 %v1696, %v1695
    %v1709 = vpack.c.b16 %v1698, %v1697
    %v1710 = vpack.c.b16 %v1700, %v1699
    %v1711 = vpack.c.b16 %v1702, %v1701
    %v1712 = vpack.c.b16 %v1704, %v1703
    %1721 = vmatprep.subr.bf16.mxu0 0
    %1722 = vmatpush1.bf16.msra.mxu0 %v1705
    %1723 = vmatprep.subr.bf16.mxu0 0
    %1724 = vmatpush1.bf16.msra.mxu0 %v1706
    %1725 = vmatprep.subr.bf16.mxu0 0
    %1726 = vmatpush1.bf16.msra.mxu0 %v1707
    %1727 = vmatprep.subr.bf16.mxu0 0
    %1728 = vmatpush1.bf16.msra.mxu0 %v1708
    %1729 = vmatprep.subr.bf16.mxu0 0
    %1730 = vmatpush1.bf16.msra.mxu0 %v1709
    %1731 = vmatprep.subr.bf16.mxu0 0
    %1732 = vmatpush1.bf16.msra.mxu0 %v1710
    %1733 = vmatprep.subr.bf16.mxu0 0
    %1734 = vmatpush1.bf16.msra.mxu0 %v1711
    %1735 = vmatprep.subr.bf16.mxu0 0
    %1736 = vmatpush1.bf16.msra.mxu0 %v1712
    %1737 = vmatprep.subr.bf16.mxu0 0
    %1738 = vmatpush1.bf16.msra.mxu0 0
    %1739 = vmatprep.subr.bf16.mxu0 0
    %1740 = vmatpush1.bf16.msra.mxu0 0
    %1741 = vmatprep.subr.bf16.mxu0 0
    %1742 = vmatpush1.bf16.msra.mxu0 0
    %1743 = vmatprep.subr.bf16.mxu0 0
    %1744 = vmatpush1.bf16.msra.mxu0 0
    %1745 = vmatprep.subr.bf16.mxu0 0
    %1746 = vmatpush1.bf16.msra.mxu0 0
    %1747 = vmatprep.subr.bf16.mxu0 0
    %1748 = vmatpush1.bf16.msra.mxu0 0
    %1749 = vmatprep.subr.bf16.mxu0 0
    %1750 = vmatpush1.bf16.msra.mxu0 0
    %1751 = vmatprep.subr.bf16.mxu0 0
    %1752 = vmatpush1.bf16.msra.mxu0 0
    %1753 = vmatprep.mubr.bf16.mxu0 0
    %1754 = vmatmul.mubr.bf16.gmra.mrb[0].mxu0 %v1640
    %v1755 = vpop.f32.mrb[0].mxu0
    %v1756 = vadd.f32 %v1671, %v1755
    %v1757 = vpop.f32.mrb[0].mxu0
    %v1758 = vpop.f32.mrb[0].mxu0
    %v1759 = vadd.f32 %v1671, %v1758
    %v1760 = vpop.f32.mrb[0].mxu0
    %1761 = vmatprep.mubr.bf16.mxu0 0
    %1762 = vmatmul.mubr.bf16.gmra.mrb[0].mxu0 %v1641
    %v1763 = vpop.f32.mrb[0].mxu0
    %v1764 = vadd.f32 %v1671, %v1763
    %v1765 = vpop.f32.mrb[0].mxu0
    %v1766 = vpop.f32.mrb[0].mxu0
    %v1767 = vadd.f32 %v1671, %v1766
    %v1768 = vpop.f32.mrb[0].mxu0
    %1769 = vmatprep.mubr.bf16.mxu0 0
    %1770 = vmatmul.mubr.bf16.gmra.mrb[0].mxu0 %v1642
    %v1771 = vpop.f32.mrb[0].mxu0
    %v1772 = vadd.f32 %v1671, %v1771
    %v1773 = vpop.f32.mrb[0].mxu0
    %v1774 = vpop.f32.mrb[0].mxu0
    %v1775 = vadd.f32 %v1671, %v1774
    %v1776 = vpop.f32.mrb[0].mxu0
    %1777 = vmatprep.mubr.bf16.mxu0 0
    %1778 = vmatmul.mubr.bf16.gmra.mrb[0].mxu0 %v1643
    %v1779 = vpop.f32.mrb[0].mxu0
    %v1780 = vadd.f32 %v1671, %v1779
    %v1781 = vpop.f32.mrb[0].mxu0
    %v1782 = vpop.f32.mrb[0].mxu0
    %v1783 = vadd.f32 %v1671, %v1782
    %v1784 = vpop.f32.mrb[0].mxu0
    %1785 = vmatprep.mubr.bf16.mxu0 0
    %1786 = vmatmul.mubr.bf16.gmra.mrb[0].mxu0 %v1644
    %v1787 = vpop.f32.mrb[0].mxu0
    %v1788 = vadd.f32 %v1671, %v1787
    %v1789 = vpop.f32.mrb[0].mxu0
    %v1790 = vpop.f32.mrb[0].mxu0
    %v1791 = vadd.f32 %v1671, %v1790
    %v1792 = vpop.f32.mrb[0].mxu0
    %1793 = vmatprep.mubr.bf16.mxu0 0
    %1794 = vmatmul.mubr.bf16.gmra.mrb[0].mxu0 %v1645
    %v1795 = vpop.f32.mrb[0].mxu0
    %v1796 = vadd.f32 %v1671, %v1795
    %v1797 = vpop.f32.mrb[0].mxu0
    %v1798 = vpop.f32.mrb[0].mxu0
    %v1799 = vadd.f32 %v1671, %v1798
    %v1800 = vpop.f32.mrb[0].mxu0
    %1801 = vmatprep.mubr.bf16.mxu0 0
    %1802 = vmatmul.mubr.bf16.gmra.mrb[0].mxu0 %v1646
    %v1803 = vpop.f32.mrb[0].mxu0
    %v1804 = vadd.f32 %v1671, %v1803
    %v1805 = vpop.f32.mrb[0].mxu0
    %v1806 = vpop.f32.mrb[0].mxu0
    %v1807 = vadd.f32 %v1671, %v1806
    %v1808 = vpop.f32.mrb[0].mxu0
    %1809 = vmatprep.mubr.bf16.mxu0 0
    %1810 = vmatmul.mubr.bf16.gmra.mrb[0].mxu0 %v1647
    %v1811 = vpop.f32.mrb[0].mxu0
    %v1812 = vadd.f32 %v1671, %v1811
    %v1813 = vpop.f32.mrb[0].mxu0
    %v1814 = vpop.f32.mrb[0].mxu0
    %v1815 = vadd.f32 %v1671, %v1814
    %v1816 = vpop.f32.mrb[0].mxu0
    %1817 = vdwg.mxu0
    %v1818 = vmax.f32 %v1756, 0.0
    %v1819 = vmax.f32 %v1759, 0.0
    %v1820 = vmax.f32 %v1764, 0.0
    %v1821 = vmax.f32 %v1767, 0.0
    %v1822 = vmax.f32 %v1772, 0.0
    %v1823 = vmax.f32 %v1775, 0.0
    %v1824 = vmax.f32 %v1780, 0.0
    %v1825 = vmax.f32 %v1783, 0.0
    %v1826 = vmax.f32 %v1788, 0.0
    %v1827 = vmax.f32 %v1791, 0.0
    %v1828 = vmax.f32 %v1796, 0.0
    %v1829 = vmax.f32 %v1799, 0.0
    %v1830 = vmax.f32 %v1804, 0.0
    %v1831 = vmax.f32 %v1807, 0.0
    %v1832 = vmax.f32 %v1812, 0.0
    %v1833 = vmax.f32 %v1815, 0.0
    %v1834 = vpack.c.bf16 %v1819, %v1818
    %v1835 = vpack.c.bf16 %v1821, %v1820
    %v1836 = vpack.c.bf16 %v1823, %v1822
    %v1837 = vpack.c.bf16 %v1825, %v1824
    %v1838 = vpack.c.bf16 %v1827, %v1826
    %v1839 = vpack.c.bf16 %v1829, %v1828
    %v1840 = vpack.c.bf16 %v1831, %v1830
    %v1841 = vpack.c.bf16 %v1833, %v1832
    %s1842 = scalar_lea.vmem [#allocation11], 64
    %v1843 = vld [vmem:[%s1842] sm:$0xf]
    %v1844 = vld [vmem:[%s1842 + $0x4] sm:$0xf]
    %v1845 = vld [vmem:[%s1842 + $0x8] sm:$0xf]
    %v1846 = vld [vmem:[%s1842 + $0xc] sm:$0xf]
    %v1847 = vld [vmem:[%s1842 + $0x10] sm:$0xf]
    %v1848 = vld [vmem:[%s1842 + $0x14] sm:$0xf]
    %v1849 = vld [vmem:[%s1842 + $0x18] sm:$0xf]
    %v1850 = vld [vmem:[%s1842 + $0x1c] sm:$0xf]
    %v1851 = vld [vmem:[%s1842 + $0x20] sm:$0xf]
    %v1852 = vld [vmem:[%s1842 + $0x24] sm:$0xf]
    %v1853 = vld [vmem:[%s1842 + $0x28] sm:$0xf]
    %v1854 = vld [vmem:[%s1842 + $0x2c] sm:$0xf]
    %v1855 = vld [vmem:[%s1842 + $0x30] sm:$0xf]
    %v1856 = vld [vmem:[%s1842 + $0x34] sm:$0xf]
    %v1857 = vld [vmem:[%s1842 + $0x38] sm:$0xf]
    %v1858 = vld [vmem:[%s1842 + $0x3c] sm:$0xf]
    %s1859 = scalar_lea.vmem %s7, 1
    %v1860 = vld [vmem:[%s1859] sm:$0x1]
    %v1862 = vlaneseq
    %v1863 = vshrl.u32 %v1862, 7
    %v1864 = vsub.s32 0, %v1863
    %v1865 = vrot.slane %v1860, %v1864
    %v1883 = vunpack.c.l.b16 %v1843
    %v1884 = vunpack.c.l.b16 %v1844
    %v1885 = vunpack.c.l.b16 %v1845
    %v1886 = vunpack.c.l.b16 %v1846
    %v1887 = vunpack.c.l.b16 %v1847
    %v1888 = vunpack.c.l.b16 %v1848
    %v1889 = vunpack.c.l.b16 %v1849
    %v1890 = vunpack.c.l.b16 %v1850
    %v1891 = vunpack.c.l.b16 %v1851
    %v1892 = vunpack.c.l.b16 %v1852
    %v1893 = vunpack.c.l.b16 %v1853
    %v1894 = vunpack.c.l.b16 %v1854
    %v1895 = vunpack.c.l.b16 %v1855
    %v1896 = vunpack.c.l.b16 %v1856
    %v1897 = vunpack.c.l.b16 %v1857
    %v1898 = vunpack.c.l.b16 %v1858
    %v1899 = vpack.c.b16 %v1884, %v1883
    %v1900 = vpack.c.b16 %v1886, %v1885
    %v1901 = vpack.c.b16 %v1888, %v1887
    %v1902 = vpack.c.b16 %v1890, %v1889
    %v1903 = vpack.c.b16 %v1892, %v1891
    %v1904 = vpack.c.b16 %v1894, %v1893
    %v1905 = vpack.c.b16 %v1896, %v1895
    %v1906 = vpack.c.b16 %v1898, %v1897
    %1915 = vmatprep.subr.bf16.mxu0 0
    %1916 = vmatpush1.bf16.msra.mxu0 %v1899
    %1917 = vmatprep.subr.bf16.mxu0 0
    %1918 = vmatpush1.bf16.msra.mxu0 %v1900
    %1919 = vmatprep.subr.bf16.mxu0 0
    %1920 = vmatpush1.bf16.msra.mxu0 %v1901
    %1921 = vmatprep.subr.bf16.mxu0 0
    %1922 = vmatpush1.bf16.msra.mxu0 %v1902
    %1923 = vmatprep.subr.bf16.mxu0 0
    %1924 = vmatpush1.bf16.msra.mxu0 %v1903
    %1925 = vmatprep.subr.bf16.mxu0 0
    %1926 = vmatpush1.bf16.msra.mxu0 %v1904
    %1927 = vmatprep.subr.bf16.mxu0 0
    %1928 = vmatpush1.bf16.msra.mxu0 %v1905
    %1929 = vmatprep.subr.bf16.mxu0 0
    %1930 = vmatpush1.bf16.msra.mxu0 %v1906
    %1931 = vmatprep.subr.bf16.mxu0 0
    %1932 = vmatpush1.bf16.msra.mxu0 0
    %1933 = vmatprep.subr.bf16.mxu0 0
    %1934 = vmatpush1.bf16.msra.mxu0 0
    %1935 = vmatprep.subr.bf16.mxu0 0
    %1936 = vmatpush1.bf16.msra.mxu0 0
    %1937 = vmatprep.subr.bf16.mxu0 0
    %1938 = vmatpush1.bf16.msra.mxu0 0
    %1939 = vmatprep.subr.bf16.mxu0 0
    %1940 = vmatpush1.bf16.msra.mxu0 0
    %1941 = vmatprep.subr.bf16.mxu0 0
    %1942 = vmatpush1.bf16.msra.mxu0 0
    %1943 = vmatprep.subr.bf16.mxu0 0
    %1944 = vmatpush1.bf16.msra.mxu0 0
    %1945 = vmatprep.subr.bf16.mxu0 0
    %1946 = vmatpush1.bf16.msra.mxu0 0
    %1947 = vmatprep.mubr.bf16.mxu0 0
    %1948 = vmatmul.mubr.bf16.gmra.mrb[0].mxu0 %v1834
    %v1949 = vpop.f32.mrb[0].mxu0
    %v1950 = vadd.f32 %v1865, %v1949
    %v1951 = vpop.f32.mrb[0].mxu0
    %v1952 = vpop.f32.mrb[0].mxu0
    %v1953 = vadd.f32 %v1865, %v1952
    %v1954 = vpop.f32.mrb[0].mxu0
    %1955 = vmatprep.mubr.bf16.mxu0 0
    %1956 = vmatmul.mubr.bf16.gmra.mrb[0].mxu0 %v1835
    %v1957 = vpop.f32.mrb[0].mxu0
    %v1958 = vadd.f32 %v1865, %v1957
    %v1959 = vpop.f32.mrb[0].mxu0
    %v1960 = vpop.f32.mrb[0].mxu0
    %v1961 = vadd.f32 %v1865, %v1960
    %v1962 = vpop.f32.mrb[0].mxu0
    %1963 = vmatprep.mubr.bf16.mxu0 0
    %1964 = vmatmul.mubr.bf16.gmra.mrb[0].mxu0 %v1836
    %v1965 = vpop.f32.mrb[0].mxu0
    %v1966 = vadd.f32 %v1865, %v1965
    %v1967 = vpop.f32.mrb[0].mxu0
    %v1968 = vpop.f32.mrb[0].mxu0
    %v1969 = vadd.f32 %v1865, %v1968
    %v1970 = vpop.f32.mrb[0].mxu0
    %1971 = vmatprep.mubr.bf16.mxu0 0
    %1972 = vmatmul.mubr.bf16.gmra.mrb[0].mxu0 %v1837
    %v1973 = vpop.f32.mrb[0].mxu0
    %v1974 = vadd.f32 %v1865, %v1973
    %v1975 = vpop.f32.mrb[0].mxu0
    %v1976 = vpop.f32.mrb[0].mxu0
    %v1977 = vadd.f32 %v1865, %v1976
    %v1978 = vpop.f32.mrb[0].mxu0
    %1979 = vmatprep.mubr.bf16.mxu0 0
    %1980 = vmatmul.mubr.bf16.gmra.mrb[0].mxu0 %v1838
    %v1981 = vpop.f32.mrb[0].mxu0
    %v1982 = vadd.f32 %v1865, %v1981
    %v1983 = vpop.f32.mrb[0].mxu0
    %v1984 = vpop.f32.mrb[0].mxu0
    %v1985 = vadd.f32 %v1865, %v1984
    %v1986 = vpop.f32.mrb[0].mxu0
    %1987 = vmatprep.mubr.bf16.mxu0 0
    %1988 = vmatmul.mubr.bf16.gmra.mrb[0].mxu0 %v1839
    %v1989 = vpop.f32.mrb[0].mxu0
    %v1990 = vadd.f32 %v1865, %v1989
    %v1991 = vpop.f32.mrb[0].mxu0
    %v1992 = vpop.f32.mrb[0].mxu0
    %v1993 = vadd.f32 %v1865, %v1992
    %v1994 = vpop.f32.mrb[0].mxu0
    %1995 = vmatprep.mubr.bf16.mxu0 0
    %1996 = vmatmul.mubr.bf16.gmra.mrb[0].mxu0 %v1840
    %v1997 = vpop.f32.mrb[0].mxu0
    %v1998 = vadd.f32 %v1865, %v1997
    %v1999 = vpop.f32.mrb[0].mxu0
    %v2000 = vpop.f32.mrb[0].mxu0
    %v2001 = vadd.f32 %v1865, %v2000
    %v2002 = vpop.f32.mrb[0].mxu0
    %2003 = vmatprep.mubr.bf16.mxu0 0
    %2004 = vmatmul.mubr.bf16.gmra.mrb[0].mxu0 %v1841
    %v2005 = vpop.f32.mrb[0].mxu0
    %v2006 = vadd.f32 %v1865, %v2005
    %v2007 = vpop.f32.mrb[0].mxu0
    %v2008 = vpop.f32.mrb[0].mxu0
    %v2009 = vadd.f32 %v1865, %v2008
    %v2010 = vpop.f32.mrb[0].mxu0
    %2011 = vdwg.mxu0
    %v2012 = vmax.f32 %v1950, 0.0
    %v2013 = vmax.f32 %v1953, 0.0
    %v2014 = vmax.f32 %v1958, 0.0
    %v2015 = vmax.f32 %v1961, 0.0
    %v2016 = vmax.f32 %v1966, 0.0
    %v2017 = vmax.f32 %v1969, 0.0
    %v2018 = vmax.f32 %v1974, 0.0
    %v2019 = vmax.f32 %v1977, 0.0
    %v2020 = vmax.f32 %v1982, 0.0
    %v2021 = vmax.f32 %v1985, 0.0
    %v2022 = vmax.f32 %v1990, 0.0
    %v2023 = vmax.f32 %v1993, 0.0
    %v2024 = vmax.f32 %v1998, 0.0
    %v2025 = vmax.f32 %v2001, 0.0
    %v2026 = vmax.f32 %v2006, 0.0
    %v2027 = vmax.f32 %v2009, 0.0
    %s2028 = scalar_lea.vmem [#allocation8], 256
    %v2029 = vld [vmem:[%s2028] sm:$0xf]
    %v2030 = vld [vmem:[%s2028 + $0x4] sm:$0xf]
    %v2031 = vld [vmem:[%s2028 + $0x8] sm:$0xf]
    %v2032 = vld [vmem:[%s2028 + $0xc] sm:$0xf]
    %v2033 = vld [vmem:[%s2028 + $0x10] sm:$0xf]
    %v2034 = vld [vmem:[%s2028 + $0x14] sm:$0xf]
    %v2035 = vld [vmem:[%s2028 + $0x18] sm:$0xf]
    %v2036 = vld [vmem:[%s2028 + $0x1c] sm:$0xf]
    %v2037 = vld [vmem:[%s2028 + $0x20] sm:$0xf]
    %v2038 = vld [vmem:[%s2028 + $0x24] sm:$0xf]
    %v2039 = vld [vmem:[%s2028 + $0x28] sm:$0xf]
    %v2040 = vld [vmem:[%s2028 + $0x2c] sm:$0xf]
    %v2041 = vld [vmem:[%s2028 + $0x30] sm:$0xf]
    %v2042 = vld [vmem:[%s2028 + $0x34] sm:$0xf]
    %v2043 = vld [vmem:[%s2028 + $0x38] sm:$0xf]
    %v2044 = vld [vmem:[%s2028 + $0x3c] sm:$0xf]
    %v2045 = vld [vmem:[%s2028 + $0x40] sm:$0xf]
    %v2046 = vld [vmem:[%s2028 + $0x44] sm:$0xf]
    %v2047 = vld [vmem:[%s2028 + $0x48] sm:$0xf]
    %v2048 = vld [vmem:[%s2028 + $0x4c] sm:$0xf]
    %v2049 = vld [vmem:[%s2028 + $0x50] sm:$0xf]
    %v2050 = vld [vmem:[%s2028 + $0x54] sm:$0xf]
    %v2051 = vld [vmem:[%s2028 + $0x58] sm:$0xf]
    %v2052 = vld [vmem:[%s2028 + $0x5c] sm:$0xf]
    %v2053 = vld [vmem:[%s2028 + $0x60] sm:$0xf]
    %v2054 = vld [vmem:[%s2028 + $0x64] sm:$0xf]
    %v2055 = vld [vmem:[%s2028 + $0x68] sm:$0xf]
    %v2056 = vld [vmem:[%s2028 + $0x6c] sm:$0xf]
    %v2057 = vld [vmem:[%s2028 + $0x70] sm:$0xf]
    %v2058 = vld [vmem:[%s2028 + $0x74] sm:$0xf]
    %v2059 = vld [vmem:[%s2028 + $0x78] sm:$0xf]
    %v2060 = vld [vmem:[%s2028 + $0x7c] sm:$0xf]
    %v2061 = vunpack.c.l.bf16 %v2029
    %v2062 = vunpack.c.l.bf16 %v2030
    %v2063 = vunpack.c.l.bf16 %v2031
    %v2064 = vunpack.c.l.bf16 %v2032
    %v2065 = vunpack.c.l.bf16 %v2033
    %v2066 = vunpack.c.l.bf16 %v2034
    %v2067 = vunpack.c.l.bf16 %v2035
    %v2068 = vunpack.c.l.bf16 %v2036
    %v2069 = vunpack.c.l.bf16 %v2037
    %v2070 = vunpack.c.l.bf16 %v2038
    %v2071 = vunpack.c.l.bf16 %v2039
    %v2072 = vunpack.c.l.bf16 %v2040
    %v2073 = vunpack.c.l.bf16 %v2041
    %v2074 = vunpack.c.l.bf16 %v2042
    %v2075 = vunpack.c.l.bf16 %v2043
    %v2076 = vunpack.c.l.bf16 %v2044
    %v2077 = vunpack.c.l.bf16 %v2045
    %v2078 = vunpack.c.l.bf16 %v2046
    %v2079 = vunpack.c.l.bf16 %v2047
    %v2080 = vunpack.c.l.bf16 %v2048
    %v2081 = vunpack.c.l.bf16 %v2049
    %v2082 = vunpack.c.l.bf16 %v2050
    %v2083 = vunpack.c.l.bf16 %v2051
    %v2084 = vunpack.c.l.bf16 %v2052
    %v2085 = vunpack.c.l.bf16 %v2053
    %v2086 = vunpack.c.l.bf16 %v2054
    %v2087 = vunpack.c.l.bf16 %v2055
    %v2088 = vunpack.c.l.bf16 %v2056
    %v2089 = vunpack.c.l.bf16 %v2057
    %v2090 = vunpack.c.l.bf16 %v2058
    %v2091 = vunpack.c.l.bf16 %v2059
    %v2092 = vunpack.c.l.bf16 %v2060
    %v2093 = vpack.c.bf16 %v2013, %v2012
    %v2094 = vpack.c.bf16 %v2015, %v2014
    %v2095 = vpack.c.bf16 %v2017, %v2016
    %v2096 = vpack.c.bf16 %v2019, %v2018
    %v2097 = vpack.c.bf16 %v2021, %v2020
    %v2098 = vpack.c.bf16 %v2023, %v2022
    %v2099 = vpack.c.bf16 %v2025, %v2024
    %v2100 = vpack.c.bf16 %v2027, %v2026
    %2101 = vmatprep.subr.bf16.mxu0 0
    %2102 = vmatpush1.bf16.msra.mxu0 %v2093
    %2103 = vmatprep.subr.bf16.mxu0 0
    %2104 = vmatpush1.bf16.msra.mxu0 %v2094
    %2105 = vmatprep.subr.bf16.mxu0 0
    %2106 = vmatpush1.bf16.msra.mxu0 %v2095
    %2107 = vmatprep.subr.bf16.mxu0 0
    %2108 = vmatpush1.bf16.msra.mxu0 %v2096
    %2109 = vmatprep.subr.bf16.mxu0 0
    %2110 = vmatpush1.bf16.msra.mxu0 %v2097
    %2111 = vmatprep.subr.bf16.mxu0 0
    %2112 = vmatpush1.bf16.msra.mxu0 %v2098
    %2113 = vmatprep.subr.bf16.mxu0 0
    %2114 = vmatpush1.bf16.msra.mxu0 %v2099
    %2115 = vmatprep.subr.bf16.mxu0 0
    %2116 = vmatpush1.bf16.msra.mxu0 %v2100
    %2117 = vmatprep.subr.bf16.mxu0 0
    %2118 = vmatpush1.bf16.msra.mxu0 0
    %2119 = vmatprep.subr.bf16.mxu0 0
    %2120 = vmatpush1.bf16.msra.mxu0 0
    %2121 = vmatprep.subr.bf16.mxu0 0
    %2122 = vmatpush1.bf16.msra.mxu0 0
    %2123 = vmatprep.subr.bf16.mxu0 0
    %2124 = vmatpush1.bf16.msra.mxu0 0
    %2125 = vmatprep.subr.bf16.mxu0 0
    %2126 = vmatpush1.bf16.msra.mxu0 0
    %2127 = vmatprep.subr.bf16.mxu0 0
    %2128 = vmatpush1.bf16.msra.mxu0 0
    %2129 = vmatprep.subr.bf16.mxu0 0
    %2130 = vmatpush1.bf16.msra.mxu0 0
    %2131 = vmatprep.subr.bf16.mxu0 0
    %2132 = vmatpush1.bf16.msra.mxu0 0
    %2133 = vmatprep.mubr.bf16.mxu0 0
    %2134 = vmatmul.mubr.bf16.gmra.mrb[0].mxu0 %v379
    %v2135 = vpop.f32.mrb[0].mxu0
    %v2136 = vadd.f32 %v2061, %v2135
    %v2137 = vpop.f32.mrb[0].mxu0
    %v2138 = vpop.f32.mrb[0].mxu0
    %v2139 = vadd.f32 %v2062, %v2138
    %v2140 = vpop.f32.mrb[0].mxu0
    %2141 = vmatprep.mubr.bf16.mxu0 0
    %2142 = vmatmul.mubr.bf16.gmra.mrb[0].mxu0 %v380
    %v2143 = vpop.f32.mrb[0].mxu0
    %v2144 = vadd.f32 %v2063, %v2143
    %v2145 = vpop.f32.mrb[0].mxu0
    %v2146 = vpop.f32.mrb[0].mxu0
    %v2147 = vadd.f32 %v2064, %v2146
    %v2148 = vpop.f32.mrb[0].mxu0
    %2149 = vmatprep.mubr.bf16.mxu0 0
    %2150 = vmatmul.mubr.bf16.gmra.mrb[0].mxu0 %v381
    %v2151 = vpop.f32.mrb[0].mxu0
    %v2152 = vadd.f32 %v2065, %v2151
    %v2153 = vpop.f32.mrb[0].mxu0
    %v2154 = vpop.f32.mrb[0].mxu0
    %v2155 = vadd.f32 %v2066, %v2154
    %v2156 = vpop.f32.mrb[0].mxu0
    %2157 = vmatprep.mubr.bf16.mxu0 0
    %2158 = vmatmul.mubr.bf16.gmra.mrb[0].mxu0 %v382
    %v2159 = vpop.f32.mrb[0].mxu0
    %v2160 = vadd.f32 %v2067, %v2159
    %v2161 = vpop.f32.mrb[0].mxu0
    %v2162 = vpop.f32.mrb[0].mxu0
    %v2163 = vadd.f32 %v2068, %v2162
    %v2164 = vpop.f32.mrb[0].mxu0
    %2165 = vmatprep.mubr.bf16.mxu0 0
    %2166 = vmatmul.mubr.bf16.gmra.mrb[0].mxu0 %v383
    %v2167 = vpop.f32.mrb[0].mxu0
    %v2168 = vadd.f32 %v2069, %v2167
    %v2169 = vpop.f32.mrb[0].mxu0
    %v2170 = vpop.f32.mrb[0].mxu0
    %v2171 = vadd.f32 %v2070, %v2170
    %v2172 = vpop.f32.mrb[0].mxu0
    %2173 = vmatprep.mubr.bf16.mxu0 0
    %2174 = vmatmul.mubr.bf16.gmra.mrb[0].mxu0 %v384
    %v2175 = vpop.f32.mrb[0].mxu0
    %v2176 = vadd.f32 %v2071, %v2175
    %v2177 = vpop.f32.mrb[0].mxu0
    %v2178 = vpop.f32.mrb[0].mxu0
    %v2179 = vadd.f32 %v2072, %v2178
    %v2180 = vpop.f32.mrb[0].mxu0
    %2181 = vmatprep.mubr.bf16.mxu0 0
    %2182 = vmatmul.mubr.bf16.gmra.mrb[0].mxu0 %v385
    %v2183 = vpop.f32.mrb[0].mxu0
    %v2184 = vadd.f32 %v2073, %v2183
    %v2185 = vpop.f32.mrb[0].mxu0
    %v2186 = vpop.f32.mrb[0].mxu0
    %v2187 = vadd.f32 %v2074, %v2186
    %v2188 = vpop.f32.mrb[0].mxu0
    %2189 = vmatprep.mubr.bf16.mxu0 0
    %2190 = vmatmul.mubr.bf16.gmra.mrb[0].mxu0 %v386
    %v2191 = vpop.f32.mrb[0].mxu0
    %v2192 = vadd.f32 %v2075, %v2191
    %v2193 = vpop.f32.mrb[0].mxu0
    %v2194 = vpop.f32.mrb[0].mxu0
    %v2195 = vadd.f32 %v2076, %v2194
    %v2196 = vpop.f32.mrb[0].mxu0
    %2197 = vmatprep.mubr.bf16.mxu0 0
    %2198 = vmatmul.mubr.bf16.gmra.mrb[0].mxu0 %v387
    %v2199 = vpop.f32.mrb[0].mxu0
    %v2200 = vadd.f32 %v2077, %v2199
    %v2201 = vpop.f32.mrb[0].mxu0
    %v2202 = vpop.f32.mrb[0].mxu0
    %v2203 = vadd.f32 %v2078, %v2202
    %v2204 = vpop.f32.mrb[0].mxu0
    %2205 = vmatprep.mubr.bf16.mxu0 0
    %2206 = vmatmul.mubr.bf16.gmra.mrb[0].mxu0 %v388
    %v2207 = vpop.f32.mrb[0].mxu0
    %v2208 = vadd.f32 %v2079, %v2207
    %v2209 = vpop.f32.mrb[0].mxu0
    %v2210 = vpop.f32.mrb[0].mxu0
    %v2211 = vadd.f32 %v2080, %v2210
    %v2212 = vpop.f32.mrb[0].mxu0
    %2213 = vmatprep.mubr.bf16.mxu0 0
    %2214 = vmatmul.mubr.bf16.gmra.mrb[0].mxu0 %v389
    %v2215 = vpop.f32.mrb[0].mxu0
    %v2216 = vadd.f32 %v2081, %v2215
    %v2217 = vpop.f32.mrb[0].mxu0
    %v2218 = vpop.f32.mrb[0].mxu0
    %v2219 = vadd.f32 %v2082, %v2218
    %v2220 = vpop.f32.mrb[0].mxu0
    %2221 = vmatprep.mubr.bf16.mxu0 0
    %2222 = vmatmul.mubr.bf16.gmra.mrb[0].mxu0 %v390
    %v2223 = vpop.f32.mrb[0].mxu0
    %v2224 = vadd.f32 %v2083, %v2223
    %v2225 = vpop.f32.mrb[0].mxu0
    %v2226 = vpop.f32.mrb[0].mxu0
    %v2227 = vadd.f32 %v2084, %v2226
    %v2228 = vpop.f32.mrb[0].mxu0
    %2229 = vmatprep.mubr.bf16.mxu0 0
    %2230 = vmatmul.mubr.bf16.gmra.mrb[0].mxu0 %v391
    %v2231 = vpop.f32.mrb[0].mxu0
    %v2232 = vadd.f32 %v2085, %v2231
    %v2233 = vpop.f32.mrb[0].mxu0
    %v2234 = vpop.f32.mrb[0].mxu0
    %v2235 = vadd.f32 %v2086, %v2234
    %v2236 = vpop.f32.mrb[0].mxu0
    %2237 = vmatprep.mubr.bf16.mxu0 0
    %2238 = vmatmul.mubr.bf16.gmra.mrb[0].mxu0 %v392
    %v2239 = vpop.f32.mrb[0].mxu0
    %v2240 = vadd.f32 %v2087, %v2239
    %v2241 = vpop.f32.mrb[0].mxu0
    %v2242 = vpop.f32.mrb[0].mxu0
    %v2243 = vadd.f32 %v2088, %v2242
    %v2244 = vpop.f32.mrb[0].mxu0
    %2245 = vmatprep.mubr.bf16.mxu0 0
    %2246 = vmatmul.mubr.bf16.gmra.mrb[0].mxu0 %v393
    %v2247 = vpop.f32.mrb[0].mxu0
    %v2248 = vadd.f32 %v2089, %v2247
    %v2249 = vpop.f32.mrb[0].mxu0
    %v2250 = vpop.f32.mrb[0].mxu0
    %v2251 = vadd.f32 %v2090, %v2250
    %v2252 = vpop.f32.mrb[0].mxu0
    %2253 = vmatprep.mubr.bf16.mxu0 0
    %2254 = vmatmul.mubr.bf16.gmra.mrb[0].mxu0 %v394
    %v2255 = vpop.f32.mrb[0].mxu0
    %v2256 = vadd.f32 %v2091, %v2255
    %v2257 = vpop.f32.mrb[0].mxu0
    %v2258 = vpop.f32.mrb[0].mxu0
    %v2259 = vadd.f32 %v2092, %v2258
    %v2260 = vpop.f32.mrb[0].mxu0
    %2261 = vdwg.mxu0
    %v2262 = vmax.f32 %v2136, 0.0
    %v2263 = vmax.f32 %v2139, 0.0
    %v2264 = vmax.f32 %v2144, 0.0
    %v2265 = vmax.f32 %v2147, 0.0
    %v2266 = vmax.f32 %v2152, 0.0
    %v2267 = vmax.f32 %v2155, 0.0
    %v2268 = vmax.f32 %v2160, 0.0
    %v2269 = vmax.f32 %v2163, 0.0
    %v2270 = vmax.f32 %v2168, 0.0
    %v2271 = vmax.f32 %v2171, 0.0
    %v2272 = vmax.f32 %v2176, 0.0
    %v2273 = vmax.f32 %v2179, 0.0
    %v2274 = vmax.f32 %v2184, 0.0
    %v2275 = vmax.f32 %v2187, 0.0
    %v2276 = vmax.f32 %v2192, 0.0
    %v2277 = vmax.f32 %v2195, 0.0
    %v2278 = vmax.f32 %v2200, 0.0
    %v2279 = vmax.f32 %v2203, 0.0
    %v2280 = vmax.f32 %v2208, 0.0
    %v2281 = vmax.f32 %v2211, 0.0
    %v2282 = vmax.f32 %v2216, 0.0
    %v2283 = vmax.f32 %v2219, 0.0
    %v2284 = vmax.f32 %v2224, 0.0
    %v2285 = vmax.f32 %v2227, 0.0
    %v2286 = vmax.f32 %v2232, 0.0
    %v2287 = vmax.f32 %v2235, 0.0
    %v2288 = vmax.f32 %v2240, 0.0
    %v2289 = vmax.f32 %v2243, 0.0
    %v2290 = vmax.f32 %v2248, 0.0
    %v2291 = vmax.f32 %v2251, 0.0
    %v2292 = vmax.f32 %v2256, 0.0
    %v2293 = vmax.f32 %v2259, 0.0
    %v2294 = vpack.c.bf16 %v2263, %v2262
    %v2295 = vpack.c.bf16 %v2265, %v2264
    %v2296 = vpack.c.bf16 %v2267, %v2266
    %v2297 = vpack.c.bf16 %v2269, %v2268
    %v2298 = vpack.c.bf16 %v2271, %v2270
    %v2299 = vpack.c.bf16 %v2273, %v2272
    %v2300 = vpack.c.bf16 %v2275, %v2274
    %v2301 = vpack.c.bf16 %v2277, %v2276
    %v2302 = vpack.c.bf16 %v2279, %v2278
    %v2303 = vpack.c.bf16 %v2281, %v2280
    %v2304 = vpack.c.bf16 %v2283, %v2282
    %v2305 = vpack.c.bf16 %v2285, %v2284
    %v2306 = vpack.c.bf16 %v2287, %v2286
    %v2307 = vpack.c.bf16 %v2289, %v2288
    %v2308 = vpack.c.bf16 %v2291, %v2290
    %v2309 = vpack.c.bf16 %v2293, %v2292
    %2310 = vmatprep.subr.bf16.mxu0 0
    %2311 = vmatpush1.bf16.msra.mxu0 %v2294
    %2312 = vmatprep.subr.bf16.mxu0 0
    %2313 = vmatpush1.bf16.msra.mxu0 %v2295
    %2314 = vmatprep.subr.bf16.mxu0 0
    %2315 = vmatpush1.bf16.msra.mxu0 %v2296
    %2316 = vmatprep.subr.bf16.mxu0 0
    %2317 = vmatpush1.bf16.msra.mxu0 %v2297
    %2318 = vmatprep.subr.bf16.mxu0 0
    %2319 = vmatpush1.bf16.msra.mxu0 %v2298
    %2320 = vmatprep.subr.bf16.mxu0 0
    %2321 = vmatpush1.bf16.msra.mxu0 %v2299
    %2322 = vmatprep.subr.bf16.mxu0 0
    %2323 = vmatpush1.bf16.msra.mxu0 %v2300
    %2324 = vmatprep.subr.bf16.mxu0 0
    %2325 = vmatpush1.bf16.msra.mxu0 %v2301
    %2326 = vmatprep.subr.bf16.mxu0 0
    %2327 = vmatpush1.bf16.msra.mxu0 %v2302
    %2328 = vmatprep.subr.bf16.mxu0 0
    %2329 = vmatpush1.bf16.msra.mxu0 %v2303
    %2330 = vmatprep.subr.bf16.mxu0 0
    %2331 = vmatpush1.bf16.msra.mxu0 %v2304
    %2332 = vmatprep.subr.bf16.mxu0 0
    %2333 = vmatpush1.bf16.msra.mxu0 %v2305
    %2334 = vmatprep.subr.bf16.mxu0 0
    %2335 = vmatpush1.bf16.msra.mxu0 %v2306
    %2336 = vmatprep.subr.bf16.mxu0 0
    %2337 = vmatpush1.bf16.msra.mxu0 %v2307
    %2338 = vmatprep.subr.bf16.mxu0 0
    %2339 = vmatpush1.bf16.msra.mxu0 %v2308
    %2340 = vmatprep.subr.bf16.mxu0 0
    %2341 = vmatpush1.bf16.msra.mxu0 %v2309
    %2342 = vmatprep.mubr.bf16.mxu0 %v717
    %2343 = vmatmul.mubr.bf16.gmra.mrb[0].mxu0 %v716
    %v2344 = vpop.f32.mrb[0].mxu0
    %v2345 = vadd.f32 0.0, %v2344
    %v2346 = vpop.f32.mrb[0].mxu0
    %v2347 = vpop.f32.mrb[0].mxu0
    %v2348 = vadd.f32 0.0, %v2347
    %v2349 = vpop.f32.mrb[0].mxu0
    %2350 = vmatprep.mubr.bf16.mxu0 %v719
    %2351 = vmatmul.mubr.bf16.gmra.mrb[0].mxu0 %v718
    %v2352 = vpop.f32.mrb[0].mxu0
    %v2353 = vadd.f32 0.0, %v2352
    %v2354 = vpop.f32.mrb[0].mxu0
    %v2355 = vpop.f32.mrb[0].mxu0
    %v2356 = vadd.f32 0.0, %v2355
    %v2357 = vpop.f32.mrb[0].mxu0
    %2358 = vmatprep.mubr.bf16.mxu0 %v721
    %2359 = vmatmul.mubr.bf16.gmra.mrb[0].mxu0 %v720
    %v2360 = vpop.f32.mrb[0].mxu0
    %v2361 = vadd.f32 0.0, %v2360
    %v2362 = vpop.f32.mrb[0].mxu0
    %v2363 = vpop.f32.mrb[0].mxu0
    %v2364 = vadd.f32 0.0, %v2363
    %v2365 = vpop.f32.mrb[0].mxu0
    %2366 = vmatprep.mubr.bf16.mxu0 %v723
    %2367 = vmatmul.mubr.bf16.gmra.mrb[0].mxu0 %v722
    %v2368 = vpop.f32.mrb[0].mxu0
    %v2369 = vadd.f32 0.0, %v2368
    %v2370 = vpop.f32.mrb[0].mxu0
    %v2371 = vpop.f32.mrb[0].mxu0
    %v2372 = vadd.f32 0.0, %v2371
    %v2373 = vpop.f32.mrb[0].mxu0
    %2374 = vmatprep.mubr.bf16.mxu0 %v725
    %2375 = vmatmul.mubr.bf16.gmra.mrb[0].mxu0 %v724
    %v2376 = vpop.f32.mrb[0].mxu0
    %v2377 = vadd.f32 0.0, %v2376
    %v2378 = vpop.f32.mrb[0].mxu0
    %v2379 = vpop.f32.mrb[0].mxu0
    %v2380 = vadd.f32 0.0, %v2379
    %v2381 = vpop.f32.mrb[0].mxu0
    %2382 = vmatprep.mubr.bf16.mxu0 %v727
    %2383 = vmatmul.mubr.bf16.gmra.mrb[0].mxu0 %v726
    %v2384 = vpop.f32.mrb[0].mxu0
    %v2385 = vadd.f32 0.0, %v2384
    %v2386 = vpop.f32.mrb[0].mxu0
    %v2387 = vpop.f32.mrb[0].mxu0
    %v2388 = vadd.f32 0.0, %v2387
    %v2389 = vpop.f32.mrb[0].mxu0
    %2390 = vmatprep.mubr.bf16.mxu0 %v729
    %2391 = vmatmul.mubr.bf16.gmra.mrb[0].mxu0 %v728
    %v2392 = vpop.f32.mrb[0].mxu0
    %v2393 = vadd.f32 0.0, %v2392
    %v2394 = vpop.f32.mrb[0].mxu0
    %v2395 = vpop.f32.mrb[0].mxu0
    %v2396 = vadd.f32 0.0, %v2395
    %v2397 = vpop.f32.mrb[0].mxu0
    %2398 = vmatprep.mubr.bf16.mxu0 %v731
    %2399 = vmatmul.mubr.bf16.gmra.mrb[0].mxu0 %v730
    %v2400 = vpop.f32.mrb[0].mxu0
    %v2401 = vadd.f32 0.0, %v2400
    %v2402 = vpop.f32.mrb[0].mxu0
    %v2403 = vpop.f32.mrb[0].mxu0
    %v2404 = vadd.f32 0.0, %v2403
    %v2405 = vpop.f32.mrb[0].mxu0
    %2406 = vdwg.mxu0
    %v2407 = vadd.f32 %v2012, %v2345
    %v2408 = vadd.f32 %v2013, %v2348
    %v2409 = vadd.f32 %v2014, %v2353
    %v2410 = vadd.f32 %v2015, %v2356
    %v2411 = vadd.f32 %v2016, %v2361
    %v2412 = vadd.f32 %v2017, %v2364
    %v2413 = vadd.f32 %v2018, %v2369
    %v2414 = vadd.f32 %v2019, %v2372
    %v2415 = vadd.f32 %v2020, %v2377
    %v2416 = vadd.f32 %v2021, %v2380
    %v2417 = vadd.f32 %v2022, %v2385
    %v2418 = vadd.f32 %v2023, %v2388
    %v2419 = vadd.f32 %v2024, %v2393
    %v2420 = vadd.f32 %v2025, %v2396
    %v2421 = vadd.f32 %v2026, %v2401
    %v2422 = vadd.f32 %v2027, %v2404
    %v2423 = vpack.c.bf16 %v2408, %v2407
    %v2424 = vpack.c.bf16 %v2410, %v2409
    %v2425 = vpack.c.bf16 %v2412, %v2411
    %v2426 = vpack.c.bf16 %v2414, %v2413
    %v2427 = vpack.c.bf16 %v2416, %v2415
    %v2428 = vpack.c.bf16 %v2418, %v2417
    %v2429 = vpack.c.bf16 %v2420, %v2419
    %v2430 = vpack.c.bf16 %v2422, %v2421
    %s2431 = scalar_lea.vmem [#allocation10], 128
    %v2432 = vld [vmem:[%s2431] sm:$0xf]
    %v2433 = vld [vmem:[%s2431 + $0x4] sm:$0xf]
    %v2434 = vld [vmem:[%s2431 + $0x8] sm:$0xf]
    %v2435 = vld [vmem:[%s2431 + $0xc] sm:$0xf]
    %v2436 = vld [vmem:[%s2431 + $0x10] sm:$0xf]
    %v2437 = vld [vmem:[%s2431 + $0x14] sm:$0xf]
    %v2438 = vld [vmem:[%s2431 + $0x18] sm:$0xf]
    %v2439 = vld [vmem:[%s2431 + $0x1c] sm:$0xf]
    %v2440 = vld [vmem:[%s2431 + $0x20] sm:$0xf]
    %v2441 = vld [vmem:[%s2431 + $0x24] sm:$0xf]
    %v2442 = vld [vmem:[%s2431 + $0x28] sm:$0xf]
    %v2443 = vld [vmem:[%s2431 + $0x2c] sm:$0xf]
    %v2444 = vld [vmem:[%s2431 + $0x30] sm:$0xf]
    %v2445 = vld [vmem:[%s2431 + $0x34] sm:$0xf]
    %v2446 = vld [vmem:[%s2431 + $0x38] sm:$0xf]
    %v2447 = vld [vmem:[%s2431 + $0x3c] sm:$0xf]
    %s2448 = scalar_lea.vmem %s5, 2
    %v2449 = vld [vmem:[%s2448] sm:$0x1]
    %v2451 = vlaneseq
    %v2452 = vshrl.u32 %v2451, 7
    %v2453 = vsub.s32 0, %v2452
    %v2454 = vrot.slane %v2449, %v2453
    %v2472 = vunpack.c.l.b16 %v2432
    %v2473 = vunpack.c.l.b16 %v2433
    %v2474 = vunpack.c.l.b16 %v2434
    %v2475 = vunpack.c.l.b16 %v2435
    %v2476 = vunpack.c.l.b16 %v2436
    %v2477 = vunpack.c.l.b16 %v2437
    %v2478 = vunpack.c.l.b16 %v2438
    %v2479 = vunpack.c.l.b16 %v2439
    %v2480 = vunpack.c.l.b16 %v2440
    %v2481 = vunpack.c.l.b16 %v2441
    %v2482 = vunpack.c.l.b16 %v2442
    %v2483 = vunpack.c.l.b16 %v2443
    %v2484 = vunpack.c.l.b16 %v2444
    %v2485 = vunpack.c.l.b16 %v2445
    %v2486 = vunpack.c.l.b16 %v2446
    %v2487 = vunpack.c.l.b16 %v2447
    %v2488 = vpack.c.b16 %v2473, %v2472
    %v2489 = vpack.c.b16 %v2475, %v2474
    %v2490 = vpack.c.b16 %v2477, %v2476
    %v2491 = vpack.c.b16 %v2479, %v2478
    %v2492 = vpack.c.b16 %v2481, %v2480
    %v2493 = vpack.c.b16 %v2483, %v2482
    %v2494 = vpack.c.b16 %v2485, %v2484
    %v2495 = vpack.c.b16 %v2487, %v2486
    %2504 = vmatprep.subr.bf16.mxu0 0
    %2505 = vmatpush1.bf16.msra.mxu0 %v2488
    %2506 = vmatprep.subr.bf16.mxu0 0
    %2507 = vmatpush1.bf16.msra.mxu0 %v2489
    %2508 = vmatprep.subr.bf16.mxu0 0
    %2509 = vmatpush1.bf16.msra.mxu0 %v2490
    %2510 = vmatprep.subr.bf16.mxu0 0
    %2511 = vmatpush1.bf16.msra.mxu0 %v2491
    %2512 = vmatprep.subr.bf16.mxu0 0
    %2513 = vmatpush1.bf16.msra.mxu0 %v2492
    %2514 = vmatprep.subr.bf16.mxu0 0
    %2515 = vmatpush1.bf16.msra.mxu0 %v2493
    %2516 = vmatprep.subr.bf16.mxu0 0
    %2517 = vmatpush1.bf16.msra.mxu0 %v2494
    %2518 = vmatprep.subr.bf16.mxu0 0
    %2519 = vmatpush1.bf16.msra.mxu0 %v2495
    %2520 = vmatprep.subr.bf16.mxu0 0
    %2521 = vmatpush1.bf16.msra.mxu0 0
    %2522 = vmatprep.subr.bf16.mxu0 0
    %2523 = vmatpush1.bf16.msra.mxu0 0
    %2524 = vmatprep.subr.bf16.mxu0 0
    %2525 = vmatpush1.bf16.msra.mxu0 0
    %2526 = vmatprep.subr.bf16.mxu0 0
    %2527 = vmatpush1.bf16.msra.mxu0 0
    %2528 = vmatprep.subr.bf16.mxu0 0
    %2529 = vmatpush1.bf16.msra.mxu0 0
    %2530 = vmatprep.subr.bf16.mxu0 0
    %2531 = vmatpush1.bf16.msra.mxu0 0
    %2532 = vmatprep.subr.bf16.mxu0 0
    %2533 = vmatpush1.bf16.msra.mxu0 0
    %2534 = vmatprep.subr.bf16.mxu0 0
    %2535 = vmatpush1.bf16.msra.mxu0 0
    %2536 = vmatprep.mubr.bf16.mxu0 0
    %2537 = vmatmul.mubr.bf16.gmra.mrb[0].mxu0 %v2423
    %v2538 = vpop.f32.mrb[0].mxu0
    %v2539 = vadd.f32 %v2454, %v2538
    %v2540 = vpop.f32.mrb[0].mxu0
    %v2541 = vpop.f32.mrb[0].mxu0
    %v2542 = vadd.f32 %v2454, %v2541
    %v2543 = vpop.f32.mrb[0].mxu0
    %2544 = vmatprep.mubr.bf16.mxu0 0
    %2545 = vmatmul.mubr.bf16.gmra.mrb[0].mxu0 %v2424
    %v2546 = vpop.f32.mrb[0].mxu0
    %v2547 = vadd.f32 %v2454, %v2546
    %v2548 = vpop.f32.mrb[0].mxu0
    %v2549 = vpop.f32.mrb[0].mxu0
    %v2550 = vadd.f32 %v2454, %v2549
    %v2551 = vpop.f32.mrb[0].mxu0
    %2552 = vmatprep.mubr.bf16.mxu0 0
    %2553 = vmatmul.mubr.bf16.gmra.mrb[0].mxu0 %v2425
    %v2554 = vpop.f32.mrb[0].mxu0
    %v2555 = vadd.f32 %v2454, %v2554
    %v2556 = vpop.f32.mrb[0].mxu0
    %v2557 = vpop.f32.mrb[0].mxu0
    %v2558 = vadd.f32 %v2454, %v2557
    %v2559 = vpop.f32.mrb[0].mxu0
    %2560 = vmatprep.mubr.bf16.mxu0 0
    %2561 = vmatmul.mubr.bf16.gmra.mrb[0].mxu0 %v2426
    %v2562 = vpop.f32.mrb[0].mxu0
    %v2563 = vadd.f32 %v2454, %v2562
    %v2564 = vpop.f32.mrb[0].mxu0
    %v2565 = vpop.f32.mrb[0].mxu0
    %v2566 = vadd.f32 %v2454, %v2565
    %v2567 = vpop.f32.mrb[0].mxu0
    %2568 = vmatprep.mubr.bf16.mxu0 0
    %2569 = vmatmul.mubr.bf16.gmra.mrb[0].mxu0 %v2427
    %v2570 = vpop.f32.mrb[0].mxu0
    %v2571 = vadd.f32 %v2454, %v2570
    %v2572 = vpop.f32.mrb[0].mxu0
    %v2573 = vpop.f32.mrb[0].mxu0
    %v2574 = vadd.f32 %v2454, %v2573
    %v2575 = vpop.f32.mrb[0].mxu0
    %2576 = vmatprep.mubr.bf16.mxu0 0
    %2577 = vmatmul.mubr.bf16.gmra.mrb[0].mxu0 %v2428
    %v2578 = vpop.f32.mrb[0].mxu0
    %v2579 = vadd.f32 %v2454, %v2578
    %v2580 = vpop.f32.mrb[0].mxu0
    %v2581 = vpop.f32.mrb[0].mxu0
    %v2582 = vadd.f32 %v2454, %v2581
    %v2583 = vpop.f32.mrb[0].mxu0
    %2584 = vmatprep.mubr.bf16.mxu0 0
    %2585 = vmatmul.mubr.bf16.gmra.mrb[0].mxu0 %v2429
    %v2586 = vpop.f32.mrb[0].mxu0
    %v2587 = vadd.f32 %v2454, %v2586
    %v2588 = vpop.f32.mrb[0].mxu0
    %v2589 = vpop.f32.mrb[0].mxu0
    %v2590 = vadd.f32 %v2454, %v2589
    %v2591 = vpop.f32.mrb[0].mxu0
    %2592 = vmatprep.mubr.bf16.mxu0 0
    %2593 = vmatmul.mubr.bf16.gmra.mrb[0].mxu0 %v2430
    %v2594 = vpop.f32.mrb[0].mxu0
    %v2595 = vadd.f32 %v2454, %v2594
    %v2596 = vpop.f32.mrb[0].mxu0
    %v2597 = vpop.f32.mrb[0].mxu0
    %v2598 = vadd.f32 %v2454, %v2597
    %v2599 = vpop.f32.mrb[0].mxu0
    %2600 = vdwg.mxu0
    %v2601 = vmax.f32 %v2539, 0.0
    %v2602 = vmax.f32 %v2542, 0.0
    %v2603 = vmax.f32 %v2547, 0.0
    %v2604 = vmax.f32 %v2550, 0.0
    %v2605 = vmax.f32 %v2555, 0.0
    %v2606 = vmax.f32 %v2558, 0.0
    %v2607 = vmax.f32 %v2563, 0.0
    %v2608 = vmax.f32 %v2566, 0.0
    %v2609 = vmax.f32 %v2571, 0.0
    %v2610 = vmax.f32 %v2574, 0.0
    %v2611 = vmax.f32 %v2579, 0.0
    %v2612 = vmax.f32 %v2582, 0.0
    %v2613 = vmax.f32 %v2587, 0.0
    %v2614 = vmax.f32 %v2590, 0.0
    %v2615 = vmax.f32 %v2595, 0.0
    %v2616 = vmax.f32 %v2598, 0.0
    %v2617 = vpack.c.bf16 %v2602, %v2601
    %v2618 = vpack.c.bf16 %v2604, %v2603
    %v2619 = vpack.c.bf16 %v2606, %v2605
    %v2620 = vpack.c.bf16 %v2608, %v2607
    %v2621 = vpack.c.bf16 %v2610, %v2609
    %v2622 = vpack.c.bf16 %v2612, %v2611
    %v2623 = vpack.c.bf16 %v2614, %v2613
    %v2624 = vpack.c.bf16 %v2616, %v2615
    %s2625 = scalar_lea.vmem [#allocation11], 128
    %v2626 = vld [vmem:[%s2625] sm:$0xf]
    %v2627 = vld [vmem:[%s2625 + $0x4] sm:$0xf]
    %v2628 = vld [vmem:[%s2625 + $0x8] sm:$0xf]
    %v2629 = vld [vmem:[%s2625 + $0xc] sm:$0xf]
    %v2630 = vld [vmem:[%s2625 + $0x10] sm:$0xf]
    %v2631 = vld [vmem:[%s2625 + $0x14] sm:$0xf]
    %v2632 = vld [vmem:[%s2625 + $0x18] sm:$0xf]
    %v2633 = vld [vmem:[%s2625 + $0x1c] sm:$0xf]
    %v2634 = vld [vmem:[%s2625 + $0x20] sm:$0xf]
    %v2635 = vld [vmem:[%s2625 + $0x24] sm:$0xf]
    %v2636 = vld [vmem:[%s2625 + $0x28] sm:$0xf]
    %v2637 = vld [vmem:[%s2625 + $0x2c] sm:$0xf]
    %v2638 = vld [vmem:[%s2625 + $0x30] sm:$0xf]
    %v2639 = vld [vmem:[%s2625 + $0x34] sm:$0xf]
    %v2640 = vld [vmem:[%s2625 + $0x38] sm:$0xf]
    %v2641 = vld [vmem:[%s2625 + $0x3c] sm:$0xf]
    %s2642 = scalar_lea.vmem %s7, 2
    %v2643 = vld [vmem:[%s2642] sm:$0x1]
    %v2645 = vlaneseq
    %v2646 = vshrl.u32 %v2645, 7
    %v2647 = vsub.s32 0, %v2646
    %v2648 = vrot.slane %v2643, %v2647
    %v2666 = vunpack.c.l.b16 %v2626
    %v2667 = vunpack.c.l.b16 %v2627
    %v2668 = vunpack.c.l.b16 %v2628
    %v2669 = vunpack.c.l.b16 %v2629
    %v2670 = vunpack.c.l.b16 %v2630
    %v2671 = vunpack.c.l.b16 %v2631
    %v2672 = vunpack.c.l.b16 %v2632
    %v2673 = vunpack.c.l.b16 %v2633
    %v2674 = vunpack.c.l.b16 %v2634
    %v2675 = vunpack.c.l.b16 %v2635
    %v2676 = vunpack.c.l.b16 %v2636
    %v2677 = vunpack.c.l.b16 %v2637
    %v2678 = vunpack.c.l.b16 %v2638
    %v2679 = vunpack.c.l.b16 %v2639
    %v2680 = vunpack.c.l.b16 %v2640
    %v2681 = vunpack.c.l.b16 %v2641
    %v2682 = vpack.c.b16 %v2667, %v2666
    %v2683 = vpack.c.b16 %v2669, %v2668
    %v2684 = vpack.c.b16 %v2671, %v2670
    %v2685 = vpack.c.b16 %v2673, %v2672
    %v2686 = vpack.c.b16 %v2675, %v2674
    %v2687 = vpack.c.b16 %v2677, %v2676
    %v2688 = vpack.c.b16 %v2679, %v2678
    %v2689 = vpack.c.b16 %v2681, %v2680
    %2698 = vmatprep.subr.bf16.mxu0 0
    %2699 = vmatpush1.bf16.msra.mxu0 %v2682
    %2700 = vmatprep.subr.bf16.mxu0 0
    %2701 = vmatpush1.bf16.msra.mxu0 %v2683
    %2702 = vmatprep.subr.bf16.mxu0 0
    %2703 = vmatpush1.bf16.msra.mxu0 %v2684
    %2704 = vmatprep.subr.bf16.mxu0 0
    %2705 = vmatpush1.bf16.msra.mxu0 %v2685
    %2706 = vmatprep.subr.bf16.mxu0 0
    %2707 = vmatpush1.bf16.msra.mxu0 %v2686
    %2708 = vmatprep.subr.bf16.mxu0 0
    %2709 = vmatpush1.bf16.msra.mxu0 %v2687
    %2710 = vmatprep.subr.bf16.mxu0 0
    %2711 = vmatpush1.bf16.msra.mxu0 %v2688
    %2712 = vmatprep.subr.bf16.mxu0 0
    %2713 = vmatpush1.bf16.msra.mxu0 %v2689
    %2714 = vmatprep.subr.bf16.mxu0 0
    %2715 = vmatpush1.bf16.msra.mxu0 0
    %2716 = vmatprep.subr.bf16.mxu0 0
    %2717 = vmatpush1.bf16.msra.mxu0 0
    %2718 = vmatprep.subr.bf16.mxu0 0
    %2719 = vmatpush1.bf16.msra.mxu0 0
    %2720 = vmatprep.subr.bf16.mxu0 0
    %2721 = vmatpush1.bf16.msra.mxu0 0
    %2722 = vmatprep.subr.bf16.mxu0 0
    %2723 = vmatpush1.bf16.msra.mxu0 0
    %2724 = vmatprep.subr.bf16.mxu0 0
    %2725 = vmatpush1.bf16.msra.mxu0 0
    %2726 = vmatprep.subr.bf16.mxu0 0
    %2727 = vmatpush1.bf16.msra.mxu0 0
    %2728 = vmatprep.subr.bf16.mxu0 0
    %2729 = vmatpush1.bf16.msra.mxu0 0
    %2730 = vmatprep.mubr.bf16.mxu0 0
    %2731 = vmatmul.mubr.bf16.gmra.mrb[0].mxu0 %v2617
    %v2732 = vpop.f32.mrb[0].mxu0
    %v2733 = vadd.f32 %v2648, %v2732
    %v2734 = vpop.f32.mrb[0].mxu0
    %v2735 = vpop.f32.mrb[0].mxu0
    %v2736 = vadd.f32 %v2648, %v2735
    %v2737 = vpop.f32.mrb[0].mxu0
    %2738 = vmatprep.mubr.bf16.mxu0 0
    %2739 = vmatmul.mubr.bf16.gmra.mrb[0].mxu0 %v2618
    %v2740 = vpop.f32.mrb[0].mxu0
    %v2741 = vadd.f32 %v2648, %v2740
    %v2742 = vpop.f32.mrb[0].mxu0
    %v2743 = vpop.f32.mrb[0].mxu0
    %v2744 = vadd.f32 %v2648, %v2743
    %v2745 = vpop.f32.mrb[0].mxu0
    %2746 = vmatprep.mubr.bf16.mxu0 0
    %2747 = vmatmul.mubr.bf16.gmra.mrb[0].mxu0 %v2619
    %v2748 = vpop.f32.mrb[0].mxu0
    %v2749 = vadd.f32 %v2648, %v2748
    %v2750 = vpop.f32.mrb[0].mxu0
    %v2751 = vpop.f32.mrb[0].mxu0
    %v2752 = vadd.f32 %v2648, %v2751
    %v2753 = vpop.f32.mrb[0].mxu0
    %2754 = vmatprep.mubr.bf16.mxu0 0
    %2755 = vmatmul.mubr.bf16.gmra.mrb[0].mxu0 %v2620
    %v2756 = vpop.f32.mrb[0].mxu0
    %v2757 = vadd.f32 %v2648, %v2756
    %v2758 = vpop.f32.mrb[0].mxu0
    %v2759 = vpop.f32.mrb[0].mxu0
    %v2760 = vadd.f32 %v2648, %v2759
    %v2761 = vpop.f32.mrb[0].mxu0
    %2762 = vmatprep.mubr.bf16.mxu0 0
    %2763 = vmatmul.mubr.bf16.gmra.mrb[0].mxu0 %v2621
    %v2764 = vpop.f32.mrb[0].mxu0
    %v2765 = vadd.f32 %v2648, %v2764
    %v2766 = vpop.f32.mrb[0].mxu0
    %v2767 = vpop.f32.mrb[0].mxu0
    %v2768 = vadd.f32 %v2648, %v2767
    %v2769 = vpop.f32.mrb[0].mxu0
    %2770 = vmatprep.mubr.bf16.mxu0 0
    %2771 = vmatmul.mubr.bf16.gmra.mrb[0].mxu0 %v2622
    %v2772 = vpop.f32.mrb[0].mxu0
    %v2773 = vadd.f32 %v2648, %v2772
    %v2774 = vpop.f32.mrb[0].mxu0
    %v2775 = vpop.f32.mrb[0].mxu0
    %v2776 = vadd.f32 %v2648, %v2775
    %v2777 = vpop.f32.mrb[0].mxu0
    %2778 = vmatprep.mubr.bf16.mxu0 0
    %2779 = vmatmul.mubr.bf16.gmra.mrb[0].mxu0 %v2623
    %v2780 = vpop.f32.mrb[0].mxu0
    %v2781 = vadd.f32 %v2648, %v2780
    %v2782 = vpop.f32.mrb[0].mxu0
    %v2783 = vpop.f32.mrb[0].mxu0
    %v2784 = vadd.f32 %v2648, %v2783
    %v2785 = vpop.f32.mrb[0].mxu0
    %2786 = vmatprep.mubr.bf16.mxu0 0
    %2787 = vmatmul.mubr.bf16.gmra.mrb[0].mxu0 %v2624
    %v2788 = vpop.f32.mrb[0].mxu0
    %v2789 = vadd.f32 %v2648, %v2788
    %v2790 = vpop.f32.mrb[0].mxu0
    %v2791 = vpop.f32.mrb[0].mxu0
    %v2792 = vadd.f32 %v2648, %v2791
    %v2793 = vpop.f32.mrb[0].mxu0
    %2794 = vdwg.mxu0
    %v2795 = vmax.f32 %v2733, 0.0
    %v2796 = vmax.f32 %v2736, 0.0
    %v2797 = vmax.f32 %v2741, 0.0
    %v2798 = vmax.f32 %v2744, 0.0
    %v2799 = vmax.f32 %v2749, 0.0
    %v2800 = vmax.f32 %v2752, 0.0
    %v2801 = vmax.f32 %v2757, 0.0
    %v2802 = vmax.f32 %v2760, 0.0
    %v2803 = vmax.f32 %v2765, 0.0
    %v2804 = vmax.f32 %v2768, 0.0
    %v2805 = vmax.f32 %v2773, 0.0
    %v2806 = vmax.f32 %v2776, 0.0
    %v2807 = vmax.f32 %v2781, 0.0
    %v2808 = vmax.f32 %v2784, 0.0
    %v2809 = vmax.f32 %v2789, 0.0
    %v2810 = vmax.f32 %v2792, 0.0
    %s2811 = scalar_lea.vmem [#allocation8], 384
    %v2812 = vld [vmem:[%s2811] sm:$0xf]
    %v2813 = vld [vmem:[%s2811 + $0x4] sm:$0xf]
    %v2814 = vld [vmem:[%s2811 + $0x8] sm:$0xf]
    %v2815 = vld [vmem:[%s2811 + $0xc] sm:$0xf]
    %v2816 = vld [vmem:[%s2811 + $0x10] sm:$0xf]
    %v2817 = vld [vmem:[%s2811 + $0x14] sm:$0xf]
    %v2818 = vld [vmem:[%s2811 + $0x18] sm:$0xf]
    %v2819 = vld [vmem:[%s2811 + $0x1c] sm:$0xf]
    %v2820 = vld [vmem:[%s2811 + $0x20] sm:$0xf]
    %v2821 = vld [vmem:[%s2811 + $0x24] sm:$0xf]
    %v2822 = vld [vmem:[%s2811 + $0x28] sm:$0xf]
    %v2823 = vld [vmem:[%s2811 + $0x2c] sm:$0xf]
    %v2824 = vld [vmem:[%s2811 + $0x30] sm:$0xf]
    %v2825 = vld [vmem:[%s2811 + $0x34] sm:$0xf]
    %v2826 = vld [vmem:[%s2811 + $0x38] sm:$0xf]
    %v2827 = vld [vmem:[%s2811 + $0x3c] sm:$0xf]
    %v2828 = vld [vmem:[%s2811 + $0x40] sm:$0xf]
    %v2829 = vld [vmem:[%s2811 + $0x44] sm:$0xf]
    %v2830 = vld [vmem:[%s2811 + $0x48] sm:$0xf]
    %v2831 = vld [vmem:[%s2811 + $0x4c] sm:$0xf]
    %v2832 = vld [vmem:[%s2811 + $0x50] sm:$0xf]
    %v2833 = vld [vmem:[%s2811 + $0x54] sm:$0xf]
    %v2834 = vld [vmem:[%s2811 + $0x58] sm:$0xf]
    %v2835 = vld [vmem:[%s2811 + $0x5c] sm:$0xf]
    %v2836 = vld [vmem:[%s2811 + $0x60] sm:$0xf]
    %v2837 = vld [vmem:[%s2811 + $0x64] sm:$0xf]
    %v2838 = vld [vmem:[%s2811 + $0x68] sm:$0xf]
    %v2839 = vld [vmem:[%s2811 + $0x6c] sm:$0xf]
    %v2840 = vld [vmem:[%s2811 + $0x70] sm:$0xf]
    %v2841 = vld [vmem:[%s2811 + $0x74] sm:$0xf]
    %v2842 = vld [vmem:[%s2811 + $0x78] sm:$0xf]
    %v2843 = vld [vmem:[%s2811 + $0x7c] sm:$0xf]
    %v2844 = vunpack.c.l.bf16 %v2812
    %v2845 = vunpack.c.l.bf16 %v2813
    %v2846 = vunpack.c.l.bf16 %v2814
    %v2847 = vunpack.c.l.bf16 %v2815
    %v2848 = vunpack.c.l.bf16 %v2816
    %v2849 = vunpack.c.l.bf16 %v2817
    %v2850 = vunpack.c.l.bf16 %v2818
    %v2851 = vunpack.c.l.bf16 %v2819
    %v2852 = vunpack.c.l.bf16 %v2820
    %v2853 = vunpack.c.l.bf16 %v2821
    %v2854 = vunpack.c.l.bf16 %v2822
    %v2855 = vunpack.c.l.bf16 %v2823
    %v2856 = vunpack.c.l.bf16 %v2824
    %v2857 = vunpack.c.l.bf16 %v2825
    %v2858 = vunpack.c.l.bf16 %v2826
    %v2859 = vunpack.c.l.bf16 %v2827
    %v2860 = vunpack.c.l.bf16 %v2828
    %v2861 = vunpack.c.l.bf16 %v2829
    %v2862 = vunpack.c.l.bf16 %v2830
    %v2863 = vunpack.c.l.bf16 %v2831
    %v2864 = vunpack.c.l.bf16 %v2832
    %v2865 = vunpack.c.l.bf16 %v2833
    %v2866 = vunpack.c.l.bf16 %v2834
    %v2867 = vunpack.c.l.bf16 %v2835
    %v2868 = vunpack.c.l.bf16 %v2836
    %v2869 = vunpack.c.l.bf16 %v2837
    %v2870 = vunpack.c.l.bf16 %v2838
    %v2871 = vunpack.c.l.bf16 %v2839
    %v2872 = vunpack.c.l.bf16 %v2840
    %v2873 = vunpack.c.l.bf16 %v2841
    %v2874 = vunpack.c.l.bf16 %v2842
    %v2875 = vunpack.c.l.bf16 %v2843
    %v2876 = vpack.c.bf16 %v2796, %v2795
    %v2877 = vpack.c.bf16 %v2798, %v2797
    %v2878 = vpack.c.bf16 %v2800, %v2799
    %v2879 = vpack.c.bf16 %v2802, %v2801
    %v2880 = vpack.c.bf16 %v2804, %v2803
    %v2881 = vpack.c.bf16 %v2806, %v2805
    %v2882 = vpack.c.bf16 %v2808, %v2807
    %v2883 = vpack.c.bf16 %v2810, %v2809
    %2884 = vmatprep.subr.bf16.mxu0 0
    %2885 = vmatpush1.bf16.msra.mxu0 %v2876
    %2886 = vmatprep.subr.bf16.mxu0 0
    %2887 = vmatpush1.bf16.msra.mxu0 %v2877
    %2888 = vmatprep.subr.bf16.mxu0 0
    %2889 = vmatpush1.bf16.msra.mxu0 %v2878
    %2890 = vmatprep.subr.bf16.mxu0 0
    %2891 = vmatpush1.bf16.msra.mxu0 %v2879
    %2892 = vmatprep.subr.bf16.mxu0 0
    %2893 = vmatpush1.bf16.msra.mxu0 %v2880
    %2894 = vmatprep.subr.bf16.mxu0 0
    %2895 = vmatpush1.bf16.msra.mxu0 %v2881
    %2896 = vmatprep.subr.bf16.mxu0 0
    %2897 = vmatpush1.bf16.msra.mxu0 %v2882
    %2898 = vmatprep.subr.bf16.mxu0 0
    %2899 = vmatpush1.bf16.msra.mxu0 %v2883
    %2900 = vmatprep.subr.bf16.mxu0 0
    %2901 = vmatpush1.bf16.msra.mxu0 0
    %2902 = vmatprep.subr.bf16.mxu0 0
    %2903 = vmatpush1.bf16.msra.mxu0 0
    %2904 = vmatprep.subr.bf16.mxu0 0
    %2905 = vmatpush1.bf16.msra.mxu0 0
    %2906 = vmatprep.subr.bf16.mxu0 0
    %2907 = vmatpush1.bf16.msra.mxu0 0
    %2908 = vmatprep.subr.bf16.mxu0 0
    %2909 = vmatpush1.bf16.msra.mxu0 0
    %2910 = vmatprep.subr.bf16.mxu0 0
    %2911 = vmatpush1.bf16.msra.mxu0 0
    %2912 = vmatprep.subr.bf16.mxu0 0
    %2913 = vmatpush1.bf16.msra.mxu0 0
    %2914 = vmatprep.subr.bf16.mxu0 0
    %2915 = vmatpush1.bf16.msra.mxu0 0
    %2916 = vmatprep.mubr.bf16.mxu0 0
    %2917 = vmatmul.mubr.bf16.gmra.mrb[0].mxu0 %v379
    %v2918 = vpop.f32.mrb[0].mxu0
    %v2919 = vadd.f32 %v2844, %v2918
    %v2920 = vpop.f32.mrb[0].mxu0
    %v2921 = vpop.f32.mrb[0].mxu0
    %v2922 = vadd.f32 %v2845, %v2921
    %v2923 = vpop.f32.mrb[0].mxu0
    %2924 = vmatprep.mubr.bf16.mxu0 0
    %2925 = vmatmul.mubr.bf16.gmra.mrb[0].mxu0 %v380
    %v2926 = vpop.f32.mrb[0].mxu0
    %v2927 = vadd.f32 %v2846, %v2926
    %v2928 = vpop.f32.mrb[0].mxu0
    %v2929 = vpop.f32.mrb[0].mxu0
    %v2930 = vadd.f32 %v2847, %v2929
    %v2931 = vpop.f32.mrb[0].mxu0
    %2932 = vmatprep.mubr.bf16.mxu0 0
    %2933 = vmatmul.mubr.bf16.gmra.mrb[0].mxu0 %v381
    %v2934 = vpop.f32.mrb[0].mxu0
    %v2935 = vadd.f32 %v2848, %v2934
    %v2936 = vpop.f32.mrb[0].mxu0
    %v2937 = vpop.f32.mrb[0].mxu0
    %v2938 = vadd.f32 %v2849, %v2937
    %v2939 = vpop.f32.mrb[0].mxu0
    %2940 = vmatprep.mubr.bf16.mxu0 0
    %2941 = vmatmul.mubr.bf16.gmra.mrb[0].mxu0 %v382
    %v2942 = vpop.f32.mrb[0].mxu0
    %v2943 = vadd.f32 %v2850, %v2942
    %v2944 = vpop.f32.mrb[0].mxu0
    %v2945 = vpop.f32.mrb[0].mxu0
    %v2946 = vadd.f32 %v2851, %v2945
    %v2947 = vpop.f32.mrb[0].mxu0
    %2948 = vmatprep.mubr.bf16.mxu0 0
    %2949 = vmatmul.mubr.bf16.gmra.mrb[0].mxu0 %v383
    %v2950 = vpop.f32.mrb[0].mxu0
    %v2951 = vadd.f32 %v2852, %v2950
    %v2952 = vpop.f32.mrb[0].mxu0
    %v2953 = vpop.f32.mrb[0].mxu0
    %v2954 = vadd.f32 %v2853, %v2953
    %v2955 = vpop.f32.mrb[0].mxu0
    %2956 = vmatprep.mubr.bf16.mxu0 0
    %2957 = vmatmul.mubr.bf16.gmra.mrb[0].mxu0 %v384
    %v2958 = vpop.f32.mrb[0].mxu0
    %v2959 = vadd.f32 %v2854, %v2958
    %v2960 = vpop.f32.mrb[0].mxu0
    %v2961 = vpop.f32.mrb[0].mxu0
    %v2962 = vadd.f32 %v2855, %v2961
    %v2963 = vpop.f32.mrb[0].mxu0
    %2964 = vmatprep.mubr.bf16.mxu0 0
    %2965 = vmatmul.mubr.bf16.gmra.mrb[0].mxu0 %v385
    %v2966 = vpop.f32.mrb[0].mxu0
    %v2967 = vadd.f32 %v2856, %v2966
    %v2968 = vpop.f32.mrb[0].mxu0
    %v2969 = vpop.f32.mrb[0].mxu0
    %v2970 = vadd.f32 %v2857, %v2969
    %v2971 = vpop.f32.mrb[0].mxu0
    %2972 = vmatprep.mubr.bf16.mxu0 0
    %2973 = vmatmul.mubr.bf16.gmra.mrb[0].mxu0 %v386
    %v2974 = vpop.f32.mrb[0].mxu0
    %v2975 = vadd.f32 %v2858, %v2974
    %v2976 = vpop.f32.mrb[0].mxu0
    %v2977 = vpop.f32.mrb[0].mxu0
    %v2978 = vadd.f32 %v2859, %v2977
    %v2979 = vpop.f32.mrb[0].mxu0
    %2980 = vmatprep.mubr.bf16.mxu0 0
    %2981 = vmatmul.mubr.bf16.gmra.mrb[0].mxu0 %v387
    %v2982 = vpop.f32.mrb[0].mxu0
    %v2983 = vadd.f32 %v2860, %v2982
    %v2984 = vpop.f32.mrb[0].mxu0
    %v2985 = vpop.f32.mrb[0].mxu0
    %v2986 = vadd.f32 %v2861, %v2985
    %v2987 = vpop.f32.mrb[0].mxu0
    %2988 = vmatprep.mubr.bf16.mxu0 0
    %2989 = vmatmul.mubr.bf16.gmra.mrb[0].mxu0 %v388
    %v2990 = vpop.f32.mrb[0].mxu0
    %v2991 = vadd.f32 %v2862, %v2990
    %v2992 = vpop.f32.mrb[0].mxu0
    %v2993 = vpop.f32.mrb[0].mxu0
    %v2994 = vadd.f32 %v2863, %v2993
    %v2995 = vpop.f32.mrb[0].mxu0
    %2996 = vmatprep.mubr.bf16.mxu0 0
    %2997 = vmatmul.mubr.bf16.gmra.mrb[0].mxu0 %v389
    %v2998 = vpop.f32.mrb[0].mxu0
    %v2999 = vadd.f32 %v2864, %v2998
    %v3000 = vpop.f32.mrb[0].mxu0
    %v3001 = vpop.f32.mrb[0].mxu0
    %v3002 = vadd.f32 %v2865, %v3001
    %v3003 = vpop.f32.mrb[0].mxu0
    %3004 = vmatprep.mubr.bf16.mxu0 0
    %3005 = vmatmul.mubr.bf16.gmra.mrb[0].mxu0 %v390
    %v3006 = vpop.f32.mrb[0].mxu0
    %v3007 = vadd.f32 %v2866, %v3006
    %v3008 = vpop.f32.mrb[0].mxu0
    %v3009 = vpop.f32.mrb[0].mxu0
    %v3010 = vadd.f32 %v2867, %v3009
    %v3011 = vpop.f32.mrb[0].mxu0
    %3012 = vmatprep.mubr.bf16.mxu0 0
    %3013 = vmatmul.mubr.bf16.gmra.mrb[0].mxu0 %v391
    %v3014 = vpop.f32.mrb[0].mxu0
    %v3015 = vadd.f32 %v2868, %v3014
    %v3016 = vpop.f32.mrb[0].mxu0
    %v3017 = vpop.f32.mrb[0].mxu0
    %v3018 = vadd.f32 %v2869, %v3017
    %v3019 = vpop.f32.mrb[0].mxu0
    %3020 = vmatprep.mubr.bf16.mxu0 0
    %3021 = vmatmul.mubr.bf16.gmra.mrb[0].mxu0 %v392
    %v3022 = vpop.f32.mrb[0].mxu0
    %v3023 = vadd.f32 %v2870, %v3022
    %v3024 = vpop.f32.mrb[0].mxu0
    %v3025 = vpop.f32.mrb[0].mxu0
    %v3026 = vadd.f32 %v2871, %v3025
    %v3027 = vpop.f32.mrb[0].mxu0
    %3028 = vmatprep.mubr.bf16.mxu0 0
    %3029 = vmatmul.mubr.bf16.gmra.mrb[0].mxu0 %v393
    %v3030 = vpop.f32.mrb[0].mxu0
    %v3031 = vadd.f32 %v2872, %v3030
    %v3032 = vpop.f32.mrb[0].mxu0
    %v3033 = vpop.f32.mrb[0].mxu0
    %v3034 = vadd.f32 %v2873, %v3033
    %v3035 = vpop.f32.mrb[0].mxu0
    %3036 = vmatprep.mubr.bf16.mxu0 0
    %3037 = vmatmul.mubr.bf16.gmra.mrb[0].mxu0 %v394
    %v3038 = vpop.f32.mrb[0].mxu0
    %v3039 = vadd.f32 %v2874, %v3038
    %v3040 = vpop.f32.mrb[0].mxu0
    %v3041 = vpop.f32.mrb[0].mxu0
    %v3042 = vadd.f32 %v2875, %v3041
    %v3043 = vpop.f32.mrb[0].mxu0
    %3044 = vdwg.mxu0
    %v3045 = vmax.f32 %v2919, 0.0
    %v3046 = vmax.f32 %v2922, 0.0
    %v3047 = vmax.f32 %v2927, 0.0
    %v3048 = vmax.f32 %v2930, 0.0
    %v3049 = vmax.f32 %v2935, 0.0
    %v3050 = vmax.f32 %v2938, 0.0
    %v3051 = vmax.f32 %v2943, 0.0
    %v3052 = vmax.f32 %v2946, 0.0
    %v3053 = vmax.f32 %v2951, 0.0
    %v3054 = vmax.f32 %v2954, 0.0
    %v3055 = vmax.f32 %v2959, 0.0
    %v3056 = vmax.f32 %v2962, 0.0
    %v3057 = vmax.f32 %v2967, 0.0
    %v3058 = vmax.f32 %v2970, 0.0
    %v3059 = vmax.f32 %v2975, 0.0
    %v3060 = vmax.f32 %v2978, 0.0
    %v3061 = vmax.f32 %v2983, 0.0
    %v3062 = vmax.f32 %v2986, 0.0
    %v3063 = vmax.f32 %v2991, 0.0
    %v3064 = vmax.f32 %v2994, 0.0
    %v3065 = vmax.f32 %v2999, 0.0
    %v3066 = vmax.f32 %v3002, 0.0
    %v3067 = vmax.f32 %v3007, 0.0
    %v3068 = vmax.f32 %v3010, 0.0
    %v3069 = vmax.f32 %v3015, 0.0
    %v3070 = vmax.f32 %v3018, 0.0
    %v3071 = vmax.f32 %v3023, 0.0
    %v3072 = vmax.f32 %v3026, 0.0
    %v3073 = vmax.f32 %v3031, 0.0
    %v3074 = vmax.f32 %v3034, 0.0
    %v3075 = vmax.f32 %v3039, 0.0
    %v3076 = vmax.f32 %v3042, 0.0
    %v3077 = vpack.c.bf16 %v3046, %v3045
    %v3078 = vpack.c.bf16 %v3048, %v3047
    %v3079 = vpack.c.bf16 %v3050, %v3049
    %v3080 = vpack.c.bf16 %v3052, %v3051
    %v3081 = vpack.c.bf16 %v3054, %v3053
    %v3082 = vpack.c.bf16 %v3056, %v3055
    %v3083 = vpack.c.bf16 %v3058, %v3057
    %v3084 = vpack.c.bf16 %v3060, %v3059
    %v3085 = vpack.c.bf16 %v3062, %v3061
    %v3086 = vpack.c.bf16 %v3064, %v3063
    %v3087 = vpack.c.bf16 %v3066, %v3065
    %v3088 = vpack.c.bf16 %v3068, %v3067
    %v3089 = vpack.c.bf16 %v3070, %v3069
    %v3090 = vpack.c.bf16 %v3072, %v3071
    %v3091 = vpack.c.bf16 %v3074, %v3073
    %v3092 = vpack.c.bf16 %v3076, %v3075
    %3093 = vmatprep.subr.bf16.mxu0 0
    %3094 = vmatpush1.bf16.msra.mxu0 %v3077
    %3095 = vmatprep.subr.bf16.mxu0 0
    %3096 = vmatpush1.bf16.msra.mxu0 %v3078
    %3097 = vmatprep.subr.bf16.mxu0 0
    %3098 = vmatpush1.bf16.msra.mxu0 %v3079
    %3099 = vmatprep.subr.bf16.mxu0 0
    %3100 = vmatpush1.bf16.msra.mxu0 %v3080
    %3101 = vmatprep.subr.bf16.mxu0 0
    %3102 = vmatpush1.bf16.msra.mxu0 %v3081
    %3103 = vmatprep.subr.bf16.mxu0 0
    %3104 = vmatpush1.bf16.msra.mxu0 %v3082
    %3105 = vmatprep.subr.bf16.mxu0 0
    %3106 = vmatpush1.bf16.msra.mxu0 %v3083
    %3107 = vmatprep.subr.bf16.mxu0 0
    %3108 = vmatpush1.bf16.msra.mxu0 %v3084
    %3109 = vmatprep.subr.bf16.mxu0 0
    %3110 = vmatpush1.bf16.msra.mxu0 %v3085
    %3111 = vmatprep.subr.bf16.mxu0 0
    %3112 = vmatpush1.bf16.msra.mxu0 %v3086
    %3113 = vmatprep.subr.bf16.mxu0 0
    %3114 = vmatpush1.bf16.msra.mxu0 %v3087
    %3115 = vmatprep.subr.bf16.mxu0 0
    %3116 = vmatpush1.bf16.msra.mxu0 %v3088
    %3117 = vmatprep.subr.bf16.mxu0 0
    %3118 = vmatpush1.bf16.msra.mxu0 %v3089
    %3119 = vmatprep.subr.bf16.mxu0 0
    %3120 = vmatpush1.bf16.msra.mxu0 %v3090
    %3121 = vmatprep.subr.bf16.mxu0 0
    %3122 = vmatpush1.bf16.msra.mxu0 %v3091
    %3123 = vmatprep.subr.bf16.mxu0 0
    %3124 = vmatpush1.bf16.msra.mxu0 %v3092
    %3125 = vmatprep.mubr.bf16.mxu0 %v717
    %3126 = vmatmul.mubr.bf16.gmra.mrb[0].mxu0 %v716
    %v3127 = vpop.f32.mrb[0].mxu0
    %v3128 = vadd.f32 0.0, %v3127
    %v3129 = vpop.f32.mrb[0].mxu0
    %v3130 = vpop.f32.mrb[0].mxu0
    %v3131 = vadd.f32 0.0, %v3130
    %v3132 = vpop.f32.mrb[0].mxu0
    %3133 = vmatprep.mubr.bf16.mxu0 %v719
    %3134 = vmatmul.mubr.bf16.gmra.mrb[0].mxu0 %v718
    %v3135 = vpop.f32.mrb[0].mxu0
    %v3136 = vadd.f32 0.0, %v3135
    %v3137 = vpop.f32.mrb[0].mxu0
    %v3138 = vpop.f32.mrb[0].mxu0
    %v3139 = vadd.f32 0.0, %v3138
    %v3140 = vpop.f32.mrb[0].mxu0
    %3141 = vmatprep.mubr.bf16.mxu0 %v721
    %3142 = vmatmul.mubr.bf16.gmra.mrb[0].mxu0 %v720
    %v3143 = vpop.f32.mrb[0].mxu0
    %v3144 = vadd.f32 0.0, %v3143
    %v3145 = vpop.f32.mrb[0].mxu0
    %v3146 = vpop.f32.mrb[0].mxu0
    %v3147 = vadd.f32 0.0, %v3146
    %v3148 = vpop.f32.mrb[0].mxu0
    %3149 = vmatprep.mubr.bf16.mxu0 %v723
    %3150 = vmatmul.mubr.bf16.gmra.mrb[0].mxu0 %v722
    %v3151 = vpop.f32.mrb[0].mxu0
    %v3152 = vadd.f32 0.0, %v3151
    %v3153 = vpop.f32.mrb[0].mxu0
    %v3154 = vpop.f32.mrb[0].mxu0
    %v3155 = vadd.f32 0.0, %v3154
    %v3156 = vpop.f32.mrb[0].mxu0
    %3157 = vmatprep.mubr.bf16.mxu0 %v725
    %3158 = vmatmul.mubr.bf16.gmra.mrb[0].mxu0 %v724
    %v3159 = vpop.f32.mrb[0].mxu0
    %v3160 = vadd.f32 0.0, %v3159
    %v3161 = vpop.f32.mrb[0].mxu0
    %v3162 = vpop.f32.mrb[0].mxu0
    %v3163 = vadd.f32 0.0, %v3162
    %v3164 = vpop.f32.mrb[0].mxu0
    %3165 = vmatprep.mubr.bf16.mxu0 %v727
    %3166 = vmatmul.mubr.bf16.gmra.mrb[0].mxu0 %v726
    %v3167 = vpop.f32.mrb[0].mxu0
    %v3168 = vadd.f32 0.0, %v3167
    %v3169 = vpop.f32.mrb[0].mxu0
    %v3170 = vpop.f32.mrb[0].mxu0
    %v3171 = vadd.f32 0.0, %v3170
    %v3172 = vpop.f32.mrb[0].mxu0
    %3173 = vmatprep.mubr.bf16.mxu0 %v729
    %3174 = vmatmul.mubr.bf16.gmra.mrb[0].mxu0 %v728
    %v3175 = vpop.f32.mrb[0].mxu0
    %v3176 = vadd.f32 0.0, %v3175
    %v3177 = vpop.f32.mrb[0].mxu0
    %v3178 = vpop.f32.mrb[0].mxu0
    %v3179 = vadd.f32 0.0, %v3178
    %v3180 = vpop.f32.mrb[0].mxu0
    %3181 = vmatprep.mubr.bf16.mxu0 %v731
    %3182 = vmatmul.mubr.bf16.gmra.mrb[0].mxu0 %v730
    %v3183 = vpop.f32.mrb[0].mxu0
    %v3184 = vadd.f32 0.0, %v3183
    %v3185 = vpop.f32.mrb[0].mxu0
    %v3186 = vpop.f32.mrb[0].mxu0
    %v3187 = vadd.f32 0.0, %v3186
    %v3188 = vpop.f32.mrb[0].mxu0
    %3189 = vdwg.mxu0
    %v3190 = vadd.f32 %v2795, %v3128
    %v3191 = vadd.f32 %v2796, %v3131
    %v3192 = vadd.f32 %v2797, %v3136
    %v3193 = vadd.f32 %v2798, %v3139
    %v3194 = vadd.f32 %v2799, %v3144
    %v3195 = vadd.f32 %v2800, %v3147
    %v3196 = vadd.f32 %v2801, %v3152
    %v3197 = vadd.f32 %v2802, %v3155
    %v3198 = vadd.f32 %v2803, %v3160
    %v3199 = vadd.f32 %v2804, %v3163
    %v3200 = vadd.f32 %v2805, %v3168
    %v3201 = vadd.f32 %v2806, %v3171
    %v3202 = vadd.f32 %v2807, %v3176
    %v3203 = vadd.f32 %v2808, %v3179
    %v3204 = vadd.f32 %v2809, %v3184
    %v3205 = vadd.f32 %v2810, %v3187
    %v3206 = vpack.c.bf16 %v3191, %v3190
    %v3207 = vpack.c.bf16 %v3193, %v3192
    %v3208 = vpack.c.bf16 %v3195, %v3194
    %v3209 = vpack.c.bf16 %v3197, %v3196
    %v3210 = vpack.c.bf16 %v3199, %v3198
    %v3211 = vpack.c.bf16 %v3201, %v3200
    %v3212 = vpack.c.bf16 %v3203, %v3202
    %v3213 = vpack.c.bf16 %v3205, %v3204
    %s3214 = scalar_lea.vmem [#allocation10], 192
    %v3215 = vld [vmem:[%s3214] sm:$0xf]
    %v3216 = vld [vmem:[%s3214 + $0x4] sm:$0xf]
    %v3217 = vld [vmem:[%s3214 + $0x8] sm:$0xf]
    %v3218 = vld [vmem:[%s3214 + $0xc] sm:$0xf]
    %v3219 = vld [vmem:[%s3214 + $0x10] sm:$0xf]
    %v3220 = vld [vmem:[%s3214 + $0x14] sm:$0xf]
    %v3221 = vld [vmem:[%s3214 + $0x18] sm:$0xf]
    %v3222 = vld [vmem:[%s3214 + $0x1c] sm:$0xf]
    %v3223 = vld [vmem:[%s3214 + $0x20] sm:$0xf]
    %v3224 = vld [vmem:[%s3214 + $0x24] sm:$0xf]
    %v3225 = vld [vmem:[%s3214 + $0x28] sm:$0xf]
    %v3226 = vld [vmem:[%s3214 + $0x2c] sm:$0xf]
    %v3227 = vld [vmem:[%s3214 + $0x30] sm:$0xf]
    %v3228 = vld [vmem:[%s3214 + $0x34] sm:$0xf]
    %v3229 = vld [vmem:[%s3214 + $0x38] sm:$0xf]
    %v3230 = vld [vmem:[%s3214 + $0x3c] sm:$0xf]
    %s3231 = scalar_lea.vmem %s5, 3
    %v3232 = vld [vmem:[%s3231] sm:$0x1]
    %v3234 = vlaneseq
    %v3235 = vshrl.u32 %v3234, 7
    %v3236 = vsub.s32 0, %v3235
    %v3237 = vrot.slane %v3232, %v3236
    %v3255 = vunpack.c.l.b16 %v3215
    %v3256 = vunpack.c.l.b16 %v3216
    %v3257 = vunpack.c.l.b16 %v3217
    %v3258 = vunpack.c.l.b16 %v3218
    %v3259 = vunpack.c.l.b16 %v3219
    %v3260 = vunpack.c.l.b16 %v3220
    %v3261 = vunpack.c.l.b16 %v3221
    %v3262 = vunpack.c.l.b16 %v3222
    %v3263 = vunpack.c.l.b16 %v3223
    %v3264 = vunpack.c.l.b16 %v3224
    %v3265 = vunpack.c.l.b16 %v3225
    %v3266 = vunpack.c.l.b16 %v3226
    %v3267 = vunpack.c.l.b16 %v3227
    %v3268 = vunpack.c.l.b16 %v3228
    %v3269 = vunpack.c.l.b16 %v3229
    %v3270 = vunpack.c.l.b16 %v3230
    %v3271 = vpack.c.b16 %v3256, %v3255
    %v3272 = vpack.c.b16 %v3258, %v3257
    %v3273 = vpack.c.b16 %v3260, %v3259
    %v3274 = vpack.c.b16 %v3262, %v3261
    %v3275 = vpack.c.b16 %v3264, %v3263
    %v3276 = vpack.c.b16 %v3266, %v3265
    %v3277 = vpack.c.b16 %v3268, %v3267
    %v3278 = vpack.c.b16 %v3270, %v3269
    %3287 = vmatprep.subr.bf16.mxu0 0
    %3288 = vmatpush1.bf16.msra.mxu0 %v3271
    %3289 = vmatprep.subr.bf16.mxu0 0
    %3290 = vmatpush1.bf16.msra.mxu0 %v3272
    %3291 = vmatprep.subr.bf16.mxu0 0
    %3292 = vmatpush1.bf16.msra.mxu0 %v3273
    %3293 = vmatprep.subr.bf16.mxu0 0
    %3294 = vmatpush1.bf16.msra.mxu0 %v3274
    %3295 = vmatprep.subr.bf16.mxu0 0
    %3296 = vmatpush1.bf16.msra.mxu0 %v3275
    %3297 = vmatprep.subr.bf16.mxu0 0
    %3298 = vmatpush1.bf16.msra.mxu0 %v3276
    %3299 = vmatprep.subr.bf16.mxu0 0
    %3300 = vmatpush1.bf16.msra.mxu0 %v3277
    %3301 = vmatprep.subr.bf16.mxu0 0
    %3302 = vmatpush1.bf16.msra.mxu0 %v3278
    %3303 = vmatprep.subr.bf16.mxu0 0
    %3304 = vmatpush1.bf16.msra.mxu0 0
    %3305 = vmatprep.subr.bf16.mxu0 0
    %3306 = vmatpush1.bf16.msra.mxu0 0
    %3307 = vmatprep.subr.bf16.mxu0 0
    %3308 = vmatpush1.bf16.msra.mxu0 0
    %3309 = vmatprep.subr.bf16.mxu0 0
    %3310 = vmatpush1.bf16.msra.mxu0 0
    %3311 = vmatprep.subr.bf16.mxu0 0
    %3312 = vmatpush1.bf16.msra.mxu0 0
    %3313 = vmatprep.subr.bf16.mxu0 0
    %3314 = vmatpush1.bf16.msra.mxu0 0
    %3315 = vmatprep.subr.bf16.mxu0 0
    %3316 = vmatpush1.bf16.msra.mxu0 0
    %3317 = vmatprep.subr.bf16.mxu0 0
    %3318 = vmatpush1.bf16.msra.mxu0 0
    %3319 = vmatprep.mubr.bf16.mxu0 0
    %3320 = vmatmul.mubr.bf16.gmra.mrb[0].mxu0 %v3206
    %v3321 = vpop.f32.mrb[0].mxu0
    %v3322 = vadd.f32 %v3237, %v3321
    %v3323 = vpop.f32.mrb[0].mxu0
    %v3324 = vpop.f32.mrb[0].mxu0
    %v3325 = vadd.f32 %v3237, %v3324
    %v3326 = vpop.f32.mrb[0].mxu0
    %3327 = vmatprep.mubr.bf16.mxu0 0
    %3328 = vmatmul.mubr.bf16.gmra.mrb[0].mxu0 %v3207
    %v3329 = vpop.f32.mrb[0].mxu0
    %v3330 = vadd.f32 %v3237, %v3329
    %v3331 = vpop.f32.mrb[0].mxu0
    %v3332 = vpop.f32.mrb[0].mxu0
    %v3333 = vadd.f32 %v3237, %v3332
    %v3334 = vpop.f32.mrb[0].mxu0
    %3335 = vmatprep.mubr.bf16.mxu0 0
    %3336 = vmatmul.mubr.bf16.gmra.mrb[0].mxu0 %v3208
    %v3337 = vpop.f32.mrb[0].mxu0
    %v3338 = vadd.f32 %v3237, %v3337
    %v3339 = vpop.f32.mrb[0].mxu0
    %v3340 = vpop.f32.mrb[0].mxu0
    %v3341 = vadd.f32 %v3237, %v3340
    %v3342 = vpop.f32.mrb[0].mxu0
    %3343 = vmatprep.mubr.bf16.mxu0 0
    %3344 = vmatmul.mubr.bf16.gmra.mrb[0].mxu0 %v3209
    %v3345 = vpop.f32.mrb[0].mxu0
    %v3346 = vadd.f32 %v3237, %v3345
    %v3347 = vpop.f32.mrb[0].mxu0
    %v3348 = vpop.f32.mrb[0].mxu0
    %v3349 = vadd.f32 %v3237, %v3348
    %v3350 = vpop.f32.mrb[0].mxu0
    %3351 = vmatprep.mubr.bf16.mxu0 0
    %3352 = vmatmul.mubr.bf16.gmra.mrb[0].mxu0 %v3210
    %v3353 = vpop.f32.mrb[0].mxu0
    %v3354 = vadd.f32 %v3237, %v3353
    %v3355 = vpop.f32.mrb[0].mxu0
    %v3356 = vpop.f32.mrb[0].mxu0
    %v3357 = vadd.f32 %v3237, %v3356
    %v3358 = vpop.f32.mrb[0].mxu0
    %3359 = vmatprep.mubr.bf16.mxu0 0
    %3360 = vmatmul.mubr.bf16.gmra.mrb[0].mxu0 %v3211
    %v3361 = vpop.f32.mrb[0].mxu0
    %v3362 = vadd.f32 %v3237, %v3361
    %v3363 = vpop.f32.mrb[0].mxu0
    %v3364 = vpop.f32.mrb[0].mxu0
    %v3365 = vadd.f32 %v3237, %v3364
    %v3366 = vpop.f32.mrb[0].mxu0
    %3367 = vmatprep.mubr.bf16.mxu0 0
    %3368 = vmatmul.mubr.bf16.gmra.mrb[0].mxu0 %v3212
    %v3369 = vpop.f32.mrb[0].mxu0
    %v3370 = vadd.f32 %v3237, %v3369
    %v3371 = vpop.f32.mrb[0].mxu0
    %v3372 = vpop.f32.mrb[0].mxu0
    %v3373 = vadd.f32 %v3237, %v3372
    %v3374 = vpop.f32.mrb[0].mxu0
    %3375 = vmatprep.mubr.bf16.mxu0 0
    %3376 = vmatmul.mubr.bf16.gmra.mrb[0].mxu0 %v3213
    %v3377 = vpop.f32.mrb[0].mxu0
    %v3378 = vadd.f32 %v3237, %v3377
    %v3379 = vpop.f32.mrb[0].mxu0
    %v3380 = vpop.f32.mrb[0].mxu0
    %v3381 = vadd.f32 %v3237, %v3380
    %v3382 = vpop.f32.mrb[0].mxu0
    %3383 = vdwg.mxu0
    %v3384 = vmax.f32 %v3322, 0.0
    %v3385 = vmax.f32 %v3325, 0.0
    %v3386 = vmax.f32 %v3330, 0.0
    %v3387 = vmax.f32 %v3333, 0.0
    %v3388 = vmax.f32 %v3338, 0.0
    %v3389 = vmax.f32 %v3341, 0.0
    %v3390 = vmax.f32 %v3346, 0.0
    %v3391 = vmax.f32 %v3349, 0.0
    %v3392 = vmax.f32 %v3354, 0.0
    %v3393 = vmax.f32 %v3357, 0.0
    %v3394 = vmax.f32 %v3362, 0.0
    %v3395 = vmax.f32 %v3365, 0.0
    %v3396 = vmax.f32 %v3370, 0.0
    %v3397 = vmax.f32 %v3373, 0.0
    %v3398 = vmax.f32 %v3378, 0.0
    %v3399 = vmax.f32 %v3381, 0.0
    %v3400 = vpack.c.bf16 %v3385, %v3384
    %v3401 = vpack.c.bf16 %v3387, %v3386
    %v3402 = vpack.c.bf16 %v3389, %v3388
    %v3403 = vpack.c.bf16 %v3391, %v3390
    %v3404 = vpack.c.bf16 %v3393, %v3392
    %v3405 = vpack.c.bf16 %v3395, %v3394
    %v3406 = vpack.c.bf16 %v3397, %v3396
    %v3407 = vpack.c.bf16 %v3399, %v3398
    %s3408 = scalar_lea.vmem [#allocation11], 192
    %v3409 = vld [vmem:[%s3408] sm:$0xf]
    %v3410 = vld [vmem:[%s3408 + $0x4] sm:$0xf]
    %v3411 = vld [vmem:[%s3408 + $0x8] sm:$0xf]
    %v3412 = vld [vmem:[%s3408 + $0xc] sm:$0xf]
    %v3413 = vld [vmem:[%s3408 + $0x10] sm:$0xf]
    %v3414 = vld [vmem:[%s3408 + $0x14] sm:$0xf]
    %v3415 = vld [vmem:[%s3408 + $0x18] sm:$0xf]
    %v3416 = vld [vmem:[%s3408 + $0x1c] sm:$0xf]
    %v3417 = vld [vmem:[%s3408 + $0x20] sm:$0xf]
    %v3418 = vld [vmem:[%s3408 + $0x24] sm:$0xf]
    %v3419 = vld [vmem:[%s3408 + $0x28] sm:$0xf]
    %v3420 = vld [vmem:[%s3408 + $0x2c] sm:$0xf]
    %v3421 = vld [vmem:[%s3408 + $0x30] sm:$0xf]
    %v3422 = vld [vmem:[%s3408 + $0x34] sm:$0xf]
    %v3423 = vld [vmem:[%s3408 + $0x38] sm:$0xf]
    %v3424 = vld [vmem:[%s3408 + $0x3c] sm:$0xf]
    %s3425 = scalar_lea.vmem %s7, 3
    %v3426 = vld [vmem:[%s3425] sm:$0x1]
    %v3428 = vlaneseq
    %v3429 = vshrl.u32 %v3428, 7
    %v3430 = vsub.s32 0, %v3429
    %v3431 = vrot.slane %v3426, %v3430
    %v3449 = vunpack.c.l.b16 %v3409
    %v3450 = vunpack.c.l.b16 %v3410
    %v3451 = vunpack.c.l.b16 %v3411
    %v3452 = vunpack.c.l.b16 %v3412
    %v3453 = vunpack.c.l.b16 %v3413
    %v3454 = vunpack.c.l.b16 %v3414
    %v3455 = vunpack.c.l.b16 %v3415
    %v3456 = vunpack.c.l.b16 %v3416
    %v3457 = vunpack.c.l.b16 %v3417
    %v3458 = vunpack.c.l.b16 %v3418
    %v3459 = vunpack.c.l.b16 %v3419
    %v3460 = vunpack.c.l.b16 %v3420
    %v3461 = vunpack.c.l.b16 %v3421
    %v3462 = vunpack.c.l.b16 %v3422
    %v3463 = vunpack.c.l.b16 %v3423
    %v3464 = vunpack.c.l.b16 %v3424
    %v3465 = vpack.c.b16 %v3450, %v3449
    %v3466 = vpack.c.b16 %v3452, %v3451
    %v3467 = vpack.c.b16 %v3454, %v3453
    %v3468 = vpack.c.b16 %v3456, %v3455
    %v3469 = vpack.c.b16 %v3458, %v3457
    %v3470 = vpack.c.b16 %v3460, %v3459
    %v3471 = vpack.c.b16 %v3462, %v3461
    %v3472 = vpack.c.b16 %v3464, %v3463
    %3481 = vmatprep.subr.bf16.mxu0 0
    %3482 = vmatpush1.bf16.msra.mxu0 %v3465
    %3483 = vmatprep.subr.bf16.mxu0 0
    %3484 = vmatpush1.bf16.msra.mxu0 %v3466
    %3485 = vmatprep.subr.bf16.mxu0 0
    %3486 = vmatpush1.bf16.msra.mxu0 %v3467
    %3487 = vmatprep.subr.bf16.mxu0 0
    %3488 = vmatpush1.bf16.msra.mxu0 %v3468
    %3489 = vmatprep.subr.bf16.mxu0 0
    %3490 = vmatpush1.bf16.msra.mxu0 %v3469
    %3491 = vmatprep.subr.bf16.mxu0 0
    %3492 = vmatpush1.bf16.msra.mxu0 %v3470
    %3493 = vmatprep.subr.bf16.mxu0 0
    %3494 = vmatpush1.bf16.msra.mxu0 %v3471
    %3495 = vmatprep.subr.bf16.mxu0 0
    %3496 = vmatpush1.bf16.msra.mxu0 %v3472
    %3497 = vmatprep.subr.bf16.mxu0 0
    %3498 = vmatpush1.bf16.msra.mxu0 0
    %3499 = vmatprep.subr.bf16.mxu0 0
    %3500 = vmatpush1.bf16.msra.mxu0 0
    %3501 = vmatprep.subr.bf16.mxu0 0
    %3502 = vmatpush1.bf16.msra.mxu0 0
    %3503 = vmatprep.subr.bf16.mxu0 0
    %3504 = vmatpush1.bf16.msra.mxu0 0
    %3505 = vmatprep.subr.bf16.mxu0 0
    %3506 = vmatpush1.bf16.msra.mxu0 0
    %3507 = vmatprep.subr.bf16.mxu0 0
    %3508 = vmatpush1.bf16.msra.mxu0 0
    %3509 = vmatprep.subr.bf16.mxu0 0
    %3510 = vmatpush1.bf16.msra.mxu0 0
    %3511 = vmatprep.subr.bf16.mxu0 0
    %3512 = vmatpush1.bf16.msra.mxu0 0
    %3513 = vmatprep.mubr.bf16.mxu0 0
    %3514 = vmatmul.mubr.bf16.gmra.mrb[0].mxu0 %v3400
    %v3515 = vpop.f32.mrb[0].mxu0
    %v3516 = vadd.f32 %v3431, %v3515
    %v3517 = vpop.f32.mrb[0].mxu0
    %v3518 = vpop.f32.mrb[0].mxu0
    %v3519 = vadd.f32 %v3431, %v3518
    %v3520 = vpop.f32.mrb[0].mxu0
    %3521 = vmatprep.mubr.bf16.mxu0 0
    %3522 = vmatmul.mubr.bf16.gmra.mrb[0].mxu0 %v3401
    %v3523 = vpop.f32.mrb[0].mxu0
    %v3524 = vadd.f32 %v3431, %v3523
    %v3525 = vpop.f32.mrb[0].mxu0
    %v3526 = vpop.f32.mrb[0].mxu0
    %v3527 = vadd.f32 %v3431, %v3526
    %v3528 = vpop.f32.mrb[0].mxu0
    %3529 = vmatprep.mubr.bf16.mxu0 0
    %3530 = vmatmul.mubr.bf16.gmra.mrb[0].mxu0 %v3402
    %v3531 = vpop.f32.mrb[0].mxu0
    %v3532 = vadd.f32 %v3431, %v3531
    %v3533 = vpop.f32.mrb[0].mxu0
    %v3534 = vpop.f32.mrb[0].mxu0
    %v3535 = vadd.f32 %v3431, %v3534
    %v3536 = vpop.f32.mrb[0].mxu0
    %3537 = vmatprep.mubr.bf16.mxu0 0
    %3538 = vmatmul.mubr.bf16.gmra.mrb[0].mxu0 %v3403
    %v3539 = vpop.f32.mrb[0].mxu0
    %v3540 = vadd.f32 %v3431, %v3539
    %v3541 = vpop.f32.mrb[0].mxu0
    %v3542 = vpop.f32.mrb[0].mxu0
    %v3543 = vadd.f32 %v3431, %v3542
    %v3544 = vpop.f32.mrb[0].mxu0
    %3545 = vmatprep.mubr.bf16.mxu0 0
    %3546 = vmatmul.mubr.bf16.gmra.mrb[0].mxu0 %v3404
    %v3547 = vpop.f32.mrb[0].mxu0
    %v3548 = vadd.f32 %v3431, %v3547
    %v3549 = vpop.f32.mrb[0].mxu0
    %v3550 = vpop.f32.mrb[0].mxu0
    %v3551 = vadd.f32 %v3431, %v3550
    %v3552 = vpop.f32.mrb[0].mxu0
    %3553 = vmatprep.mubr.bf16.mxu0 0
    %3554 = vmatmul.mubr.bf16.gmra.mrb[0].mxu0 %v3405
    %v3555 = vpop.f32.mrb[0].mxu0
    %v3556 = vadd.f32 %v3431, %v3555
    %v3557 = vpop.f32.mrb[0].mxu0
    %v3558 = vpop.f32.mrb[0].mxu0
    %v3559 = vadd.f32 %v3431, %v3558
    %v3560 = vpop.f32.mrb[0].mxu0
    %3561 = vmatprep.mubr.bf16.mxu0 0
    %3562 = vmatmul.mubr.bf16.gmra.mrb[0].mxu0 %v3406
    %v3563 = vpop.f32.mrb[0].mxu0
    %v3564 = vadd.f32 %v3431, %v3563
    %v3565 = vpop.f32.mrb[0].mxu0
    %v3566 = vpop.f32.mrb[0].mxu0
    %v3567 = vadd.f32 %v3431, %v3566
    %v3568 = vpop.f32.mrb[0].mxu0
    %3569 = vmatprep.mubr.bf16.mxu0 0
    %3570 = vmatmul.mubr.bf16.gmra.mrb[0].mxu0 %v3407
    %v3571 = vpop.f32.mrb[0].mxu0
    %v3572 = vadd.f32 %v3431, %v3571
    %v3573 = vpop.f32.mrb[0].mxu0
    %v3574 = vpop.f32.mrb[0].mxu0
    %v3575 = vadd.f32 %v3431, %v3574
    %v3576 = vpop.f32.mrb[0].mxu0
    %3577 = vdwg.mxu0
    %v3578 = vmax.f32 %v3516, 0.0
    %v3579 = vmax.f32 %v3519, 0.0
    %v3580 = vmax.f32 %v3524, 0.0
    %v3581 = vmax.f32 %v3527, 0.0
    %v3582 = vmax.f32 %v3532, 0.0
    %v3583 = vmax.f32 %v3535, 0.0
    %v3584 = vmax.f32 %v3540, 0.0
    %v3585 = vmax.f32 %v3543, 0.0
    %v3586 = vmax.f32 %v3548, 0.0
    %v3587 = vmax.f32 %v3551, 0.0
    %v3588 = vmax.f32 %v3556, 0.0
    %v3589 = vmax.f32 %v3559, 0.0
    %v3590 = vmax.f32 %v3564, 0.0
    %v3591 = vmax.f32 %v3567, 0.0
    %v3592 = vmax.f32 %v3572, 0.0
    %v3593 = vmax.f32 %v3575, 0.0
    %s3594 = scalar_lea.vmem [#allocation8], 512
    %v3595 = vld [vmem:[%s3594] sm:$0xf]
    %v3596 = vld [vmem:[%s3594 + $0x4] sm:$0xf]
    %v3597 = vld [vmem:[%s3594 + $0x8] sm:$0xf]
    %v3598 = vld [vmem:[%s3594 + $0xc] sm:$0xf]
    %v3599 = vld [vmem:[%s3594 + $0x10] sm:$0xf]
    %v3600 = vld [vmem:[%s3594 + $0x14] sm:$0xf]
    %v3601 = vld [vmem:[%s3594 + $0x18] sm:$0xf]
    %v3602 = vld [vmem:[%s3594 + $0x1c] sm:$0xf]
    %v3603 = vld [vmem:[%s3594 + $0x20] sm:$0xf]
    %v3604 = vld [vmem:[%s3594 + $0x24] sm:$0xf]
    %v3605 = vld [vmem:[%s3594 + $0x28] sm:$0xf]
    %v3606 = vld [vmem:[%s3594 + $0x2c] sm:$0xf]
    %v3607 = vld [vmem:[%s3594 + $0x30] sm:$0xf]
    %v3608 = vld [vmem:[%s3594 + $0x34] sm:$0xf]
    %v3609 = vld [vmem:[%s3594 + $0x38] sm:$0xf]
    %v3610 = vld [vmem:[%s3594 + $0x3c] sm:$0xf]
    %v3611 = vld [vmem:[%s3594 + $0x40] sm:$0xf]
    %v3612 = vld [vmem:[%s3594 + $0x44] sm:$0xf]
    %v3613 = vld [vmem:[%s3594 + $0x48] sm:$0xf]
    %v3614 = vld [vmem:[%s3594 + $0x4c] sm:$0xf]
    %v3615 = vld [vmem:[%s3594 + $0x50] sm:$0xf]
    %v3616 = vld [vmem:[%s3594 + $0x54] sm:$0xf]
    %v3617 = vld [vmem:[%s3594 + $0x58] sm:$0xf]
    %v3618 = vld [vmem:[%s3594 + $0x5c] sm:$0xf]
    %v3619 = vld [vmem:[%s3594 + $0x60] sm:$0xf]
    %v3620 = vld [vmem:[%s3594 + $0x64] sm:$0xf]
    %v3621 = vld [vmem:[%s3594 + $0x68] sm:$0xf]
    %v3622 = vld [vmem:[%s3594 + $0x6c] sm:$0xf]
    %v3623 = vld [vmem:[%s3594 + $0x70] sm:$0xf]
    %v3624 = vld [vmem:[%s3594 + $0x74] sm:$0xf]
    %v3625 = vld [vmem:[%s3594 + $0x78] sm:$0xf]
    %v3626 = vld [vmem:[%s3594 + $0x7c] sm:$0xf]
    %v3627 = vunpack.c.l.bf16 %v3595
    %v3628 = vunpack.c.l.bf16 %v3596
    %v3629 = vunpack.c.l.bf16 %v3597
    %v3630 = vunpack.c.l.bf16 %v3598
    %v3631 = vunpack.c.l.bf16 %v3599
    %v3632 = vunpack.c.l.bf16 %v3600
    %v3633 = vunpack.c.l.bf16 %v3601
    %v3634 = vunpack.c.l.bf16 %v3602
    %v3635 = vunpack.c.l.bf16 %v3603
    %v3636 = vunpack.c.l.bf16 %v3604
    %v3637 = vunpack.c.l.bf16 %v3605
    %v3638 = vunpack.c.l.bf16 %v3606
    %v3639 = vunpack.c.l.bf16 %v3607
    %v3640 = vunpack.c.l.bf16 %v3608
    %v3641 = vunpack.c.l.bf16 %v3609
    %v3642 = vunpack.c.l.bf16 %v3610
    %v3643 = vunpack.c.l.bf16 %v3611
    %v3644 = vunpack.c.l.bf16 %v3612
    %v3645 = vunpack.c.l.bf16 %v3613
    %v3646 = vunpack.c.l.bf16 %v3614
    %v3647 = vunpack.c.l.bf16 %v3615
    %v3648 = vunpack.c.l.bf16 %v3616
    %v3649 = vunpack.c.l.bf16 %v3617
    %v3650 = vunpack.c.l.bf16 %v3618
    %v3651 = vunpack.c.l.bf16 %v3619
    %v3652 = vunpack.c.l.bf16 %v3620
    %v3653 = vunpack.c.l.bf16 %v3621
    %v3654 = vunpack.c.l.bf16 %v3622
    %v3655 = vunpack.c.l.bf16 %v3623
    %v3656 = vunpack.c.l.bf16 %v3624
    %v3657 = vunpack.c.l.bf16 %v3625
    %v3658 = vunpack.c.l.bf16 %v3626
    %v3659 = vpack.c.bf16 %v3579, %v3578
    %v3660 = vpack.c.bf16 %v3581, %v3580
    %v3661 = vpack.c.bf16 %v3583, %v3582
    %v3662 = vpack.c.bf16 %v3585, %v3584
    %v3663 = vpack.c.bf16 %v3587, %v3586
    %v3664 = vpack.c.bf16 %v3589, %v3588
    %v3665 = vpack.c.bf16 %v3591, %v3590
    %v3666 = vpack.c.bf16 %v3593, %v3592
    %3667 = vmatprep.subr.bf16.mxu0 0
    %3668 = vmatpush1.bf16.msra.mxu0 %v3659
    %3669 = vmatprep.subr.bf16.mxu0 0
    %3670 = vmatpush1.bf16.msra.mxu0 %v3660
    %3671 = vmatprep.subr.bf16.mxu0 0
    %3672 = vmatpush1.bf16.msra.mxu0 %v3661
    %3673 = vmatprep.subr.bf16.mxu0 0
    %3674 = vmatpush1.bf16.msra.mxu0 %v3662
    %3675 = vmatprep.subr.bf16.mxu0 0
    %3676 = vmatpush1.bf16.msra.mxu0 %v3663
    %3677 = vmatprep.subr.bf16.mxu0 0
    %3678 = vmatpush1.bf16.msra.mxu0 %v3664
    %3679 = vmatprep.subr.bf16.mxu0 0
    %3680 = vmatpush1.bf16.msra.mxu0 %v3665
    %3681 = vmatprep.subr.bf16.mxu0 0
    %3682 = vmatpush1.bf16.msra.mxu0 %v3666
    %3683 = vmatprep.subr.bf16.mxu0 0
    %3684 = vmatpush1.bf16.msra.mxu0 0
    %3685 = vmatprep.subr.bf16.mxu0 0
    %3686 = vmatpush1.bf16.msra.mxu0 0
    %3687 = vmatprep.subr.bf16.mxu0 0
    %3688 = vmatpush1.bf16.msra.mxu0 0
    %3689 = vmatprep.subr.bf16.mxu0 0
    %3690 = vmatpush1.bf16.msra.mxu0 0
    %3691 = vmatprep.subr.bf16.mxu0 0
    %3692 = vmatpush1.bf16.msra.mxu0 0
    %3693 = vmatprep.subr.bf16.mxu0 0
    %3694 = vmatpush1.bf16.msra.mxu0 0
    %3695 = vmatprep.subr.bf16.mxu0 0
    %3696 = vmatpush1.bf16.msra.mxu0 0
    %3697 = vmatprep.subr.bf16.mxu0 0
    %3698 = vmatpush1.bf16.msra.mxu0 0
    %3699 = vmatprep.mubr.bf16.mxu0 0
    %3700 = vmatmul.mubr.bf16.gmra.mrb[0].mxu0 %v379
    %v3701 = vpop.f32.mrb[0].mxu0
    %v3702 = vadd.f32 %v3627, %v3701
    %v3703 = vpop.f32.mrb[0].mxu0
    %v3704 = vpop.f32.mrb[0].mxu0
    %v3705 = vadd.f32 %v3628, %v3704
    %v3706 = vpop.f32.mrb[0].mxu0
    %3707 = vmatprep.mubr.bf16.mxu0 0
    %3708 = vmatmul.mubr.bf16.gmra.mrb[0].mxu0 %v380
    %v3709 = vpop.f32.mrb[0].mxu0
    %v3710 = vadd.f32 %v3629, %v3709
    %v3711 = vpop.f32.mrb[0].mxu0
    %v3712 = vpop.f32.mrb[0].mxu0
    %v3713 = vadd.f32 %v3630, %v3712
    %v3714 = vpop.f32.mrb[0].mxu0
    %3715 = vmatprep.mubr.bf16.mxu0 0
    %3716 = vmatmul.mubr.bf16.gmra.mrb[0].mxu0 %v381
    %v3717 = vpop.f32.mrb[0].mxu0
    %v3718 = vadd.f32 %v3631, %v3717
    %v3719 = vpop.f32.mrb[0].mxu0
    %v3720 = vpop.f32.mrb[0].mxu0
    %v3721 = vadd.f32 %v3632, %v3720
    %v3722 = vpop.f32.mrb[0].mxu0
    %3723 = vmatprep.mubr.bf16.mxu0 0
    %3724 = vmatmul.mubr.bf16.gmra.mrb[0].mxu0 %v382
    %v3725 = vpop.f32.mrb[0].mxu0
    %v3726 = vadd.f32 %v3633, %v3725
    %v3727 = vpop.f32.mrb[0].mxu0
    %v3728 = vpop.f32.mrb[0].mxu0
    %v3729 = vadd.f32 %v3634, %v3728
    %v3730 = vpop.f32.mrb[0].mxu0
    %3731 = vmatprep.mubr.bf16.mxu0 0
    %3732 = vmatmul.mubr.bf16.gmra.mrb[0].mxu0 %v383
    %v3733 = vpop.f32.mrb[0].mxu0
    %v3734 = vadd.f32 %v3635, %v3733
    %v3735 = vpop.f32.mrb[0].mxu0
    %v3736 = vpop.f32.mrb[0].mxu0
    %v3737 = vadd.f32 %v3636, %v3736
    %v3738 = vpop.f32.mrb[0].mxu0
    %3739 = vmatprep.mubr.bf16.mxu0 0
    %3740 = vmatmul.mubr.bf16.gmra.mrb[0].mxu0 %v384
    %v3741 = vpop.f32.mrb[0].mxu0
    %v3742 = vadd.f32 %v3637, %v3741
    %v3743 = vpop.f32.mrb[0].mxu0
    %v3744 = vpop.f32.mrb[0].mxu0
    %v3745 = vadd.f32 %v3638, %v3744
    %v3746 = vpop.f32.mrb[0].mxu0
    %3747 = vmatprep.mubr.bf16.mxu0 0
    %3748 = vmatmul.mubr.bf16.gmra.mrb[0].mxu0 %v385
    %v3749 = vpop.f32.mrb[0].mxu0
    %v3750 = vadd.f32 %v3639, %v3749
    %v3751 = vpop.f32.mrb[0].mxu0
    %v3752 = vpop.f32.mrb[0].mxu0
    %v3753 = vadd.f32 %v3640, %v3752
    %v3754 = vpop.f32.mrb[0].mxu0
    %3755 = vmatprep.mubr.bf16.mxu0 0
    %3756 = vmatmul.mubr.bf16.gmra.mrb[0].mxu0 %v386
    %v3757 = vpop.f32.mrb[0].mxu0
    %v3758 = vadd.f32 %v3641, %v3757
    %v3759 = vpop.f32.mrb[0].mxu0
    %v3760 = vpop.f32.mrb[0].mxu0
    %v3761 = vadd.f32 %v3642, %v3760
    %v3762 = vpop.f32.mrb[0].mxu0
    %3763 = vmatprep.mubr.bf16.mxu0 0
    %3764 = vmatmul.mubr.bf16.gmra.mrb[0].mxu0 %v387
    %v3765 = vpop.f32.mrb[0].mxu0
    %v3766 = vadd.f32 %v3643, %v3765
    %v3767 = vpop.f32.mrb[0].mxu0
    %v3768 = vpop.f32.mrb[0].mxu0
    %v3769 = vadd.f32 %v3644, %v3768
    %v3770 = vpop.f32.mrb[0].mxu0
    %3771 = vmatprep.mubr.bf16.mxu0 0
    %3772 = vmatmul.mubr.bf16.gmra.mrb[0].mxu0 %v388
    %v3773 = vpop.f32.mrb[0].mxu0
    %v3774 = vadd.f32 %v3645, %v3773
    %v3775 = vpop.f32.mrb[0].mxu0
    %v3776 = vpop.f32.mrb[0].mxu0
    %v3777 = vadd.f32 %v3646, %v3776
    %v3778 = vpop.f32.mrb[0].mxu0
    %3779 = vmatprep.mubr.bf16.mxu0 0
    %3780 = vmatmul.mubr.bf16.gmra.mrb[0].mxu0 %v389
    %v3781 = vpop.f32.mrb[0].mxu0
    %v3782 = vadd.f32 %v3647, %v3781
    %v3783 = vpop.f32.mrb[0].mxu0
    %v3784 = vpop.f32.mrb[0].mxu0
    %v3785 = vadd.f32 %v3648, %v3784
    %v3786 = vpop.f32.mrb[0].mxu0
    %3787 = vmatprep.mubr.bf16.mxu0 0
    %3788 = vmatmul.mubr.bf16.gmra.mrb[0].mxu0 %v390
    %v3789 = vpop.f32.mrb[0].mxu0
    %v3790 = vadd.f32 %v3649, %v3789
    %v3791 = vpop.f32.mrb[0].mxu0
    %v3792 = vpop.f32.mrb[0].mxu0
    %v3793 = vadd.f32 %v3650, %v3792
    %v3794 = vpop.f32.mrb[0].mxu0
    %3795 = vmatprep.mubr.bf16.mxu0 0
    %3796 = vmatmul.mubr.bf16.gmra.mrb[0].mxu0 %v391
    %v3797 = vpop.f32.mrb[0].mxu0
    %v3798 = vadd.f32 %v3651, %v3797
    %v3799 = vpop.f32.mrb[0].mxu0
    %v3800 = vpop.f32.mrb[0].mxu0
    %v3801 = vadd.f32 %v3652, %v3800
    %v3802 = vpop.f32.mrb[0].mxu0
    %3803 = vmatprep.mubr.bf16.mxu0 0
    %3804 = vmatmul.mubr.bf16.gmra.mrb[0].mxu0 %v392
    %v3805 = vpop.f32.mrb[0].mxu0
    %v3806 = vadd.f32 %v3653, %v3805
    %v3807 = vpop.f32.mrb[0].mxu0
    %v3808 = vpop.f32.mrb[0].mxu0
    %v3809 = vadd.f32 %v3654, %v3808
    %v3810 = vpop.f32.mrb[0].mxu0
    %3811 = vmatprep.mubr.bf16.mxu0 0
    %3812 = vmatmul.mubr.bf16.gmra.mrb[0].mxu0 %v393
    %v3813 = vpop.f32.mrb[0].mxu0
    %v3814 = vadd.f32 %v3655, %v3813
    %v3815 = vpop.f32.mrb[0].mxu0
    %v3816 = vpop.f32.mrb[0].mxu0
    %v3817 = vadd.f32 %v3656, %v3816
    %v3818 = vpop.f32.mrb[0].mxu0
    %3819 = vmatprep.mubr.bf16.mxu0 0
    %3820 = vmatmul.mubr.bf16.gmra.mrb[0].mxu0 %v394
    %v3821 = vpop.f32.mrb[0].mxu0
    %v3822 = vadd.f32 %v3657, %v3821
    %v3823 = vpop.f32.mrb[0].mxu0
    %v3824 = vpop.f32.mrb[0].mxu0
    %v3825 = vadd.f32 %v3658, %v3824
    %v3826 = vpop.f32.mrb[0].mxu0
    %3827 = vdwg.mxu0
    %v3828 = vmax.f32 %v3702, 0.0
    %v3829 = vmax.f32 %v3705, 0.0
    %v3830 = vmax.f32 %v3710, 0.0
    %v3831 = vmax.f32 %v3713, 0.0
    %v3832 = vmax.f32 %v3718, 0.0
    %v3833 = vmax.f32 %v3721, 0.0
    %v3834 = vmax.f32 %v3726, 0.0
    %v3835 = vmax.f32 %v3729, 0.0
    %v3836 = vmax.f32 %v3734, 0.0
    %v3837 = vmax.f32 %v3737, 0.0
    %v3838 = vmax.f32 %v3742, 0.0
    %v3839 = vmax.f32 %v3745, 0.0
    %v3840 = vmax.f32 %v3750, 0.0
    %v3841 = vmax.f32 %v3753, 0.0
    %v3842 = vmax.f32 %v3758, 0.0
    %v3843 = vmax.f32 %v3761, 0.0
    %v3844 = vmax.f32 %v3766, 0.0
    %v3845 = vmax.f32 %v3769, 0.0
    %v3846 = vmax.f32 %v3774, 0.0
    %v3847 = vmax.f32 %v3777, 0.0
    %v3848 = vmax.f32 %v3782, 0.0
    %v3849 = vmax.f32 %v3785, 0.0
    %v3850 = vmax.f32 %v3790, 0.0
    %v3851 = vmax.f32 %v3793, 0.0
    %v3852 = vmax.f32 %v3798, 0.0
    %v3853 = vmax.f32 %v3801, 0.0
    %v3854 = vmax.f32 %v3806, 0.0
    %v3855 = vmax.f32 %v3809, 0.0
    %v3856 = vmax.f32 %v3814, 0.0
    %v3857 = vmax.f32 %v3817, 0.0
    %v3858 = vmax.f32 %v3822, 0.0
    %v3859 = vmax.f32 %v3825, 0.0
    %v3860 = vpack.c.bf16 %v3829, %v3828
    %v3861 = vpack.c.bf16 %v3831, %v3830
    %v3862 = vpack.c.bf16 %v3833, %v3832
    %v3863 = vpack.c.bf16 %v3835, %v3834
    %v3864 = vpack.c.bf16 %v3837, %v3836
    %v3865 = vpack.c.bf16 %v3839, %v3838
    %v3866 = vpack.c.bf16 %v3841, %v3840
    %v3867 = vpack.c.bf16 %v3843, %v3842
    %v3868 = vpack.c.bf16 %v3845, %v3844
    %v3869 = vpack.c.bf16 %v3847, %v3846
    %v3870 = vpack.c.bf16 %v3849, %v3848
    %v3871 = vpack.c.bf16 %v3851, %v3850
    %v3872 = vpack.c.bf16 %v3853, %v3852
    %v3873 = vpack.c.bf16 %v3855, %v3854
    %v3874 = vpack.c.bf16 %v3857, %v3856
    %v3875 = vpack.c.bf16 %v3859, %v3858
    %3876 = vmatprep.subr.bf16.mxu0 0
    %3877 = vmatpush1.bf16.msra.mxu0 %v3860
    %3878 = vmatprep.subr.bf16.mxu0 0
    %3879 = vmatpush1.bf16.msra.mxu0 %v3861
    %3880 = vmatprep.subr.bf16.mxu0 0
    %3881 = vmatpush1.bf16.msra.mxu0 %v3862
    %3882 = vmatprep.subr.bf16.mxu0 0
    %3883 = vmatpush1.bf16.msra.mxu0 %v3863
    %3884 = vmatprep.subr.bf16.mxu0 0
    %3885 = vmatpush1.bf16.msra.mxu0 %v3864
    %3886 = vmatprep.subr.bf16.mxu0 0
    %3887 = vmatpush1.bf16.msra.mxu0 %v3865
    %3888 = vmatprep.subr.bf16.mxu0 0
    %3889 = vmatpush1.bf16.msra.mxu0 %v3866
    %3890 = vmatprep.subr.bf16.mxu0 0
    %3891 = vmatpush1.bf16.msra.mxu0 %v3867
    %3892 = vmatprep.subr.bf16.mxu0 0
    %3893 = vmatpush1.bf16.msra.mxu0 %v3868
    %3894 = vmatprep.subr.bf16.mxu0 0
    %3895 = vmatpush1.bf16.msra.mxu0 %v3869
    %3896 = vmatprep.subr.bf16.mxu0 0
    %3897 = vmatpush1.bf16.msra.mxu0 %v3870
    %3898 = vmatprep.subr.bf16.mxu0 0
    %3899 = vmatpush1.bf16.msra.mxu0 %v3871
    %3900 = vmatprep.subr.bf16.mxu0 0
    %3901 = vmatpush1.bf16.msra.mxu0 %v3872
    %3902 = vmatprep.subr.bf16.mxu0 0
    %3903 = vmatpush1.bf16.msra.mxu0 %v3873
    %3904 = vmatprep.subr.bf16.mxu0 0
    %3905 = vmatpush1.bf16.msra.mxu0 %v3874
    %3906 = vmatprep.subr.bf16.mxu0 0
    %3907 = vmatpush1.bf16.msra.mxu0 %v3875
    %3908 = vmatprep.mubr.bf16.mxu0 %v717
    %3909 = vmatmul.mubr.bf16.gmra.mrb[0].mxu0 %v716
    %v3910 = vpop.f32.mrb[0].mxu0
    %v3911 = vadd.f32 0.0, %v3910
    %v3912 = vpop.f32.mrb[0].mxu0
    %v3913 = vpop.f32.mrb[0].mxu0
    %v3914 = vadd.f32 0.0, %v3913
    %v3915 = vpop.f32.mrb[0].mxu0
    %3916 = vmatprep.mubr.bf16.mxu0 %v719
    %3917 = vmatmul.mubr.bf16.gmra.mrb[0].mxu0 %v718
    %v3918 = vpop.f32.mrb[0].mxu0
    %v3919 = vadd.f32 0.0, %v3918
    %v3920 = vpop.f32.mrb[0].mxu0
    %v3921 = vpop.f32.mrb[0].mxu0
    %v3922 = vadd.f32 0.0, %v3921
    %v3923 = vpop.f32.mrb[0].mxu0
    %3924 = vmatprep.mubr.bf16.mxu0 %v721
    %3925 = vmatmul.mubr.bf16.gmra.mrb[0].mxu0 %v720
    %v3926 = vpop.f32.mrb[0].mxu0
    %v3927 = vadd.f32 0.0, %v3926
    %v3928 = vpop.f32.mrb[0].mxu0
    %v3929 = vpop.f32.mrb[0].mxu0
    %v3930 = vadd.f32 0.0, %v3929
    %v3931 = vpop.f32.mrb[0].mxu0
    %3932 = vmatprep.mubr.bf16.mxu0 %v723
    %3933 = vmatmul.mubr.bf16.gmra.mrb[0].mxu0 %v722
    %v3934 = vpop.f32.mrb[0].mxu0
    %v3935 = vadd.f32 0.0, %v3934
    %v3936 = vpop.f32.mrb[0].mxu0
    %v3937 = vpop.f32.mrb[0].mxu0
    %v3938 = vadd.f32 0.0, %v3937
    %v3939 = vpop.f32.mrb[0].mxu0
    %3940 = vmatprep.mubr.bf16.mxu0 %v725
    %3941 = vmatmul.mubr.bf16.gmra.mrb[0].mxu0 %v724
    %v3942 = vpop.f32.mrb[0].mxu0
    %v3943 = vadd.f32 0.0, %v3942
    %v3944 = vpop.f32.mrb[0].mxu0
    %v3945 = vpop.f32.mrb[0].mxu0
    %v3946 = vadd.f32 0.0, %v3945
    %v3947 = vpop.f32.mrb[0].mxu0
    %3948 = vmatprep.mubr.bf16.mxu0 %v727
    %3949 = vmatmul.mubr.bf16.gmra.mrb[0].mxu0 %v726
    %v3950 = vpop.f32.mrb[0].mxu0
    %v3951 = vadd.f32 0.0, %v3950
    %v3952 = vpop.f32.mrb[0].mxu0
    %v3953 = vpop.f32.mrb[0].mxu0
    %v3954 = vadd.f32 0.0, %v3953
    %v3955 = vpop.f32.mrb[0].mxu0
    %3956 = vmatprep.mubr.bf16.mxu0 %v729
    %3957 = vmatmul.mubr.bf16.gmra.mrb[0].mxu0 %v728
    %v3958 = vpop.f32.mrb[0].mxu0
    %v3959 = vadd.f32 0.0, %v3958
    %v3960 = vpop.f32.mrb[0].mxu0
    %v3961 = vpop.f32.mrb[0].mxu0
    %v3962 = vadd.f32 0.0, %v3961
    %v3963 = vpop.f32.mrb[0].mxu0
    %3964 = vmatprep.mubr.bf16.mxu0 %v731
    %3965 = vmatmul.mubr.bf16.gmra.mrb[0].mxu0 %v730
    %v3966 = vpop.f32.mrb[0].mxu0
    %v3967 = vadd.f32 0.0, %v3966
    %v3968 = vpop.f32.mrb[0].mxu0
    %v3969 = vpop.f32.mrb[0].mxu0
    %v3970 = vadd.f32 0.0, %v3969
    %v3971 = vpop.f32.mrb[0].mxu0
    %3972 = vdwg.mxu0
    %v3973 = vadd.f32 %v3578, %v3911
    %v3974 = vadd.f32 %v3579, %v3914
    %v3975 = vadd.f32 %v3580, %v3919
    %v3976 = vadd.f32 %v3581, %v3922
    %v3977 = vadd.f32 %v3582, %v3927
    %v3978 = vadd.f32 %v3583, %v3930
    %v3979 = vadd.f32 %v3584, %v3935
    %v3980 = vadd.f32 %v3585, %v3938
    %v3981 = vadd.f32 %v3586, %v3943
    %v3982 = vadd.f32 %v3587, %v3946
    %v3983 = vadd.f32 %v3588, %v3951
    %v3984 = vadd.f32 %v3589, %v3954
    %v3985 = vadd.f32 %v3590, %v3959
    %v3986 = vadd.f32 %v3591, %v3962
    %v3987 = vadd.f32 %v3592, %v3967
    %v3988 = vadd.f32 %v3593, %v3970
    %v3989 = vpack.c.bf16 %v3974, %v3973
    %v3990 = vpack.c.bf16 %v3976, %v3975
    %v3991 = vpack.c.bf16 %v3978, %v3977
    %v3992 = vpack.c.bf16 %v3980, %v3979
    %v3993 = vpack.c.bf16 %v3982, %v3981
    %v3994 = vpack.c.bf16 %v3984, %v3983
    %v3995 = vpack.c.bf16 %v3986, %v3985
    %v3996 = vpack.c.bf16 %v3988, %v3987
    %s3997 = scalar_lea.vmem [#allocation10], 256
    %v3998 = vld [vmem:[%s3997] sm:$0xf]
    %v3999 = vld [vmem:[%s3997 + $0x4] sm:$0xf]
    %v4000 = vld [vmem:[%s3997 + $0x8] sm:$0xf]
    %v4001 = vld [vmem:[%s3997 + $0xc] sm:$0xf]
    %v4002 = vld [vmem:[%s3997 + $0x10] sm:$0xf]
    %v4003 = vld [vmem:[%s3997 + $0x14] sm:$0xf]
    %v4004 = vld [vmem:[%s3997 + $0x18] sm:$0xf]
    %v4005 = vld [vmem:[%s3997 + $0x1c] sm:$0xf]
    %v4006 = vld [vmem:[%s3997 + $0x20] sm:$0xf]
    %v4007 = vld [vmem:[%s3997 + $0x24] sm:$0xf]
    %v4008 = vld [vmem:[%s3997 + $0x28] sm:$0xf]
    %v4009 = vld [vmem:[%s3997 + $0x2c] sm:$0xf]
    %v4010 = vld [vmem:[%s3997 + $0x30] sm:$0xf]
    %v4011 = vld [vmem:[%s3997 + $0x34] sm:$0xf]
    %v4012 = vld [vmem:[%s3997 + $0x38] sm:$0xf]
    %v4013 = vld [vmem:[%s3997 + $0x3c] sm:$0xf]
    %s4014 = scalar_lea.vmem %s5, 4
    %v4015 = vld [vmem:[%s4014] sm:$0x1]
    %v4017 = vlaneseq
    %v4018 = vshrl.u32 %v4017, 7
    %v4019 = vsub.s32 0, %v4018
    %v4020 = vrot.slane %v4015, %v4019
    %v4038 = vunpack.c.l.b16 %v3998
    %v4039 = vunpack.c.l.b16 %v3999
    %v4040 = vunpack.c.l.b16 %v4000
    %v4041 = vunpack.c.l.b16 %v4001
    %v4042 = vunpack.c.l.b16 %v4002
    %v4043 = vunpack.c.l.b16 %v4003
    %v4044 = vunpack.c.l.b16 %v4004
    %v4045 = vunpack.c.l.b16 %v4005
    %v4046 = vunpack.c.l.b16 %v4006
    %v4047 = vunpack.c.l.b16 %v4007
    %v4048 = vunpack.c.l.b16 %v4008
    %v4049 = vunpack.c.l.b16 %v4009
    %v4050 = vunpack.c.l.b16 %v4010
    %v4051 = vunpack.c.l.b16 %v4011
    %v4052 = vunpack.c.l.b16 %v4012
    %v4053 = vunpack.c.l.b16 %v4013
    %v4054 = vpack.c.b16 %v4039, %v4038
    %v4055 = vpack.c.b16 %v4041, %v4040
    %v4056 = vpack.c.b16 %v4043, %v4042
    %v4057 = vpack.c.b16 %v4045, %v4044
    %v4058 = vpack.c.b16 %v4047, %v4046
    %v4059 = vpack.c.b16 %v4049, %v4048
    %v4060 = vpack.c.b16 %v4051, %v4050
    %v4061 = vpack.c.b16 %v4053, %v4052
    %4070 = vmatprep.subr.bf16.mxu0 0
    %4071 = vmatpush1.bf16.msra.mxu0 %v4054
    %4072 = vmatprep.subr.bf16.mxu0 0
    %4073 = vmatpush1.bf16.msra.mxu0 %v4055
    %4074 = vmatprep.subr.bf16.mxu0 0
    %4075 = vmatpush1.bf16.msra.mxu0 %v4056
    %4076 = vmatprep.subr.bf16.mxu0 0
    %4077 = vmatpush1.bf16.msra.mxu0 %v4057
    %4078 = vmatprep.subr.bf16.mxu0 0
    %4079 = vmatpush1.bf16.msra.mxu0 %v4058
    %4080 = vmatprep.subr.bf16.mxu0 0
    %4081 = vmatpush1.bf16.msra.mxu0 %v4059
    %4082 = vmatprep.subr.bf16.mxu0 0
    %4083 = vmatpush1.bf16.msra.mxu0 %v4060
    %4084 = vmatprep.subr.bf16.mxu0 0
    %4085 = vmatpush1.bf16.msra.mxu0 %v4061
    %4086 = vmatprep.subr.bf16.mxu0 0
    %4087 = vmatpush1.bf16.msra.mxu0 0
    %4088 = vmatprep.subr.bf16.mxu0 0
    %4089 = vmatpush1.bf16.msra.mxu0 0
    %4090 = vmatprep.subr.bf16.mxu0 0
    %4091 = vmatpush1.bf16.msra.mxu0 0
    %4092 = vmatprep.subr.bf16.mxu0 0
    %4093 = vmatpush1.bf16.msra.mxu0 0
    %4094 = vmatprep.subr.bf16.mxu0 0
    %4095 = vmatpush1.bf16.msra.mxu0 0
    %4096 = vmatprep.subr.bf16.mxu0 0
    %4097 = vmatpush1.bf16.msra.mxu0 0
    %4098 = vmatprep.subr.bf16.mxu0 0
    %4099 = vmatpush1.bf16.msra.mxu0 0
    %4100 = vmatprep.subr.bf16.mxu0 0
    %4101 = vmatpush1.bf16.msra.mxu0 0
    %4102 = vmatprep.mubr.bf16.mxu0 0
    %4103 = vmatmul.mubr.bf16.gmra.mrb[0].mxu0 %v3989
    %v4104 = vpop.f32.mrb[0].mxu0
    %v4105 = vadd.f32 %v4020, %v4104
    %v4106 = vpop.f32.mrb[0].mxu0
    %v4107 = vpop.f32.mrb[0].mxu0
    %v4108 = vadd.f32 %v4020, %v4107
    %v4109 = vpop.f32.mrb[0].mxu0
    %4110 = vmatprep.mubr.bf16.mxu0 0
    %4111 = vmatmul.mubr.bf16.gmra.mrb[0].mxu0 %v3990
    %v4112 = vpop.f32.mrb[0].mxu0
    %v4113 = vadd.f32 %v4020, %v4112
    %v4114 = vpop.f32.mrb[0].mxu0
    %v4115 = vpop.f32.mrb[0].mxu0
    %v4116 = vadd.f32 %v4020, %v4115
    %v4117 = vpop.f32.mrb[0].mxu0
    %4118 = vmatprep.mubr.bf16.mxu0 0
    %4119 = vmatmul.mubr.bf16.gmra.mrb[0].mxu0 %v3991
    %v4120 = vpop.f32.mrb[0].mxu0
    %v4121 = vadd.f32 %v4020, %v4120
    %v4122 = vpop.f32.mrb[0].mxu0
    %v4123 = vpop.f32.mrb[0].mxu0
    %v4124 = vadd.f32 %v4020, %v4123
    %v4125 = vpop.f32.mrb[0].mxu0
    %4126 = vmatprep.mubr.bf16.mxu0 0
    %4127 = vmatmul.mubr.bf16.gmra.mrb[0].mxu0 %v3992
    %v4128 = vpop.f32.mrb[0].mxu0
    %v4129 = vadd.f32 %v4020, %v4128
    %v4130 = vpop.f32.mrb[0].mxu0
    %v4131 = vpop.f32.mrb[0].mxu0
    %v4132 = vadd.f32 %v4020, %v4131
    %v4133 = vpop.f32.mrb[0].mxu0
    %4134 = vmatprep.mubr.bf16.mxu0 0
    %4135 = vmatmul.mubr.bf16.gmra.mrb[0].mxu0 %v3993
    %v4136 = vpop.f32.mrb[0].mxu0
    %v4137 = vadd.f32 %v4020, %v4136
    %v4138 = vpop.f32.mrb[0].mxu0
    %v4139 = vpop.f32.mrb[0].mxu0
    %v4140 = vadd.f32 %v4020, %v4139
    %v4141 = vpop.f32.mrb[0].mxu0
    %4142 = vmatprep.mubr.bf16.mxu0 0
    %4143 = vmatmul.mubr.bf16.gmra.mrb[0].mxu0 %v3994
    %v4144 = vpop.f32.mrb[0].mxu0
    %v4145 = vadd.f32 %v4020, %v4144
    %v4146 = vpop.f32.mrb[0].mxu0
    %v4147 = vpop.f32.mrb[0].mxu0
    %v4148 = vadd.f32 %v4020, %v4147
    %v4149 = vpop.f32.mrb[0].mxu0
    %4150 = vmatprep.mubr.bf16.mxu0 0
    %4151 = vmatmul.mubr.bf16.gmra.mrb[0].mxu0 %v3995
    %v4152 = vpop.f32.mrb[0].mxu0
    %v4153 = vadd.f32 %v4020, %v4152
    %v4154 = vpop.f32.mrb[0].mxu0
    %v4155 = vpop.f32.mrb[0].mxu0
    %v4156 = vadd.f32 %v4020, %v4155
    %v4157 = vpop.f32.mrb[0].mxu0
    %4158 = vmatprep.mubr.bf16.mxu0 0
    %4159 = vmatmul.mubr.bf16.gmra.mrb[0].mxu0 %v3996
    %v4160 = vpop.f32.mrb[0].mxu0
    %v4161 = vadd.f32 %v4020, %v4160
    %v4162 = vpop.f32.mrb[0].mxu0
    %v4163 = vpop.f32.mrb[0].mxu0
    %v4164 = vadd.f32 %v4020, %v4163
    %v4165 = vpop.f32.mrb[0].mxu0
    %4166 = vdwg.mxu0
    %v4167 = vmax.f32 %v4105, 0.0
    %v4168 = vmax.f32 %v4108, 0.0
    %v4169 = vmax.f32 %v4113, 0.0
    %v4170 = vmax.f32 %v4116, 0.0
    %v4171 = vmax.f32 %v4121, 0.0
    %v4172 = vmax.f32 %v4124, 0.0
    %v4173 = vmax.f32 %v4129, 0.0
    %v4174 = vmax.f32 %v4132, 0.0
    %v4175 = vmax.f32 %v4137, 0.0
    %v4176 = vmax.f32 %v4140, 0.0
    %v4177 = vmax.f32 %v4145, 0.0
    %v4178 = vmax.f32 %v4148, 0.0
    %v4179 = vmax.f32 %v4153, 0.0
    %v4180 = vmax.f32 %v4156, 0.0
    %v4181 = vmax.f32 %v4161, 0.0
    %v4182 = vmax.f32 %v4164, 0.0
    %v4183 = vpack.c.bf16 %v4168, %v4167
    %v4184 = vpack.c.bf16 %v4170, %v4169
    %v4185 = vpack.c.bf16 %v4172, %v4171
    %v4186 = vpack.c.bf16 %v4174, %v4173
    %v4187 = vpack.c.bf16 %v4176, %v4175
    %v4188 = vpack.c.bf16 %v4178, %v4177
    %v4189 = vpack.c.bf16 %v4180, %v4179
    %v4190 = vpack.c.bf16 %v4182, %v4181
    %s4191 = scalar_lea.vmem [#allocation11], 256
    %v4192 = vld [vmem:[%s4191] sm:$0xf]
    %v4193 = vld [vmem:[%s4191 + $0x4] sm:$0xf]
    %v4194 = vld [vmem:[%s4191 + $0x8] sm:$0xf]
    %v4195 = vld [vmem:[%s4191 + $0xc] sm:$0xf]
    %v4196 = vld [vmem:[%s4191 + $0x10] sm:$0xf]
    %v4197 = vld [vmem:[%s4191 + $0x14] sm:$0xf]
    %v4198 = vld [vmem:[%s4191 + $0x18] sm:$0xf]
    %v4199 = vld [vmem:[%s4191 + $0x1c] sm:$0xf]
    %v4200 = vld [vmem:[%s4191 + $0x20] sm:$0xf]
    %v4201 = vld [vmem:[%s4191 + $0x24] sm:$0xf]
    %v4202 = vld [vmem:[%s4191 + $0x28] sm:$0xf]
    %v4203 = vld [vmem:[%s4191 + $0x2c] sm:$0xf]
    %v4204 = vld [vmem:[%s4191 + $0x30] sm:$0xf]
    %v4205 = vld [vmem:[%s4191 + $0x34] sm:$0xf]
    %v4206 = vld [vmem:[%s4191 + $0x38] sm:$0xf]
    %v4207 = vld [vmem:[%s4191 + $0x3c] sm:$0xf]
    %s4208 = scalar_lea.vmem %s7, 4
    %v4209 = vld [vmem:[%s4208] sm:$0x1]
    %v4211 = vlaneseq
    %v4212 = vshrl.u32 %v4211, 7
    %v4213 = vsub.s32 0, %v4212
    %v4214 = vrot.slane %v4209, %v4213
    %v4232 = vunpack.c.l.b16 %v4192
    %v4233 = vunpack.c.l.b16 %v4193
    %v4234 = vunpack.c.l.b16 %v4194
    %v4235 = vunpack.c.l.b16 %v4195
    %v4236 = vunpack.c.l.b16 %v4196
    %v4237 = vunpack.c.l.b16 %v4197
    %v4238 = vunpack.c.l.b16 %v4198
    %v4239 = vunpack.c.l.b16 %v4199
    %v4240 = vunpack.c.l.b16 %v4200
    %v4241 = vunpack.c.l.b16 %v4201
    %v4242 = vunpack.c.l.b16 %v4202
    %v4243 = vunpack.c.l.b16 %v4203
    %v4244 = vunpack.c.l.b16 %v4204
    %v4245 = vunpack.c.l.b16 %v4205
    %v4246 = vunpack.c.l.b16 %v4206
    %v4247 = vunpack.c.l.b16 %v4207
    %v4248 = vpack.c.b16 %v4233, %v4232
    %v4249 = vpack.c.b16 %v4235, %v4234
    %v4250 = vpack.c.b16 %v4237, %v4236
    %v4251 = vpack.c.b16 %v4239, %v4238
    %v4252 = vpack.c.b16 %v4241, %v4240
    %v4253 = vpack.c.b16 %v4243, %v4242
    %v4254 = vpack.c.b16 %v4245, %v4244
    %v4255 = vpack.c.b16 %v4247, %v4246
    %4264 = vmatprep.subr.bf16.mxu0 0
    %4265 = vmatpush1.bf16.msra.mxu0 %v4248
    %4266 = vmatprep.subr.bf16.mxu0 0
    %4267 = vmatpush1.bf16.msra.mxu0 %v4249
    %4268 = vmatprep.subr.bf16.mxu0 0
    %4269 = vmatpush1.bf16.msra.mxu0 %v4250
    %4270 = vmatprep.subr.bf16.mxu0 0
    %4271 = vmatpush1.bf16.msra.mxu0 %v4251
    %4272 = vmatprep.subr.bf16.mxu0 0
    %4273 = vmatpush1.bf16.msra.mxu0 %v4252
    %4274 = vmatprep.subr.bf16.mxu0 0
    %4275 = vmatpush1.bf16.msra.mxu0 %v4253
    %4276 = vmatprep.subr.bf16.mxu0 0
    %4277 = vmatpush1.bf16.msra.mxu0 %v4254
    %4278 = vmatprep.subr.bf16.mxu0 0
    %4279 = vmatpush1.bf16.msra.mxu0 %v4255
    %4280 = vmatprep.subr.bf16.mxu0 0
    %4281 = vmatpush1.bf16.msra.mxu0 0
    %4282 = vmatprep.subr.bf16.mxu0 0
    %4283 = vmatpush1.bf16.msra.mxu0 0
    %4284 = vmatprep.subr.bf16.mxu0 0
    %4285 = vmatpush1.bf16.msra.mxu0 0
    %4286 = vmatprep.subr.bf16.mxu0 0
    %4287 = vmatpush1.bf16.msra.mxu0 0
    %4288 = vmatprep.subr.bf16.mxu0 0
    %4289 = vmatpush1.bf16.msra.mxu0 0
    %4290 = vmatprep.subr.bf16.mxu0 0
    %4291 = vmatpush1.bf16.msra.mxu0 0
    %4292 = vmatprep.subr.bf16.mxu0 0
    %4293 = vmatpush1.bf16.msra.mxu0 0
    %4294 = vmatprep.subr.bf16.mxu0 0
    %4295 = vmatpush1.bf16.msra.mxu0 0
    %4296 = vmatprep.mubr.bf16.mxu0 0
    %4297 = vmatmul.mubr.bf16.gmra.mrb[0].mxu0 %v4183
    %v4298 = vpop.f32.mrb[0].mxu0
    %v4299 = vadd.f32 %v4214, %v4298
    %v4300 = vpop.f32.mrb[0].mxu0
    %v4301 = vpop.f32.mrb[0].mxu0
    %v4302 = vadd.f32 %v4214, %v4301
    %v4303 = vpop.f32.mrb[0].mxu0
    %4304 = vmatprep.mubr.bf16.mxu0 0
    %4305 = vmatmul.mubr.bf16.gmra.mrb[0].mxu0 %v4184
    %v4306 = vpop.f32.mrb[0].mxu0
    %v4307 = vadd.f32 %v4214, %v4306
    %v4308 = vpop.f32.mrb[0].mxu0
    %v4309 = vpop.f32.mrb[0].mxu0
    %v4310 = vadd.f32 %v4214, %v4309
    %v4311 = vpop.f32.mrb[0].mxu0
    %4312 = vmatprep.mubr.bf16.mxu0 0
    %4313 = vmatmul.mubr.bf16.gmra.mrb[0].mxu0 %v4185
    %v4314 = vpop.f32.mrb[0].mxu0
    %v4315 = vadd.f32 %v4214, %v4314
    %v4316 = vpop.f32.mrb[0].mxu0
    %v4317 = vpop.f32.mrb[0].mxu0
    %v4318 = vadd.f32 %v4214, %v4317
    %v4319 = vpop.f32.mrb[0].mxu0
    %4320 = vmatprep.mubr.bf16.mxu0 0
    %4321 = vmatmul.mubr.bf16.gmra.mrb[0].mxu0 %v4186
    %v4322 = vpop.f32.mrb[0].mxu0
    %v4323 = vadd.f32 %v4214, %v4322
    %v4324 = vpop.f32.mrb[0].mxu0
    %v4325 = vpop.f32.mrb[0].mxu0
    %v4326 = vadd.f32 %v4214, %v4325
    %v4327 = vpop.f32.mrb[0].mxu0
    %4328 = vmatprep.mubr.bf16.mxu0 0
    %4329 = vmatmul.mubr.bf16.gmra.mrb[0].mxu0 %v4187
    %v4330 = vpop.f32.mrb[0].mxu0
    %v4331 = vadd.f32 %v4214, %v4330
    %v4332 = vpop.f32.mrb[0].mxu0
    %v4333 = vpop.f32.mrb[0].mxu0
    %v4334 = vadd.f32 %v4214, %v4333
    %v4335 = vpop.f32.mrb[0].mxu0
    %4336 = vmatprep.mubr.bf16.mxu0 0
    %4337 = vmatmul.mubr.bf16.gmra.mrb[0].mxu0 %v4188
    %v4338 = vpop.f32.mrb[0].mxu0
    %v4339 = vadd.f32 %v4214, %v4338
    %v4340 = vpop.f32.mrb[0].mxu0
    %v4341 = vpop.f32.mrb[0].mxu0
    %v4342 = vadd.f32 %v4214, %v4341
    %v4343 = vpop.f32.mrb[0].mxu0
    %4344 = vmatprep.mubr.bf16.mxu0 0
    %4345 = vmatmul.mubr.bf16.gmra.mrb[0].mxu0 %v4189
    %v4346 = vpop.f32.mrb[0].mxu0
    %v4347 = vadd.f32 %v4214, %v4346
    %v4348 = vpop.f32.mrb[0].mxu0
    %v4349 = vpop.f32.mrb[0].mxu0
    %v4350 = vadd.f32 %v4214, %v4349
    %v4351 = vpop.f32.mrb[0].mxu0
    %4352 = vmatprep.mubr.bf16.mxu0 0
    %4353 = vmatmul.mubr.bf16.gmra.mrb[0].mxu0 %v4190
    %v4354 = vpop.f32.mrb[0].mxu0
    %v4355 = vadd.f32 %v4214, %v4354
    %v4356 = vpop.f32.mrb[0].mxu0
    %v4357 = vpop.f32.mrb[0].mxu0
    %v4358 = vadd.f32 %v4214, %v4357
    %v4359 = vpop.f32.mrb[0].mxu0
    %4360 = vdwg.mxu0
    %v4361 = vmax.f32 %v4299, 0.0
    %v4362 = vmax.f32 %v4302, 0.0
    %v4363 = vmax.f32 %v4307, 0.0
    %v4364 = vmax.f32 %v4310, 0.0
    %v4365 = vmax.f32 %v4315, 0.0
    %v4366 = vmax.f32 %v4318, 0.0
    %v4367 = vmax.f32 %v4323, 0.0
    %v4368 = vmax.f32 %v4326, 0.0
    %v4369 = vmax.f32 %v4331, 0.0
    %v4370 = vmax.f32 %v4334, 0.0
    %v4371 = vmax.f32 %v4339, 0.0
    %v4372 = vmax.f32 %v4342, 0.0
    %v4373 = vmax.f32 %v4347, 0.0
    %v4374 = vmax.f32 %v4350, 0.0
    %v4375 = vmax.f32 %v4355, 0.0
    %v4376 = vmax.f32 %v4358, 0.0
    %s4377 = scalar_lea.vmem [#allocation8], 640
    %v4378 = vld [vmem:[%s4377] sm:$0xf]
    %v4379 = vld [vmem:[%s4377 + $0x4] sm:$0xf]
    %v4380 = vld [vmem:[%s4377 + $0x8] sm:$0xf]
    %v4381 = vld [vmem:[%s4377 + $0xc] sm:$0xf]
    %v4382 = vld [vmem:[%s4377 + $0x10] sm:$0xf]
    %v4383 = vld [vmem:[%s4377 + $0x14] sm:$0xf]
    %v4384 = vld [vmem:[%s4377 + $0x18] sm:$0xf]
    %v4385 = vld [vmem:[%s4377 + $0x1c] sm:$0xf]
    %v4386 = vld [vmem:[%s4377 + $0x20] sm:$0xf]
    %v4387 = vld [vmem:[%s4377 + $0x24] sm:$0xf]
    %v4388 = vld [vmem:[%s4377 + $0x28] sm:$0xf]
    %v4389 = vld [vmem:[%s4377 + $0x2c] sm:$0xf]
    %v4390 = vld [vmem:[%s4377 + $0x30] sm:$0xf]
    %v4391 = vld [vmem:[%s4377 + $0x34] sm:$0xf]
    %v4392 = vld [vmem:[%s4377 + $0x38] sm:$0xf]
    %v4393 = vld [vmem:[%s4377 + $0x3c] sm:$0xf]
    %v4394 = vld [vmem:[%s4377 + $0x40] sm:$0xf]
    %v4395 = vld [vmem:[%s4377 + $0x44] sm:$0xf]
    %v4396 = vld [vmem:[%s4377 + $0x48] sm:$0xf]
    %v4397 = vld [vmem:[%s4377 + $0x4c] sm:$0xf]
    %v4398 = vld [vmem:[%s4377 + $0x50] sm:$0xf]
    %v4399 = vld [vmem:[%s4377 + $0x54] sm:$0xf]
    %v4400 = vld [vmem:[%s4377 + $0x58] sm:$0xf]
    %v4401 = vld [vmem:[%s4377 + $0x5c] sm:$0xf]
    %v4402 = vld [vmem:[%s4377 + $0x60] sm:$0xf]
    %v4403 = vld [vmem:[%s4377 + $0x64] sm:$0xf]
    %v4404 = vld [vmem:[%s4377 + $0x68] sm:$0xf]
    %v4405 = vld [vmem:[%s4377 + $0x6c] sm:$0xf]
    %v4406 = vld [vmem:[%s4377 + $0x70] sm:$0xf]
    %v4407 = vld [vmem:[%s4377 + $0x74] sm:$0xf]
    %v4408 = vld [vmem:[%s4377 + $0x78] sm:$0xf]
    %v4409 = vld [vmem:[%s4377 + $0x7c] sm:$0xf]
    %v4410 = vunpack.c.l.bf16 %v4378
    %v4411 = vunpack.c.l.bf16 %v4379
    %v4412 = vunpack.c.l.bf16 %v4380
    %v4413 = vunpack.c.l.bf16 %v4381
    %v4414 = vunpack.c.l.bf16 %v4382
    %v4415 = vunpack.c.l.bf16 %v4383
    %v4416 = vunpack.c.l.bf16 %v4384
    %v4417 = vunpack.c.l.bf16 %v4385
    %v4418 = vunpack.c.l.bf16 %v4386
    %v4419 = vunpack.c.l.bf16 %v4387
    %v4420 = vunpack.c.l.bf16 %v4388
    %v4421 = vunpack.c.l.bf16 %v4389
    %v4422 = vunpack.c.l.bf16 %v4390
    %v4423 = vunpack.c.l.bf16 %v4391
    %v4424 = vunpack.c.l.bf16 %v4392
    %v4425 = vunpack.c.l.bf16 %v4393
    %v4426 = vunpack.c.l.bf16 %v4394
    %v4427 = vunpack.c.l.bf16 %v4395
    %v4428 = vunpack.c.l.bf16 %v4396
    %v4429 = vunpack.c.l.bf16 %v4397
    %v4430 = vunpack.c.l.bf16 %v4398
    %v4431 = vunpack.c.l.bf16 %v4399
    %v4432 = vunpack.c.l.bf16 %v4400
    %v4433 = vunpack.c.l.bf16 %v4401
    %v4434 = vunpack.c.l.bf16 %v4402
    %v4435 = vunpack.c.l.bf16 %v4403
    %v4436 = vunpack.c.l.bf16 %v4404
    %v4437 = vunpack.c.l.bf16 %v4405
    %v4438 = vunpack.c.l.bf16 %v4406
    %v4439 = vunpack.c.l.bf16 %v4407
    %v4440 = vunpack.c.l.bf16 %v4408
    %v4441 = vunpack.c.l.bf16 %v4409
    %v4442 = vpack.c.bf16 %v4362, %v4361
    %v4443 = vpack.c.bf16 %v4364, %v4363
    %v4444 = vpack.c.bf16 %v4366, %v4365
    %v4445 = vpack.c.bf16 %v4368, %v4367
    %v4446 = vpack.c.bf16 %v4370, %v4369
    %v4447 = vpack.c.bf16 %v4372, %v4371
    %v4448 = vpack.c.bf16 %v4374, %v4373
    %v4449 = vpack.c.bf16 %v4376, %v4375
    %4450 = vmatprep.subr.bf16.mxu0 0
    %4451 = vmatpush1.bf16.msra.mxu0 %v4442
    %4452 = vmatprep.subr.bf16.mxu0 0
    %4453 = vmatpush1.bf16.msra.mxu0 %v4443
    %4454 = vmatprep.subr.bf16.mxu0 0
    %4455 = vmatpush1.bf16.msra.mxu0 %v4444
    %4456 = vmatprep.subr.bf16.mxu0 0
    %4457 = vmatpush1.bf16.msra.mxu0 %v4445
    %4458 = vmatprep.subr.bf16.mxu0 0
    %4459 = vmatpush1.bf16.msra.mxu0 %v4446
    %4460 = vmatprep.subr.bf16.mxu0 0
    %4461 = vmatpush1.bf16.msra.mxu0 %v4447
    %4462 = vmatprep.subr.bf16.mxu0 0
    %4463 = vmatpush1.bf16.msra.mxu0 %v4448
    %4464 = vmatprep.subr.bf16.mxu0 0
    %4465 = vmatpush1.bf16.msra.mxu0 %v4449
    %4466 = vmatprep.subr.bf16.mxu0 0
    %4467 = vmatpush1.bf16.msra.mxu0 0
    %4468 = vmatprep.subr.bf16.mxu0 0
    %4469 = vmatpush1.bf16.msra.mxu0 0
    %4470 = vmatprep.subr.bf16.mxu0 0
    %4471 = vmatpush1.bf16.msra.mxu0 0
    %4472 = vmatprep.subr.bf16.mxu0 0
    %4473 = vmatpush1.bf16.msra.mxu0 0
    %4474 = vmatprep.subr.bf16.mxu0 0
    %4475 = vmatpush1.bf16.msra.mxu0 0
    %4476 = vmatprep.subr.bf16.mxu0 0
    %4477 = vmatpush1.bf16.msra.mxu0 0
    %4478 = vmatprep.subr.bf16.mxu0 0
    %4479 = vmatpush1.bf16.msra.mxu0 0
    %4480 = vmatprep.subr.bf16.mxu0 0
    %4481 = vmatpush1.bf16.msra.mxu0 0
    %4482 = vmatprep.mubr.bf16.mxu0 0
    %4483 = vmatmul.mubr.bf16.gmra.mrb[0].mxu0 %v379
    %v4484 = vpop.f32.mrb[0].mxu0
    %v4485 = vadd.f32 %v4410, %v4484
    %v4486 = vpop.f32.mrb[0].mxu0
    %v4487 = vpop.f32.mrb[0].mxu0
    %v4488 = vadd.f32 %v4411, %v4487
    %v4489 = vpop.f32.mrb[0].mxu0
    %4490 = vmatprep.mubr.bf16.mxu0 0
    %4491 = vmatmul.mubr.bf16.gmra.mrb[0].mxu0 %v380
    %v4492 = vpop.f32.mrb[0].mxu0
    %v4493 = vadd.f32 %v4412, %v4492
    %v4494 = vpop.f32.mrb[0].mxu0
    %v4495 = vpop.f32.mrb[0].mxu0
    %v4496 = vadd.f32 %v4413, %v4495
    %v4497 = vpop.f32.mrb[0].mxu0
    %4498 = vmatprep.mubr.bf16.mxu0 0
    %4499 = vmatmul.mubr.bf16.gmra.mrb[0].mxu0 %v381
    %v4500 = vpop.f32.mrb[0].mxu0
    %v4501 = vadd.f32 %v4414, %v4500
    %v4502 = vpop.f32.mrb[0].mxu0
    %v4503 = vpop.f32.mrb[0].mxu0
    %v4504 = vadd.f32 %v4415, %v4503
    %v4505 = vpop.f32.mrb[0].mxu0
    %4506 = vmatprep.mubr.bf16.mxu0 0
    %4507 = vmatmul.mubr.bf16.gmra.mrb[0].mxu0 %v382
    %v4508 = vpop.f32.mrb[0].mxu0
    %v4509 = vadd.f32 %v4416, %v4508
    %v4510 = vpop.f32.mrb[0].mxu0
    %v4511 = vpop.f32.mrb[0].mxu0
    %v4512 = vadd.f32 %v4417, %v4511
    %v4513 = vpop.f32.mrb[0].mxu0
    %4514 = vmatprep.mubr.bf16.mxu0 0
    %4515 = vmatmul.mubr.bf16.gmra.mrb[0].mxu0 %v383
    %v4516 = vpop.f32.mrb[0].mxu0
    %v4517 = vadd.f32 %v4418, %v4516
    %v4518 = vpop.f32.mrb[0].mxu0
    %v4519 = vpop.f32.mrb[0].mxu0
    %v4520 = vadd.f32 %v4419, %v4519
    %v4521 = vpop.f32.mrb[0].mxu0
    %4522 = vmatprep.mubr.bf16.mxu0 0
    %4523 = vmatmul.mubr.bf16.gmra.mrb[0].mxu0 %v384
    %v4524 = vpop.f32.mrb[0].mxu0
    %v4525 = vadd.f32 %v4420, %v4524
    %v4526 = vpop.f32.mrb[0].mxu0
    %v4527 = vpop.f32.mrb[0].mxu0
    %v4528 = vadd.f32 %v4421, %v4527
    %v4529 = vpop.f32.mrb[0].mxu0
    %4530 = vmatprep.mubr.bf16.mxu0 0
    %4531 = vmatmul.mubr.bf16.gmra.mrb[0].mxu0 %v385
    %v4532 = vpop.f32.mrb[0].mxu0
    %v4533 = vadd.f32 %v4422, %v4532
    %v4534 = vpop.f32.mrb[0].mxu0
    %v4535 = vpop.f32.mrb[0].mxu0
    %v4536 = vadd.f32 %v4423, %v4535
    %v4537 = vpop.f32.mrb[0].mxu0
    %4538 = vmatprep.mubr.bf16.mxu0 0
    %4539 = vmatmul.mubr.bf16.gmra.mrb[0].mxu0 %v386
    %v4540 = vpop.f32.mrb[0].mxu0
    %v4541 = vadd.f32 %v4424, %v4540
    %v4542 = vpop.f32.mrb[0].mxu0
    %v4543 = vpop.f32.mrb[0].mxu0
    %v4544 = vadd.f32 %v4425, %v4543
    %v4545 = vpop.f32.mrb[0].mxu0
    %4546 = vmatprep.mubr.bf16.mxu0 0
    %4547 = vmatmul.mubr.bf16.gmra.mrb[0].mxu0 %v387
    %v4548 = vpop.f32.mrb[0].mxu0
    %v4549 = vadd.f32 %v4426, %v4548
    %v4550 = vpop.f32.mrb[0].mxu0
    %v4551 = vpop.f32.mrb[0].mxu0
    %v4552 = vadd.f32 %v4427, %v4551
    %v4553 = vpop.f32.mrb[0].mxu0
    %4554 = vmatprep.mubr.bf16.mxu0 0
    %4555 = vmatmul.mubr.bf16.gmra.mrb[0].mxu0 %v388
    %v4556 = vpop.f32.mrb[0].mxu0
    %v4557 = vadd.f32 %v4428, %v4556
    %v4558 = vpop.f32.mrb[0].mxu0
    %v4559 = vpop.f32.mrb[0].mxu0
    %v4560 = vadd.f32 %v4429, %v4559
    %v4561 = vpop.f32.mrb[0].mxu0
    %4562 = vmatprep.mubr.bf16.mxu0 0
    %4563 = vmatmul.mubr.bf16.gmra.mrb[0].mxu0 %v389
    %v4564 = vpop.f32.mrb[0].mxu0
    %v4565 = vadd.f32 %v4430, %v4564
    %v4566 = vpop.f32.mrb[0].mxu0
    %v4567 = vpop.f32.mrb[0].mxu0
    %v4568 = vadd.f32 %v4431, %v4567
    %v4569 = vpop.f32.mrb[0].mxu0
    %4570 = vmatprep.mubr.bf16.mxu0 0
    %4571 = vmatmul.mubr.bf16.gmra.mrb[0].mxu0 %v390
    %v4572 = vpop.f32.mrb[0].mxu0
    %v4573 = vadd.f32 %v4432, %v4572
    %v4574 = vpop.f32.mrb[0].mxu0
    %v4575 = vpop.f32.mrb[0].mxu0
    %v4576 = vadd.f32 %v4433, %v4575
    %v4577 = vpop.f32.mrb[0].mxu0
    %4578 = vmatprep.mubr.bf16.mxu0 0
    %4579 = vmatmul.mubr.bf16.gmra.mrb[0].mxu0 %v391
    %v4580 = vpop.f32.mrb[0].mxu0
    %v4581 = vadd.f32 %v4434, %v4580
    %v4582 = vpop.f32.mrb[0].mxu0
    %v4583 = vpop.f32.mrb[0].mxu0
    %v4584 = vadd.f32 %v4435, %v4583
    %v4585 = vpop.f32.mrb[0].mxu0
    %4586 = vmatprep.mubr.bf16.mxu0 0
    %4587 = vmatmul.mubr.bf16.gmra.mrb[0].mxu0 %v392
    %v4588 = vpop.f32.mrb[0].mxu0
    %v4589 = vadd.f32 %v4436, %v4588
    %v4590 = vpop.f32.mrb[0].mxu0
    %v4591 = vpop.f32.mrb[0].mxu0
    %v4592 = vadd.f32 %v4437, %v4591
    %v4593 = vpop.f32.mrb[0].mxu0
    %4594 = vmatprep.mubr.bf16.mxu0 0
    %4595 = vmatmul.mubr.bf16.gmra.mrb[0].mxu0 %v393
    %v4596 = vpop.f32.mrb[0].mxu0
    %v4597 = vadd.f32 %v4438, %v4596
    %v4598 = vpop.f32.mrb[0].mxu0
    %v4599 = vpop.f32.mrb[0].mxu0
    %v4600 = vadd.f32 %v4439, %v4599
    %v4601 = vpop.f32.mrb[0].mxu0
    %4602 = vmatprep.mubr.bf16.mxu0 0
    %4603 = vmatmul.mubr.bf16.gmra.mrb[0].mxu0 %v394
    %v4604 = vpop.f32.mrb[0].mxu0
    %v4605 = vadd.f32 %v4440, %v4604
    %v4606 = vpop.f32.mrb[0].mxu0
    %v4607 = vpop.f32.mrb[0].mxu0
    %v4608 = vadd.f32 %v4441, %v4607
    %v4609 = vpop.f32.mrb[0].mxu0
    %4610 = vdwg.mxu0
    %v4611 = vmax.f32 %v4485, 0.0
    %v4612 = vmax.f32 %v4488, 0.0
    %v4613 = vmax.f32 %v4493, 0.0
    %v4614 = vmax.f32 %v4496, 0.0
    %v4615 = vmax.f32 %v4501, 0.0
    %v4616 = vmax.f32 %v4504, 0.0
    %v4617 = vmax.f32 %v4509, 0.0
    %v4618 = vmax.f32 %v4512, 0.0
    %v4619 = vmax.f32 %v4517, 0.0
    %v4620 = vmax.f32 %v4520, 0.0
    %v4621 = vmax.f32 %v4525, 0.0
    %v4622 = vmax.f32 %v4528, 0.0
    %v4623 = vmax.f32 %v4533, 0.0
    %v4624 = vmax.f32 %v4536, 0.0
    %v4625 = vmax.f32 %v4541, 0.0
    %v4626 = vmax.f32 %v4544, 0.0
    %v4627 = vmax.f32 %v4549, 0.0
    %v4628 = vmax.f32 %v4552, 0.0
    %v4629 = vmax.f32 %v4557, 0.0
    %v4630 = vmax.f32 %v4560, 0.0
    %v4631 = vmax.f32 %v4565, 0.0
    %v4632 = vmax.f32 %v4568, 0.0
    %v4633 = vmax.f32 %v4573, 0.0
    %v4634 = vmax.f32 %v4576, 0.0
    %v4635 = vmax.f32 %v4581, 0.0
    %v4636 = vmax.f32 %v4584, 0.0
    %v4637 = vmax.f32 %v4589, 0.0
    %v4638 = vmax.f32 %v4592, 0.0
    %v4639 = vmax.f32 %v4597, 0.0
    %v4640 = vmax.f32 %v4600, 0.0
    %v4641 = vmax.f32 %v4605, 0.0
    %v4642 = vmax.f32 %v4608, 0.0
    %v4643 = vpack.c.bf16 %v4612, %v4611
    %v4644 = vpack.c.bf16 %v4614, %v4613
    %v4645 = vpack.c.bf16 %v4616, %v4615
    %v4646 = vpack.c.bf16 %v4618, %v4617
    %v4647 = vpack.c.bf16 %v4620, %v4619
    %v4648 = vpack.c.bf16 %v4622, %v4621
    %v4649 = vpack.c.bf16 %v4624, %v4623
    %v4650 = vpack.c.bf16 %v4626, %v4625
    %v4651 = vpack.c.bf16 %v4628, %v4627
    %v4652 = vpack.c.bf16 %v4630, %v4629
    %v4653 = vpack.c.bf16 %v4632, %v4631
    %v4654 = vpack.c.bf16 %v4634, %v4633
    %v4655 = vpack.c.bf16 %v4636, %v4635
    %v4656 = vpack.c.bf16 %v4638, %v4637
    %v4657 = vpack.c.bf16 %v4640, %v4639
    %v4658 = vpack.c.bf16 %v4642, %v4641
    %4659 = vmatprep.subr.bf16.mxu0 0
    %4660 = vmatpush1.bf16.msra.mxu0 %v4643
    %4661 = vmatprep.subr.bf16.mxu0 0
    %4662 = vmatpush1.bf16.msra.mxu0 %v4644
    %4663 = vmatprep.subr.bf16.mxu0 0
    %4664 = vmatpush1.bf16.msra.mxu0 %v4645
    %4665 = vmatprep.subr.bf16.mxu0 0
    %4666 = vmatpush1.bf16.msra.mxu0 %v4646
    %4667 = vmatprep.subr.bf16.mxu0 0
    %4668 = vmatpush1.bf16.msra.mxu0 %v4647
    %4669 = vmatprep.subr.bf16.mxu0 0
    %4670 = vmatpush1.bf16.msra.mxu0 %v4648
    %4671 = vmatprep.subr.bf16.mxu0 0
    %4672 = vmatpush1.bf16.msra.mxu0 %v4649
    %4673 = vmatprep.subr.bf16.mxu0 0
    %4674 = vmatpush1.bf16.msra.mxu0 %v4650
    %4675 = vmatprep.subr.bf16.mxu0 0
    %4676 = vmatpush1.bf16.msra.mxu0 %v4651
    %4677 = vmatprep.subr.bf16.mxu0 0
    %4678 = vmatpush1.bf16.msra.mxu0 %v4652
    %4679 = vmatprep.subr.bf16.mxu0 0
    %4680 = vmatpush1.bf16.msra.mxu0 %v4653
    %4681 = vmatprep.subr.bf16.mxu0 0
    %4682 = vmatpush1.bf16.msra.mxu0 %v4654
    %4683 = vmatprep.subr.bf16.mxu0 0
    %4684 = vmatpush1.bf16.msra.mxu0 %v4655
    %4685 = vmatprep.subr.bf16.mxu0 0
    %4686 = vmatpush1.bf16.msra.mxu0 %v4656
    %4687 = vmatprep.subr.bf16.mxu0 0
    %4688 = vmatpush1.bf16.msra.mxu0 %v4657
    %4689 = vmatprep.subr.bf16.mxu0 0
    %4690 = vmatpush1.bf16.msra.mxu0 %v4658
    %4691 = vmatprep.mubr.bf16.mxu0 %v717
    %4692 = vmatmul.mubr.bf16.gmra.mrb[0].mxu0 %v716
    %v4693 = vpop.f32.mrb[0].mxu0
    %v4694 = vadd.f32 0.0, %v4693
    %v4695 = vpop.f32.mrb[0].mxu0
    %v4696 = vpop.f32.mrb[0].mxu0
    %v4697 = vadd.f32 0.0, %v4696
    %v4698 = vpop.f32.mrb[0].mxu0
    %4699 = vmatprep.mubr.bf16.mxu0 %v719
    %4700 = vmatmul.mubr.bf16.gmra.mrb[0].mxu0 %v718
    %v4701 = vpop.f32.mrb[0].mxu0
    %v4702 = vadd.f32 0.0, %v4701
    %v4703 = vpop.f32.mrb[0].mxu0
    %v4704 = vpop.f32.mrb[0].mxu0
    %v4705 = vadd.f32 0.0, %v4704
    %v4706 = vpop.f32.mrb[0].mxu0
    %4707 = vmatprep.mubr.bf16.mxu0 %v721
    %4708 = vmatmul.mubr.bf16.gmra.mrb[0].mxu0 %v720
    %v4709 = vpop.f32.mrb[0].mxu0
    %v4710 = vadd.f32 0.0, %v4709
    %v4711 = vpop.f32.mrb[0].mxu0
    %v4712 = vpop.f32.mrb[0].mxu0
    %v4713 = vadd.f32 0.0, %v4712
    %v4714 = vpop.f32.mrb[0].mxu0
    %4715 = vmatprep.mubr.bf16.mxu0 %v723
    %4716 = vmatmul.mubr.bf16.gmra.mrb[0].mxu0 %v722
    %v4717 = vpop.f32.mrb[0].mxu0
    %v4718 = vadd.f32 0.0, %v4717
    %v4719 = vpop.f32.mrb[0].mxu0
    %v4720 = vpop.f32.mrb[0].mxu0
    %v4721 = vadd.f32 0.0, %v4720
    %v4722 = vpop.f32.mrb[0].mxu0
    %4723 = vmatprep.mubr.bf16.mxu0 %v725
    %4724 = vmatmul.mubr.bf16.gmra.mrb[0].mxu0 %v724
    %v4725 = vpop.f32.mrb[0].mxu0
    %v4726 = vadd.f32 0.0, %v4725
    %v4727 = vpop.f32.mrb[0].mxu0
    %v4728 = vpop.f32.mrb[0].mxu0
    %v4729 = vadd.f32 0.0, %v4728
    %v4730 = vpop.f32.mrb[0].mxu0
    %4731 = vmatprep.mubr.bf16.mxu0 %v727
    %4732 = vmatmul.mubr.bf16.gmra.mrb[0].mxu0 %v726
    %v4733 = vpop.f32.mrb[0].mxu0
    %v4734 = vadd.f32 0.0, %v4733
    %v4735 = vpop.f32.mrb[0].mxu0
    %v4736 = vpop.f32.mrb[0].mxu0
    %v4737 = vadd.f32 0.0, %v4736
    %v4738 = vpop.f32.mrb[0].mxu0
    %4739 = vmatprep.mubr.bf16.mxu0 %v729
    %4740 = vmatmul.mubr.bf16.gmra.mrb[0].mxu0 %v728
    %v4741 = vpop.f32.mrb[0].mxu0
    %v4742 = vadd.f32 0.0, %v4741
    %v4743 = vpop.f32.mrb[0].mxu0
    %v4744 = vpop.f32.mrb[0].mxu0
    %v4745 = vadd.f32 0.0, %v4744
    %v4746 = vpop.f32.mrb[0].mxu0
    %4747 = vmatprep.mubr.bf16.mxu0 %v731
    %4748 = vmatmul.mubr.bf16.gmra.mrb[0].mxu0 %v730
    %v4749 = vpop.f32.mrb[0].mxu0
    %v4750 = vadd.f32 0.0, %v4749
    %v4751 = vpop.f32.mrb[0].mxu0
    %v4752 = vpop.f32.mrb[0].mxu0
    %v4753 = vadd.f32 0.0, %v4752
    %v4754 = vpop.f32.mrb[0].mxu0
    %4755 = vdwg.mxu0
    %v4756 = vadd.f32 %v4361, %v4694
    %v4757 = vadd.f32 %v4362, %v4697
    %v4758 = vadd.f32 %v4363, %v4702
    %v4759 = vadd.f32 %v4364, %v4705
    %v4760 = vadd.f32 %v4365, %v4710
    %v4761 = vadd.f32 %v4366, %v4713
    %v4762 = vadd.f32 %v4367, %v4718
    %v4763 = vadd.f32 %v4368, %v4721
    %v4764 = vadd.f32 %v4369, %v4726
    %v4765 = vadd.f32 %v4370, %v4729
    %v4766 = vadd.f32 %v4371, %v4734
    %v4767 = vadd.f32 %v4372, %v4737
    %v4768 = vadd.f32 %v4373, %v4742
    %v4769 = vadd.f32 %v4374, %v4745
    %v4770 = vadd.f32 %v4375, %v4750
    %v4771 = vadd.f32 %v4376, %v4753
    %v4772 = vpack.c.bf16 %v4757, %v4756
    %v4773 = vpack.c.bf16 %v4759, %v4758
    %v4774 = vpack.c.bf16 %v4761, %v4760
    %v4775 = vpack.c.bf16 %v4763, %v4762
    %v4776 = vpack.c.bf16 %v4765, %v4764
    %v4777 = vpack.c.bf16 %v4767, %v4766
    %v4778 = vpack.c.bf16 %v4769, %v4768
    %v4779 = vpack.c.bf16 %v4771, %v4770
    %s4780 = scalar_lea.vmem [#allocation10], 320
    %v4781 = vld [vmem:[%s4780] sm:$0xf]
    %v4782 = vld [vmem:[%s4780 + $0x4] sm:$0xf]
    %v4783 = vld [vmem:[%s4780 + $0x8] sm:$0xf]
    %v4784 = vld [vmem:[%s4780 + $0xc] sm:$0xf]
    %v4785 = vld [vmem:[%s4780 + $0x10] sm:$0xf]
    %v4786 = vld [vmem:[%s4780 + $0x14] sm:$0xf]
    %v4787 = vld [vmem:[%s4780 + $0x18] sm:$0xf]
    %v4788 = vld [vmem:[%s4780 + $0x1c] sm:$0xf]
    %v4789 = vld [vmem:[%s4780 + $0x20] sm:$0xf]
    %v4790 = vld [vmem:[%s4780 + $0x24] sm:$0xf]
    %v4791 = vld [vmem:[%s4780 + $0x28] sm:$0xf]
    %v4792 = vld [vmem:[%s4780 + $0x2c] sm:$0xf]
    %v4793 = vld [vmem:[%s4780 + $0x30] sm:$0xf]
    %v4794 = vld [vmem:[%s4780 + $0x34] sm:$0xf]
    %v4795 = vld [vmem:[%s4780 + $0x38] sm:$0xf]
    %v4796 = vld [vmem:[%s4780 + $0x3c] sm:$0xf]
    %s4797 = scalar_lea.vmem %s5, 5
    %v4798 = vld [vmem:[%s4797] sm:$0x1]
    %v4800 = vlaneseq
    %v4801 = vshrl.u32 %v4800, 7
    %v4802 = vsub.s32 0, %v4801
    %v4803 = vrot.slane %v4798, %v4802
    %v4821 = vunpack.c.l.b16 %v4781
    %v4822 = vunpack.c.l.b16 %v4782
    %v4823 = vunpack.c.l.b16 %v4783
    %v4824 = vunpack.c.l.b16 %v4784
    %v4825 = vunpack.c.l.b16 %v4785
    %v4826 = vunpack.c.l.b16 %v4786
    %v4827 = vunpack.c.l.b16 %v4787
    %v4828 = vunpack.c.l.b16 %v4788
    %v4829 = vunpack.c.l.b16 %v4789
    %v4830 = vunpack.c.l.b16 %v4790
    %v4831 = vunpack.c.l.b16 %v4791
    %v4832 = vunpack.c.l.b16 %v4792
    %v4833 = vunpack.c.l.b16 %v4793
    %v4834 = vunpack.c.l.b16 %v4794
    %v4835 = vunpack.c.l.b16 %v4795
    %v4836 = vunpack.c.l.b16 %v4796
    %v4837 = vpack.c.b16 %v4822, %v4821
    %v4838 = vpack.c.b16 %v4824, %v4823
    %v4839 = vpack.c.b16 %v4826, %v4825
    %v4840 = vpack.c.b16 %v4828, %v4827
    %v4841 = vpack.c.b16 %v4830, %v4829
    %v4842 = vpack.c.b16 %v4832, %v4831
    %v4843 = vpack.c.b16 %v4834, %v4833
    %v4844 = vpack.c.b16 %v4836, %v4835
    %4853 = vmatprep.subr.bf16.mxu0 0
    %4854 = vmatpush1.bf16.msra.mxu0 %v4837
    %4855 = vmatprep.subr.bf16.mxu0 0
    %4856 = vmatpush1.bf16.msra.mxu0 %v4838
    %4857 = vmatprep.subr.bf16.mxu0 0
    %4858 = vmatpush1.bf16.msra.mxu0 %v4839
    %4859 = vmatprep.subr.bf16.mxu0 0
    %4860 = vmatpush1.bf16.msra.mxu0 %v4840
    %4861 = vmatprep.subr.bf16.mxu0 0
    %4862 = vmatpush1.bf16.msra.mxu0 %v4841
    %4863 = vmatprep.subr.bf16.mxu0 0
    %4864 = vmatpush1.bf16.msra.mxu0 %v4842
    %4865 = vmatprep.subr.bf16.mxu0 0
    %4866 = vmatpush1.bf16.msra.mxu0 %v4843
    %4867 = vmatprep.subr.bf16.mxu0 0
    %4868 = vmatpush1.bf16.msra.mxu0 %v4844
    %4869 = vmatprep.subr.bf16.mxu0 0
    %4870 = vmatpush1.bf16.msra.mxu0 0
    %4871 = vmatprep.subr.bf16.mxu0 0
    %4872 = vmatpush1.bf16.msra.mxu0 0
    %4873 = vmatprep.subr.bf16.mxu0 0
    %4874 = vmatpush1.bf16.msra.mxu0 0
    %4875 = vmatprep.subr.bf16.mxu0 0
    %4876 = vmatpush1.bf16.msra.mxu0 0
    %4877 = vmatprep.subr.bf16.mxu0 0
    %4878 = vmatpush1.bf16.msra.mxu0 0
    %4879 = vmatprep.subr.bf16.mxu0 0
    %4880 = vmatpush1.bf16.msra.mxu0 0
    %4881 = vmatprep.subr.bf16.mxu0 0
    %4882 = vmatpush1.bf16.msra.mxu0 0
    %4883 = vmatprep.subr.bf16.mxu0 0
    %4884 = vmatpush1.bf16.msra.mxu0 0
    %4885 = vmatprep.mubr.bf16.mxu0 0
    %4886 = vmatmul.mubr.bf16.gmra.mrb[0].mxu0 %v4772
    %v4887 = vpop.f32.mrb[0].mxu0
    %v4888 = vadd.f32 %v4803, %v4887
    %v4889 = vpop.f32.mrb[0].mxu0
    %v4890 = vpop.f32.mrb[0].mxu0
    %v4891 = vadd.f32 %v4803, %v4890
    %v4892 = vpop.f32.mrb[0].mxu0
    %4893 = vmatprep.mubr.bf16.mxu0 0
    %4894 = vmatmul.mubr.bf16.gmra.mrb[0].mxu0 %v4773
    %v4895 = vpop.f32.mrb[0].mxu0
    %v4896 = vadd.f32 %v4803, %v4895
    %v4897 = vpop.f32.mrb[0].mxu0
    %v4898 = vpop.f32.mrb[0].mxu0
    %v4899 = vadd.f32 %v4803, %v4898
    %v4900 = vpop.f32.mrb[0].mxu0
    %4901 = vmatprep.mubr.bf16.mxu0 0
    %4902 = vmatmul.mubr.bf16.gmra.mrb[0].mxu0 %v4774
    %v4903 = vpop.f32.mrb[0].mxu0
    %v4904 = vadd.f32 %v4803, %v4903
    %v4905 = vpop.f32.mrb[0].mxu0
    %v4906 = vpop.f32.mrb[0].mxu0
    %v4907 = vadd.f32 %v4803, %v4906
    %v4908 = vpop.f32.mrb[0].mxu0
    %4909 = vmatprep.mubr.bf16.mxu0 0
    %4910 = vmatmul.mubr.bf16.gmra.mrb[0].mxu0 %v4775
    %v4911 = vpop.f32.mrb[0].mxu0
    %v4912 = vadd.f32 %v4803, %v4911
    %v4913 = vpop.f32.mrb[0].mxu0
    %v4914 = vpop.f32.mrb[0].mxu0
    %v4915 = vadd.f32 %v4803, %v4914
    %v4916 = vpop.f32.mrb[0].mxu0
    %4917 = vmatprep.mubr.bf16.mxu0 0
    %4918 = vmatmul.mubr.bf16.gmra.mrb[0].mxu0 %v4776
    %v4919 = vpop.f32.mrb[0].mxu0
    %v4920 = vadd.f32 %v4803, %v4919
    %v4921 = vpop.f32.mrb[0].mxu0
    %v4922 = vpop.f32.mrb[0].mxu0
    %v4923 = vadd.f32 %v4803, %v4922
    %v4924 = vpop.f32.mrb[0].mxu0
    %4925 = vmatprep.mubr.bf16.mxu0 0
    %4926 = vmatmul.mubr.bf16.gmra.mrb[0].mxu0 %v4777
    %v4927 = vpop.f32.mrb[0].mxu0
    %v4928 = vadd.f32 %v4803, %v4927
    %v4929 = vpop.f32.mrb[0].mxu0
    %v4930 = vpop.f32.mrb[0].mxu0
    %v4931 = vadd.f32 %v4803, %v4930
    %v4932 = vpop.f32.mrb[0].mxu0
    %4933 = vmatprep.mubr.bf16.mxu0 0
    %4934 = vmatmul.mubr.bf16.gmra.mrb[0].mxu0 %v4778
    %v4935 = vpop.f32.mrb[0].mxu0
    %v4936 = vadd.f32 %v4803, %v4935
    %v4937 = vpop.f32.mrb[0].mxu0
    %v4938 = vpop.f32.mrb[0].mxu0
    %v4939 = vadd.f32 %v4803, %v4938
    %v4940 = vpop.f32.mrb[0].mxu0
    %4941 = vmatprep.mubr.bf16.mxu0 0
    %4942 = vmatmul.mubr.bf16.gmra.mrb[0].mxu0 %v4779
    %v4943 = vpop.f32.mrb[0].mxu0
    %v4944 = vadd.f32 %v4803, %v4943
    %v4945 = vpop.f32.mrb[0].mxu0
    %v4946 = vpop.f32.mrb[0].mxu0
    %v4947 = vadd.f32 %v4803, %v4946
    %v4948 = vpop.f32.mrb[0].mxu0
    %4949 = vdwg.mxu0
    %v4950 = vmax.f32 %v4888, 0.0
    %v4951 = vmax.f32 %v4891, 0.0
    %v4952 = vmax.f32 %v4896, 0.0
    %v4953 = vmax.f32 %v4899, 0.0
    %v4954 = vmax.f32 %v4904, 0.0
    %v4955 = vmax.f32 %v4907, 0.0
    %v4956 = vmax.f32 %v4912, 0.0
    %v4957 = vmax.f32 %v4915, 0.0
    %v4958 = vmax.f32 %v4920, 0.0
    %v4959 = vmax.f32 %v4923, 0.0
    %v4960 = vmax.f32 %v4928, 0.0
    %v4961 = vmax.f32 %v4931, 0.0
    %v4962 = vmax.f32 %v4936, 0.0
    %v4963 = vmax.f32 %v4939, 0.0
    %v4964 = vmax.f32 %v4944, 0.0
    %v4965 = vmax.f32 %v4947, 0.0
    %v4966 = vpack.c.bf16 %v4951, %v4950
    %v4967 = vpack.c.bf16 %v4953, %v4952
    %v4968 = vpack.c.bf16 %v4955, %v4954
    %v4969 = vpack.c.bf16 %v4957, %v4956
    %v4970 = vpack.c.bf16 %v4959, %v4958
    %v4971 = vpack.c.bf16 %v4961, %v4960
    %v4972 = vpack.c.bf16 %v4963, %v4962
    %v4973 = vpack.c.bf16 %v4965, %v4964
    %s4974 = scalar_lea.vmem [#allocation11], 320
    %v4975 = vld [vmem:[%s4974] sm:$0xf]
    %v4976 = vld [vmem:[%s4974 + $0x4] sm:$0xf]
    %v4977 = vld [vmem:[%s4974 + $0x8] sm:$0xf]
    %v4978 = vld [vmem:[%s4974 + $0xc] sm:$0xf]
    %v4979 = vld [vmem:[%s4974 + $0x10] sm:$0xf]
    %v4980 = vld [vmem:[%s4974 + $0x14] sm:$0xf]
    %v4981 = vld [vmem:[%s4974 + $0x18] sm:$0xf]
    %v4982 = vld [vmem:[%s4974 + $0x1c] sm:$0xf]
    %v4983 = vld [vmem:[%s4974 + $0x20] sm:$0xf]
    %v4984 = vld [vmem:[%s4974 + $0x24] sm:$0xf]
    %v4985 = vld [vmem:[%s4974 + $0x28] sm:$0xf]
    %v4986 = vld [vmem:[%s4974 + $0x2c] sm:$0xf]
    %v4987 = vld [vmem:[%s4974 + $0x30] sm:$0xf]
    %v4988 = vld [vmem:[%s4974 + $0x34] sm:$0xf]
    %v4989 = vld [vmem:[%s4974 + $0x38] sm:$0xf]
    %v4990 = vld [vmem:[%s4974 + $0x3c] sm:$0xf]
    %s4991 = scalar_lea.vmem %s7, 5
    %v4992 = vld [vmem:[%s4991] sm:$0x1]
    %v4994 = vlaneseq
    %v4995 = vshrl.u32 %v4994, 7
    %v4996 = vsub.s32 0, %v4995
    %v4997 = vrot.slane %v4992, %v4996
    %v5015 = vunpack.c.l.b16 %v4975
    %v5016 = vunpack.c.l.b16 %v4976
    %v5017 = vunpack.c.l.b16 %v4977
    %v5018 = vunpack.c.l.b16 %v4978
    %v5019 = vunpack.c.l.b16 %v4979
    %v5020 = vunpack.c.l.b16 %v4980
    %v5021 = vunpack.c.l.b16 %v4981
    %v5022 = vunpack.c.l.b16 %v4982
    %v5023 = vunpack.c.l.b16 %v4983
    %v5024 = vunpack.c.l.b16 %v4984
    %v5025 = vunpack.c.l.b16 %v4985
    %v5026 = vunpack.c.l.b16 %v4986
    %v5027 = vunpack.c.l.b16 %v4987
    %v5028 = vunpack.c.l.b16 %v4988
    %v5029 = vunpack.c.l.b16 %v4989
    %v5030 = vunpack.c.l.b16 %v4990
    %v5031 = vpack.c.b16 %v5016, %v5015
    %v5032 = vpack.c.b16 %v5018, %v5017
    %v5033 = vpack.c.b16 %v5020, %v5019
    %v5034 = vpack.c.b16 %v5022, %v5021
    %v5035 = vpack.c.b16 %v5024, %v5023
    %v5036 = vpack.c.b16 %v5026, %v5025
    %v5037 = vpack.c.b16 %v5028, %v5027
    %v5038 = vpack.c.b16 %v5030, %v5029
    %5047 = vmatprep.subr.bf16.mxu0 0
    %5048 = vmatpush1.bf16.msra.mxu0 %v5031
    %5049 = vmatprep.subr.bf16.mxu0 0
    %5050 = vmatpush1.bf16.msra.mxu0 %v5032
    %5051 = vmatprep.subr.bf16.mxu0 0
    %5052 = vmatpush1.bf16.msra.mxu0 %v5033
    %5053 = vmatprep.subr.bf16.mxu0 0
    %5054 = vmatpush1.bf16.msra.mxu0 %v5034
    %5055 = vmatprep.subr.bf16.mxu0 0
    %5056 = vmatpush1.bf16.msra.mxu0 %v5035
    %5057 = vmatprep.subr.bf16.mxu0 0
    %5058 = vmatpush1.bf16.msra.mxu0 %v5036
    %5059 = vmatprep.subr.bf16.mxu0 0
    %5060 = vmatpush1.bf16.msra.mxu0 %v5037
    %5061 = vmatprep.subr.bf16.mxu0 0
    %5062 = vmatpush1.bf16.msra.mxu0 %v5038
    %5063 = vmatprep.subr.bf16.mxu0 0
    %5064 = vmatpush1.bf16.msra.mxu0 0
    %5065 = vmatprep.subr.bf16.mxu0 0
    %5066 = vmatpush1.bf16.msra.mxu0 0
    %5067 = vmatprep.subr.bf16.mxu0 0
    %5068 = vmatpush1.bf16.msra.mxu0 0
    %5069 = vmatprep.subr.bf16.mxu0 0
    %5070 = vmatpush1.bf16.msra.mxu0 0
    %5071 = vmatprep.subr.bf16.mxu0 0
    %5072 = vmatpush1.bf16.msra.mxu0 0
    %5073 = vmatprep.subr.bf16.mxu0 0
    %5074 = vmatpush1.bf16.msra.mxu0 0
    %5075 = vmatprep.subr.bf16.mxu0 0
    %5076 = vmatpush1.bf16.msra.mxu0 0
    %5077 = vmatprep.subr.bf16.mxu0 0
    %5078 = vmatpush1.bf16.msra.mxu0 0
    %5079 = vmatprep.mubr.bf16.mxu0 0
    %5080 = vmatmul.mubr.bf16.gmra.mrb[0].mxu0 %v4966
    %v5081 = vpop.f32.mrb[0].mxu0
    %v5082 = vadd.f32 %v4997, %v5081
    %v5083 = vpop.f32.mrb[0].mxu0
    %v5084 = vpop.f32.mrb[0].mxu0
    %v5085 = vadd.f32 %v4997, %v5084
    %v5086 = vpop.f32.mrb[0].mxu0
    %5087 = vmatprep.mubr.bf16.mxu0 0
    %5088 = vmatmul.mubr.bf16.gmra.mrb[0].mxu0 %v4967
    %v5089 = vpop.f32.mrb[0].mxu0
    %v5090 = vadd.f32 %v4997, %v5089
    %v5091 = vpop.f32.mrb[0].mxu0
    %v5092 = vpop.f32.mrb[0].mxu0
    %v5093 = vadd.f32 %v4997, %v5092
    %v5094 = vpop.f32.mrb[0].mxu0
    %5095 = vmatprep.mubr.bf16.mxu0 0
    %5096 = vmatmul.mubr.bf16.gmra.mrb[0].mxu0 %v4968
    %v5097 = vpop.f32.mrb[0].mxu0
    %v5098 = vadd.f32 %v4997, %v5097
    %v5099 = vpop.f32.mrb[0].mxu0
    %v5100 = vpop.f32.mrb[0].mxu0
    %v5101 = vadd.f32 %v4997, %v5100
    %v5102 = vpop.f32.mrb[0].mxu0
    %5103 = vmatprep.mubr.bf16.mxu0 0
    %5104 = vmatmul.mubr.bf16.gmra.mrb[0].mxu0 %v4969
    %v5105 = vpop.f32.mrb[0].mxu0
    %v5106 = vadd.f32 %v4997, %v5105
    %v5107 = vpop.f32.mrb[0].mxu0
    %v5108 = vpop.f32.mrb[0].mxu0
    %v5109 = vadd.f32 %v4997, %v5108
    %v5110 = vpop.f32.mrb[0].mxu0
    %5111 = vmatprep.mubr.bf16.mxu0 0
    %5112 = vmatmul.mubr.bf16.gmra.mrb[0].mxu0 %v4970
    %v5113 = vpop.f32.mrb[0].mxu0
    %v5114 = vadd.f32 %v4997, %v5113
    %v5115 = vpop.f32.mrb[0].mxu0
    %v5116 = vpop.f32.mrb[0].mxu0
    %v5117 = vadd.f32 %v4997, %v5116
    %v5118 = vpop.f32.mrb[0].mxu0
    %5119 = vmatprep.mubr.bf16.mxu0 0
    %5120 = vmatmul.mubr.bf16.gmra.mrb[0].mxu0 %v4971
    %v5121 = vpop.f32.mrb[0].mxu0
    %v5122 = vadd.f32 %v4997, %v5121
    %v5123 = vpop.f32.mrb[0].mxu0
    %v5124 = vpop.f32.mrb[0].mxu0
    %v5125 = vadd.f32 %v4997, %v5124
    %v5126 = vpop.f32.mrb[0].mxu0
    %5127 = vmatprep.mubr.bf16.mxu0 0
    %5128 = vmatmul.mubr.bf16.gmra.mrb[0].mxu0 %v4972
    %v5129 = vpop.f32.mrb[0].mxu0
    %v5130 = vadd.f32 %v4997, %v5129
    %v5131 = vpop.f32.mrb[0].mxu0
    %v5132 = vpop.f32.mrb[0].mxu0
    %v5133 = vadd.f32 %v4997, %v5132
    %v5134 = vpop.f32.mrb[0].mxu0
    %5135 = vmatprep.mubr.bf16.mxu0 0
    %5136 = vmatmul.mubr.bf16.gmra.mrb[0].mxu0 %v4973
    %v5137 = vpop.f32.mrb[0].mxu0
    %v5138 = vadd.f32 %v4997, %v5137
    %v5139 = vpop.f32.mrb[0].mxu0
    %v5140 = vpop.f32.mrb[0].mxu0
    %v5141 = vadd.f32 %v4997, %v5140
    %v5142 = vpop.f32.mrb[0].mxu0
    %5143 = vdwg.mxu0
    %v5144 = vmax.f32 %v5082, 0.0
    %v5145 = vmax.f32 %v5085, 0.0
    %v5146 = vmax.f32 %v5090, 0.0
    %v5147 = vmax.f32 %v5093, 0.0
    %v5148 = vmax.f32 %v5098, 0.0
    %v5149 = vmax.f32 %v5101, 0.0
    %v5150 = vmax.f32 %v5106, 0.0
    %v5151 = vmax.f32 %v5109, 0.0
    %v5152 = vmax.f32 %v5114, 0.0
    %v5153 = vmax.f32 %v5117, 0.0
    %v5154 = vmax.f32 %v5122, 0.0
    %v5155 = vmax.f32 %v5125, 0.0
    %v5156 = vmax.f32 %v5130, 0.0
    %v5157 = vmax.f32 %v5133, 0.0
    %v5158 = vmax.f32 %v5138, 0.0
    %v5159 = vmax.f32 %v5141, 0.0
    %v5160 = vpack.c.bf16 %v5145, %v5144
    %v5161 = vpack.c.bf16 %v5147, %v5146
    %v5162 = vpack.c.bf16 %v5149, %v5148
    %v5163 = vpack.c.bf16 %v5151, %v5150
    %v5164 = vpack.c.bf16 %v5153, %v5152
    %v5165 = vpack.c.bf16 %v5155, %v5154
    %v5166 = vpack.c.bf16 %v5157, %v5156
    %v5167 = vpack.c.bf16 %v5159, %v5158
    %v5168 = vld [vmem:[#allocation13] sm:$0xf]
    %v5169 = vld [vmem:[#allocation13 + $0x4] sm:$0xf]
    %v5170 = vld [vmem:[#allocation13 + $0x8] sm:$0xf]
    %v5171 = vld [vmem:[#allocation13 + $0xc] sm:$0xf]
    %v5172 = vld [vmem:[#allocation13 + $0x10] sm:$0xf]
    %v5173 = vld [vmem:[#allocation13 + $0x14] sm:$0xf]
    %v5174 = vld [vmem:[#allocation13 + $0x18] sm:$0xf]
    %v5175 = vld [vmem:[#allocation13 + $0x1c] sm:$0xf]
    %v5176 = vld [vmem:[#allocation13 + $0x20] sm:$0xf]
    %v5177 = vld [vmem:[#allocation13 + $0x24] sm:$0xf]
    %v5178 = vld [vmem:[#allocation13 + $0x28] sm:$0xf]
    %v5179 = vld [vmem:[#allocation13 + $0x2c] sm:$0xf]
    %v5180 = vld [vmem:[#allocation13 + $0x30] sm:$0xf]
    %v5181 = vld [vmem:[#allocation13 + $0x34] sm:$0xf]
    %v5182 = vld [vmem:[#allocation13 + $0x38] sm:$0xf]
    %v5183 = vld [vmem:[#allocation13 + $0x3c] sm:$0xf]
    %v5184 = vld [vmem:[%s9] sm:$0x1]
    %v5186 = vlaneseq
    %v5187 = vshrl.u32 %v5186, 7
    %v5188 = vsub.s32 0, %v5187
    %v5189 = vrot.slane %v5184, %v5188
    %v5207 = vunpack.c.l.b16 %v5168
    %v5208 = vunpack.c.l.b16 %v5169
    %v5209 = vunpack.c.l.b16 %v5170
    %v5210 = vunpack.c.l.b16 %v5171
    %v5211 = vunpack.c.l.b16 %v5172
    %v5212 = vunpack.c.l.b16 %v5173
    %v5213 = vunpack.c.l.b16 %v5174
    %v5214 = vunpack.c.l.b16 %v5175
    %v5215 = vunpack.c.l.b16 %v5176
    %v5216 = vunpack.c.l.b16 %v5177
    %v5217 = vunpack.c.l.b16 %v5178
    %v5218 = vunpack.c.l.b16 %v5179
    %v5219 = vunpack.c.l.b16 %v5180
    %v5220 = vunpack.c.l.b16 %v5181
    %v5221 = vunpack.c.l.b16 %v5182
    %v5222 = vunpack.c.l.b16 %v5183
    %v5223 = vpack.c.b16 %v5208, %v5207
    %v5224 = vpack.c.b16 %v5210, %v5209
    %v5225 = vpack.c.b16 %v5212, %v5211
    %v5226 = vpack.c.b16 %v5214, %v5213
    %v5227 = vpack.c.b16 %v5216, %v5215
    %v5228 = vpack.c.b16 %v5218, %v5217
    %v5229 = vpack.c.b16 %v5220, %v5219
    %v5230 = vpack.c.b16 %v5222, %v5221
    %5239 = vmatprep.subr.bf16.mxu0 0
    %5240 = vmatpush1.bf16.msra.mxu0 %v5223
    %5241 = vmatprep.subr.bf16.mxu0 0
    %5242 = vmatpush1.bf16.msra.mxu0 %v5224
    %5243 = vmatprep.subr.bf16.mxu0 0
    %5244 = vmatpush1.bf16.msra.mxu0 %v5225
    %5245 = vmatprep.subr.bf16.mxu0 0
    %5246 = vmatpush1.bf16.msra.mxu0 %v5226
    %5247 = vmatprep.subr.bf16.mxu0 0
    %5248 = vmatpush1.bf16.msra.mxu0 %v5227
    %5249 = vmatprep.subr.bf16.mxu0 0
    %5250 = vmatpush1.bf16.msra.mxu0 %v5228
    %5251 = vmatprep.subr.bf16.mxu0 0
    %5252 = vmatpush1.bf16.msra.mxu0 %v5229
    %5253 = vmatprep.subr.bf16.mxu0 0
    %5254 = vmatpush1.bf16.msra.mxu0 %v5230
    %5255 = vmatprep.subr.bf16.mxu0 0
    %5256 = vmatpush1.bf16.msra.mxu0 0
    %5257 = vmatprep.subr.bf16.mxu0 0
    %5258 = vmatpush1.bf16.msra.mxu0 0
    %5259 = vmatprep.subr.bf16.mxu0 0
    %5260 = vmatpush1.bf16.msra.mxu0 0
    %5261 = vmatprep.subr.bf16.mxu0 0
    %5262 = vmatpush1.bf16.msra.mxu0 0
    %5263 = vmatprep.subr.bf16.mxu0 0
    %5264 = vmatpush1.bf16.msra.mxu0 0
    %5265 = vmatprep.subr.bf16.mxu0 0
    %5266 = vmatpush1.bf16.msra.mxu0 0
    %5267 = vmatprep.subr.bf16.mxu0 0
    %5268 = vmatpush1.bf16.msra.mxu0 0
    %5269 = vmatprep.subr.bf16.mxu0 0
    %5270 = vmatpush1.bf16.msra.mxu0 0
    %5271 = vmatprep.mubr.bf16.mxu0 0
    %5272 = vmatmul.mubr.bf16.gmra.mrb[0].mxu0 %v5160
    %v5273 = vpop.f32.mrb[0].mxu0
    %v5274 = vadd.f32 %v5189, %v5273
    %v5275 = vpop.f32.mrb[0].mxu0
    %v5276 = vpop.f32.mrb[0].mxu0
    %v5277 = vadd.f32 %v5189, %v5276
    %v5278 = vpop.f32.mrb[0].mxu0
    %5279 = vmatprep.mubr.bf16.mxu0 0
    %5280 = vmatmul.mubr.bf16.gmra.mrb[0].mxu0 %v5161
    %v5281 = vpop.f32.mrb[0].mxu0
    %v5282 = vadd.f32 %v5189, %v5281
    %v5283 = vpop.f32.mrb[0].mxu0
    %v5284 = vpop.f32.mrb[0].mxu0
    %v5285 = vadd.f32 %v5189, %v5284
    %v5286 = vpop.f32.mrb[0].mxu0
    %5287 = vmatprep.mubr.bf16.mxu0 0
    %5288 = vmatmul.mubr.bf16.gmra.mrb[0].mxu0 %v5162
    %v5289 = vpop.f32.mrb[0].mxu0
    %v5290 = vadd.f32 %v5189, %v5289
    %v5291 = vpop.f32.mrb[0].mxu0
    %v5292 = vpop.f32.mrb[0].mxu0
    %v5293 = vadd.f32 %v5189, %v5292
    %v5294 = vpop.f32.mrb[0].mxu0
    %5295 = vmatprep.mubr.bf16.mxu0 0
    %5296 = vmatmul.mubr.bf16.gmra.mrb[0].mxu0 %v5163
    %v5297 = vpop.f32.mrb[0].mxu0
    %v5298 = vadd.f32 %v5189, %v5297
    %v5299 = vpop.f32.mrb[0].mxu0
    %v5300 = vpop.f32.mrb[0].mxu0
    %v5301 = vadd.f32 %v5189, %v5300
    %v5302 = vpop.f32.mrb[0].mxu0
    %5303 = vmatprep.mubr.bf16.mxu0 0
    %5304 = vmatmul.mubr.bf16.gmra.mrb[0].mxu0 %v5164
    %v5305 = vpop.f32.mrb[0].mxu0
    %v5306 = vadd.f32 %v5189, %v5305
    %v5307 = vpop.f32.mrb[0].mxu0
    %v5308 = vpop.f32.mrb[0].mxu0
    %v5309 = vadd.f32 %v5189, %v5308
    %v5310 = vpop.f32.mrb[0].mxu0
    %5311 = vmatprep.mubr.bf16.mxu0 0
    %5312 = vmatmul.mubr.bf16.gmra.mrb[0].mxu0 %v5165
    %v5313 = vpop.f32.mrb[0].mxu0
    %v5314 = vadd.f32 %v5189, %v5313
    %v5315 = vpop.f32.mrb[0].mxu0
    %v5316 = vpop.f32.mrb[0].mxu0
    %v5317 = vadd.f32 %v5189, %v5316
    %v5318 = vpop.f32.mrb[0].mxu0
    %5319 = vmatprep.mubr.bf16.mxu0 0
    %5320 = vmatmul.mubr.bf16.gmra.mrb[0].mxu0 %v5166
    %v5321 = vpop.f32.mrb[0].mxu0
    %v5322 = vadd.f32 %v5189, %v5321
    %v5323 = vpop.f32.mrb[0].mxu0
    %v5324 = vpop.f32.mrb[0].mxu0
    %v5325 = vadd.f32 %v5189, %v5324
    %v5326 = vpop.f32.mrb[0].mxu0
    %5327 = vmatprep.mubr.bf16.mxu0 0
    %5328 = vmatmul.mubr.bf16.gmra.mrb[0].mxu0 %v5167
    %v5329 = vpop.f32.mrb[0].mxu0
    %v5330 = vadd.f32 %v5189, %v5329
    %v5331 = vpop.f32.mrb[0].mxu0
    %v5332 = vpop.f32.mrb[0].mxu0
    %v5333 = vadd.f32 %v5189, %v5332
    %v5334 = vpop.f32.mrb[0].mxu0
    %5335 = vdwg.mxu0
    %v5336 = vmax.f32 %v5274, 0.0
    %v5337 = vmax.f32 %v5277, 0.0
    %v5338 = vmax.f32 %v5282, 0.0
    %v5339 = vmax.f32 %v5285, 0.0
    %v5340 = vmax.f32 %v5290, 0.0
    %v5341 = vmax.f32 %v5293, 0.0
    %v5342 = vmax.f32 %v5298, 0.0
    %v5343 = vmax.f32 %v5301, 0.0
    %v5344 = vmax.f32 %v5306, 0.0
    %v5345 = vmax.f32 %v5309, 0.0
    %v5346 = vmax.f32 %v5314, 0.0
    %v5347 = vmax.f32 %v5317, 0.0
    %v5348 = vmax.f32 %v5322, 0.0
    %v5349 = vmax.f32 %v5325, 0.0
    %v5350 = vmax.f32 %v5330, 0.0
    %v5351 = vmax.f32 %v5333, 0.0
    %v5352 = vpack.c.bf16 %v5337, %v5336
    %v5353 = vpack.c.bf16 %v5339, %v5338
    %v5354 = vpack.c.bf16 %v5341, %v5340
    %v5355 = vpack.c.bf16 %v5343, %v5342
    %v5356 = vpack.c.bf16 %v5345, %v5344
    %v5357 = vpack.c.bf16 %v5347, %v5346
    %v5358 = vpack.c.bf16 %v5349, %v5348
    %v5359 = vpack.c.bf16 %v5351, %v5350
    %v5360 = vld [vmem:[#allocation14] sm:$0xf]
    %v5361 = vld [vmem:[#allocation14 + $0x4] sm:$0xf]
    %v5362 = vld [vmem:[#allocation14 + $0x8] sm:$0xf]
    %v5363 = vld [vmem:[#allocation14 + $0xc] sm:$0xf]
    %v5364 = vld [vmem:[#allocation14 + $0x10] sm:$0xf]
    %v5365 = vld [vmem:[#allocation14 + $0x14] sm:$0xf]
    %v5366 = vld [vmem:[#allocation14 + $0x18] sm:$0xf]
    %v5367 = vld [vmem:[#allocation14 + $0x1c] sm:$0xf]
    %v5368 = vld [vmem:[#allocation14 + $0x20] sm:$0xf]
    %v5369 = vld [vmem:[#allocation14 + $0x24] sm:$0xf]
    %v5370 = vld [vmem:[#allocation14 + $0x28] sm:$0xf]
    %v5371 = vld [vmem:[#allocation14 + $0x2c] sm:$0xf]
    %v5372 = vld [vmem:[#allocation14 + $0x30] sm:$0xf]
    %v5373 = vld [vmem:[#allocation14 + $0x34] sm:$0xf]
    %v5374 = vld [vmem:[#allocation14 + $0x38] sm:$0xf]
    %v5375 = vld [vmem:[#allocation14 + $0x3c] sm:$0xf]
    %v5376 = vld [vmem:[%s11] sm:$0x1]
    %v5378 = vlaneseq
    %v5379 = vshrl.u32 %v5378, 7
    %v5380 = vsub.s32 0, %v5379
    %v5381 = vrot.slane %v5376, %v5380
    %v5399 = vunpack.c.l.b16 %v5360
    %v5400 = vunpack.c.l.b16 %v5361
    %v5401 = vunpack.c.l.b16 %v5362
    %v5402 = vunpack.c.l.b16 %v5363
    %v5403 = vunpack.c.l.b16 %v5364
    %v5404 = vunpack.c.l.b16 %v5365
    %v5405 = vunpack.c.l.b16 %v5366
    %v5406 = vunpack.c.l.b16 %v5367
    %v5407 = vunpack.c.l.b16 %v5368
    %v5408 = vunpack.c.l.b16 %v5369
    %v5409 = vunpack.c.l.b16 %v5370
    %v5410 = vunpack.c.l.b16 %v5371
    %v5411 = vunpack.c.l.b16 %v5372
    %v5412 = vunpack.c.l.b16 %v5373
    %v5413 = vunpack.c.l.b16 %v5374
    %v5414 = vunpack.c.l.b16 %v5375
    %v5415 = vpack.c.b16 %v5400, %v5399
    %v5416 = vpack.c.b16 %v5402, %v5401
    %v5417 = vpack.c.b16 %v5404, %v5403
    %v5418 = vpack.c.b16 %v5406, %v5405
    %v5419 = vpack.c.b16 %v5408, %v5407
    %v5420 = vpack.c.b16 %v5410, %v5409
    %v5421 = vpack.c.b16 %v5412, %v5411
    %v5422 = vpack.c.b16 %v5414, %v5413
    %5431 = vmatprep.subr.bf16.mxu0 0
    %5432 = vmatpush1.bf16.msra.mxu0 %v5415
    %5433 = vmatprep.subr.bf16.mxu0 0
    %5434 = vmatpush1.bf16.msra.mxu0 %v5416
    %5435 = vmatprep.subr.bf16.mxu0 0
    %5436 = vmatpush1.bf16.msra.mxu0 %v5417
    %5437 = vmatprep.subr.bf16.mxu0 0
    %5438 = vmatpush1.bf16.msra.mxu0 %v5418
    %5439 = vmatprep.subr.bf16.mxu0 0
    %5440 = vmatpush1.bf16.msra.mxu0 %v5419
    %5441 = vmatprep.subr.bf16.mxu0 0
    %5442 = vmatpush1.bf16.msra.mxu0 %v5420
    %5443 = vmatprep.subr.bf16.mxu0 0
    %5444 = vmatpush1.bf16.msra.mxu0 %v5421
    %5445 = vmatprep.subr.bf16.mxu0 0
    %5446 = vmatpush1.bf16.msra.mxu0 %v5422
    %5447 = vmatprep.subr.bf16.mxu0 0
    %5448 = vmatpush1.bf16.msra.mxu0 0
    %5449 = vmatprep.subr.bf16.mxu0 0
    %5450 = vmatpush1.bf16.msra.mxu0 0
    %5451 = vmatprep.subr.bf16.mxu0 0
    %5452 = vmatpush1.bf16.msra.mxu0 0
    %5453 = vmatprep.subr.bf16.mxu0 0
    %5454 = vmatpush1.bf16.msra.mxu0 0
    %5455 = vmatprep.subr.bf16.mxu0 0
    %5456 = vmatpush1.bf16.msra.mxu0 0
    %5457 = vmatprep.subr.bf16.mxu0 0
    %5458 = vmatpush1.bf16.msra.mxu0 0
    %5459 = vmatprep.subr.bf16.mxu0 0
    %5460 = vmatpush1.bf16.msra.mxu0 0
    %5461 = vmatprep.subr.bf16.mxu0 0
    %5462 = vmatpush1.bf16.msra.mxu0 0
    %5463 = vmatprep.mubr.bf16.mxu0 0
    %5464 = vmatmul.mubr.bf16.gmra.mrb[0].mxu0 %v5352
    %v5465 = vpop.f32.mrb[0].mxu0
    %v5466 = vadd.f32 %v5381, %v5465
    %v5467 = vpop.f32.mrb[0].mxu0
    %v5468 = vpop.f32.mrb[0].mxu0
    %v5469 = vadd.f32 %v5381, %v5468
    %v5470 = vpop.f32.mrb[0].mxu0
    %5471 = vmatprep.mubr.bf16.mxu0 0
    %5472 = vmatmul.mubr.bf16.gmra.mrb[0].mxu0 %v5353
    %v5473 = vpop.f32.mrb[0].mxu0
    %v5474 = vadd.f32 %v5381, %v5473
    %v5475 = vpop.f32.mrb[0].mxu0
    %v5476 = vpop.f32.mrb[0].mxu0
    %v5477 = vadd.f32 %v5381, %v5476
    %v5478 = vpop.f32.mrb[0].mxu0
    %5479 = vmatprep.mubr.bf16.mxu0 0
    %5480 = vmatmul.mubr.bf16.gmra.mrb[0].mxu0 %v5354
    %v5481 = vpop.f32.mrb[0].mxu0
    %v5482 = vadd.f32 %v5381, %v5481
    %v5483 = vpop.f32.mrb[0].mxu0
    %v5484 = vpop.f32.mrb[0].mxu0
    %v5485 = vadd.f32 %v5381, %v5484
    %v5486 = vpop.f32.mrb[0].mxu0
    %5487 = vmatprep.mubr.bf16.mxu0 0
    %5488 = vmatmul.mubr.bf16.gmra.mrb[0].mxu0 %v5355
    %v5489 = vpop.f32.mrb[0].mxu0
    %v5490 = vadd.f32 %v5381, %v5489
    %v5491 = vpop.f32.mrb[0].mxu0
    %v5492 = vpop.f32.mrb[0].mxu0
    %v5493 = vadd.f32 %v5381, %v5492
    %v5494 = vpop.f32.mrb[0].mxu0
    %5495 = vmatprep.mubr.bf16.mxu0 0
    %5496 = vmatmul.mubr.bf16.gmra.mrb[0].mxu0 %v5356
    %v5497 = vpop.f32.mrb[0].mxu0
    %v5498 = vadd.f32 %v5381, %v5497
    %v5499 = vpop.f32.mrb[0].mxu0
    %v5500 = vpop.f32.mrb[0].mxu0
    %v5501 = vadd.f32 %v5381, %v5500
    %v5502 = vpop.f32.mrb[0].mxu0
    %5503 = vmatprep.mubr.bf16.mxu0 0
    %5504 = vmatmul.mubr.bf16.gmra.mrb[0].mxu0 %v5357
    %v5505 = vpop.f32.mrb[0].mxu0
    %v5506 = vadd.f32 %v5381, %v5505
    %v5507 = vpop.f32.mrb[0].mxu0
    %v5508 = vpop.f32.mrb[0].mxu0
    %v5509 = vadd.f32 %v5381, %v5508
    %v5510 = vpop.f32.mrb[0].mxu0
    %5511 = vmatprep.mubr.bf16.mxu0 0
    %5512 = vmatmul.mubr.bf16.gmra.mrb[0].mxu0 %v5358
    %v5513 = vpop.f32.mrb[0].mxu0
    %v5514 = vadd.f32 %v5381, %v5513
    %v5515 = vpop.f32.mrb[0].mxu0
    %v5516 = vpop.f32.mrb[0].mxu0
    %v5517 = vadd.f32 %v5381, %v5516
    %v5518 = vpop.f32.mrb[0].mxu0
    %5519 = vmatprep.mubr.bf16.mxu0 0
    %5520 = vmatmul.mubr.bf16.gmra.mrb[0].mxu0 %v5359
    %v5521 = vpop.f32.mrb[0].mxu0
    %v5522 = vadd.f32 %v5381, %v5521
    %v5523 = vpop.f32.mrb[0].mxu0
    %v5524 = vpop.f32.mrb[0].mxu0
    %v5525 = vadd.f32 %v5381, %v5524
    %v5526 = vpop.f32.mrb[0].mxu0
    %5527 = vdwg.mxu0
    %v5528 = vmax.f32 %v5466, 0.0
    %v5529 = vmax.f32 %v5469, 0.0
    %v5530 = vmax.f32 %v5474, 0.0
    %v5531 = vmax.f32 %v5477, 0.0
    %v5532 = vmax.f32 %v5482, 0.0
    %v5533 = vmax.f32 %v5485, 0.0
    %v5534 = vmax.f32 %v5490, 0.0
    %v5535 = vmax.f32 %v5493, 0.0
    %v5536 = vmax.f32 %v5498, 0.0
    %v5537 = vmax.f32 %v5501, 0.0
    %v5538 = vmax.f32 %v5506, 0.0
    %v5539 = vmax.f32 %v5509, 0.0
    %v5540 = vmax.f32 %v5514, 0.0
    %v5541 = vmax.f32 %v5517, 0.0
    %v5542 = vmax.f32 %v5522, 0.0
    %v5543 = vmax.f32 %v5525, 0.0
    %v5544 = vpack.c.bf16 %v5529, %v5528
    %v5545 = vpack.c.bf16 %v5531, %v5530
    %v5546 = vpack.c.bf16 %v5533, %v5532
    %v5547 = vpack.c.bf16 %v5535, %v5534
    %v5548 = vpack.c.bf16 %v5537, %v5536
    %v5549 = vpack.c.bf16 %v5539, %v5538
    %v5550 = vpack.c.bf16 %v5541, %v5540
    %v5551 = vpack.c.bf16 %v5543, %v5542
    %v5552 = vld [vmem:[#allocation16] sm:$0xf]
    %v5553 = vld [vmem:[#allocation16 + $0x4] sm:$0xf]
    %v5554 = vld [vmem:[#allocation16 + $0x8] sm:$0xf]
    %v5555 = vld [vmem:[#allocation16 + $0xc] sm:$0xf]
    %v5556 = vld [vmem:[#allocation16 + $0x10] sm:$0xf]
    %v5557 = vld [vmem:[#allocation16 + $0x14] sm:$0xf]
    %v5558 = vld [vmem:[#allocation16 + $0x18] sm:$0xf]
    %v5559 = vld [vmem:[#allocation16 + $0x1c] sm:$0xf]
    %v5560 = vld [vmem:[#allocation16 + $0x20] sm:$0xf]
    %v5561 = vld [vmem:[#allocation16 + $0x24] sm:$0xf]
    %v5562 = vld [vmem:[#allocation16 + $0x28] sm:$0xf]
    %v5563 = vld [vmem:[#allocation16 + $0x2c] sm:$0xf]
    %v5564 = vld [vmem:[#allocation16 + $0x30] sm:$0xf]
    %v5565 = vld [vmem:[#allocation16 + $0x34] sm:$0xf]
    %v5566 = vld [vmem:[#allocation16 + $0x38] sm:$0xf]
    %v5567 = vld [vmem:[#allocation16 + $0x3c] sm:$0xf]
    %v5568 = vld [vmem:[%s13] sm:$0x1]
    %v5570 = vlaneseq
    %v5571 = vshrl.u32 %v5570, 7
    %v5572 = vsub.s32 0, %v5571
    %v5573 = vrot.slane %v5568, %v5572
    %v5591 = vunpack.c.l.b16 %v5552
    %v5592 = vunpack.c.l.b16 %v5553
    %v5593 = vunpack.c.l.b16 %v5554
    %v5594 = vunpack.c.l.b16 %v5555
    %v5595 = vunpack.c.l.b16 %v5556
    %v5596 = vunpack.c.l.b16 %v5557
    %v5597 = vunpack.c.l.b16 %v5558
    %v5598 = vunpack.c.l.b16 %v5559
    %v5599 = vunpack.c.l.b16 %v5560
    %v5600 = vunpack.c.l.b16 %v5561
    %v5601 = vunpack.c.l.b16 %v5562
    %v5602 = vunpack.c.l.b16 %v5563
    %v5603 = vunpack.c.l.b16 %v5564
    %v5604 = vunpack.c.l.b16 %v5565
    %v5605 = vunpack.c.l.b16 %v5566
    %v5606 = vunpack.c.l.b16 %v5567
    %v5607 = vpack.c.b16 %v5592, %v5591
    %v5608 = vpack.c.b16 %v5594, %v5593
    %v5609 = vpack.c.b16 %v5596, %v5595
    %v5610 = vpack.c.b16 %v5598, %v5597
    %v5611 = vpack.c.b16 %v5600, %v5599
    %v5612 = vpack.c.b16 %v5602, %v5601
    %v5613 = vpack.c.b16 %v5604, %v5603
    %v5614 = vpack.c.b16 %v5606, %v5605
    %5623 = vmatprep.subr.bf16.mxu0 0
    %5624 = vmatpush1.bf16.msra.mxu0 %v5607
    %5625 = vmatprep.subr.bf16.mxu0 0
    %5626 = vmatpush1.bf16.msra.mxu0 %v5608
    %5627 = vmatprep.subr.bf16.mxu0 0
    %5628 = vmatpush1.bf16.msra.mxu0 %v5609
    %5629 = vmatprep.subr.bf16.mxu0 0
    %5630 = vmatpush1.bf16.msra.mxu0 %v5610
    %5631 = vmatprep.subr.bf16.mxu0 0
    %5632 = vmatpush1.bf16.msra.mxu0 %v5611
    %5633 = vmatprep.subr.bf16.mxu0 0
    %5634 = vmatpush1.bf16.msra.mxu0 %v5612
    %5635 = vmatprep.subr.bf16.mxu0 0
    %5636 = vmatpush1.bf16.msra.mxu0 %v5613
    %5637 = vmatprep.subr.bf16.mxu0 0
    %5638 = vmatpush1.bf16.msra.mxu0 %v5614
    %5639 = vmatprep.subr.bf16.mxu0 0
    %5640 = vmatpush1.bf16.msra.mxu0 0
    %5641 = vmatprep.subr.bf16.mxu0 0
    %5642 = vmatpush1.bf16.msra.mxu0 0
    %5643 = vmatprep.subr.bf16.mxu0 0
    %5644 = vmatpush1.bf16.msra.mxu0 0
    %5645 = vmatprep.subr.bf16.mxu0 0
    %5646 = vmatpush1.bf16.msra.mxu0 0
    %5647 = vmatprep.subr.bf16.mxu0 0
    %5648 = vmatpush1.bf16.msra.mxu0 0
    %5649 = vmatprep.subr.bf16.mxu0 0
    %5650 = vmatpush1.bf16.msra.mxu0 0
    %5651 = vmatprep.subr.bf16.mxu0 0
    %5652 = vmatpush1.bf16.msra.mxu0 0
    %5653 = vmatprep.subr.bf16.mxu0 0
    %5654 = vmatpush1.bf16.msra.mxu0 0
    %5655 = vmatprep.mubr.bf16.mxu0 0
    %5656 = vmatmul.mubr.bf16.gmra.mrb[0].mxu0 %v5544
    %v5657 = vpop.f32.mrb[0].mxu0
    %v5658 = vadd.f32 %v5573, %v5657
    %v5659 = vpop.f32.mrb[0].mxu0
    %v5660 = vpop.f32.mrb[0].mxu0
    %v5661 = vadd.f32 %v5573, %v5660
    %v5662 = vpop.f32.mrb[0].mxu0
    %5663 = vmatprep.mubr.bf16.mxu0 0
    %5664 = vmatmul.mubr.bf16.gmra.mrb[0].mxu0 %v5545
    %v5665 = vpop.f32.mrb[0].mxu0
    %v5666 = vadd.f32 %v5573, %v5665
    %v5667 = vpop.f32.mrb[0].mxu0
    %v5668 = vpop.f32.mrb[0].mxu0
    %v5669 = vadd.f32 %v5573, %v5668
    %v5670 = vpop.f32.mrb[0].mxu0
    %5671 = vmatprep.mubr.bf16.mxu0 0
    %5672 = vmatmul.mubr.bf16.gmra.mrb[0].mxu0 %v5546
    %v5673 = vpop.f32.mrb[0].mxu0
    %v5674 = vadd.f32 %v5573, %v5673
    %v5675 = vpop.f32.mrb[0].mxu0
    %v5676 = vpop.f32.mrb[0].mxu0
    %v5677 = vadd.f32 %v5573, %v5676
    %v5678 = vpop.f32.mrb[0].mxu0
    %5679 = vmatprep.mubr.bf16.mxu0 0
    %5680 = vmatmul.mubr.bf16.gmra.mrb[0].mxu0 %v5547
    %v5681 = vpop.f32.mrb[0].mxu0
    %v5682 = vadd.f32 %v5573, %v5681
    %v5683 = vpop.f32.mrb[0].mxu0
    %v5684 = vpop.f32.mrb[0].mxu0
    %v5685 = vadd.f32 %v5573, %v5684
    %v5686 = vpop.f32.mrb[0].mxu0
    %5687 = vmatprep.mubr.bf16.mxu0 0
    %5688 = vmatmul.mubr.bf16.gmra.mrb[0].mxu0 %v5548
    %v5689 = vpop.f32.mrb[0].mxu0
    %v5690 = vadd.f32 %v5573, %v5689
    %v5691 = vpop.f32.mrb[0].mxu0
    %v5692 = vpop.f32.mrb[0].mxu0
    %v5693 = vadd.f32 %v5573, %v5692
    %v5694 = vpop.f32.mrb[0].mxu0
    %5695 = vmatprep.mubr.bf16.mxu0 0
    %5696 = vmatmul.mubr.bf16.gmra.mrb[0].mxu0 %v5549
    %v5697 = vpop.f32.mrb[0].mxu0
    %v5698 = vadd.f32 %v5573, %v5697
    %v5699 = vpop.f32.mrb[0].mxu0
    %v5700 = vpop.f32.mrb[0].mxu0
    %v5701 = vadd.f32 %v5573, %v5700
    %v5702 = vpop.f32.mrb[0].mxu0
    %5703 = vmatprep.mubr.bf16.mxu0 0
    %5704 = vmatmul.mubr.bf16.gmra.mrb[0].mxu0 %v5550
    %v5705 = vpop.f32.mrb[0].mxu0
    %v5706 = vadd.f32 %v5573, %v5705
    %v5707 = vpop.f32.mrb[0].mxu0
    %v5708 = vpop.f32.mrb[0].mxu0
    %v5709 = vadd.f32 %v5573, %v5708
    %v5710 = vpop.f32.mrb[0].mxu0
    %5711 = vmatprep.mubr.bf16.mxu0 0
    %5712 = vmatmul.mubr.bf16.gmra.mrb[0].mxu0 %v5551
    %v5713 = vpop.f32.mrb[0].mxu0
    %v5714 = vadd.f32 %v5573, %v5713
    %v5715 = vpop.f32.mrb[0].mxu0
    %v5716 = vpop.f32.mrb[0].mxu0
    %v5717 = vadd.f32 %v5573, %v5716
    %v5718 = vpop.f32.mrb[0].mxu0
    %5719 = vdwg.mxu0
    %5720 = vst [vmem:[#allocation17] sm:$0xff] %v5658
    %5721 = vst [vmem:[#allocation17 + $0x8] sm:$0xff] %v5661
    %5722 = vst [vmem:[#allocation17 + $0x10] sm:$0xff] %v5666
    %5723 = vst [vmem:[#allocation17 + $0x18] sm:$0xff] %v5669
    %5724 = vst [vmem:[#allocation17 + $0x20] sm:$0xff] %v5674
    %5725 = vst [vmem:[#allocation17 + $0x28] sm:$0xff] %v5677
    %5726 = vst [vmem:[#allocation17 + $0x30] sm:$0xff] %v5682
    %5727 = vst [vmem:[#allocation17 + $0x38] sm:$0xff] %v5685
    %5728 = vst [vmem:[#allocation17 + $0x40] sm:$0xff] %v5690
    %5729 = vst [vmem:[#allocation17 + $0x48] sm:$0xff] %v5693
    %5730 = vst [vmem:[#allocation17 + $0x50] sm:$0xff] %v5698
    %5731 = vst [vmem:[#allocation17 + $0x58] sm:$0xff] %v5701
    %5732 = vst [vmem:[#allocation17 + $0x60] sm:$0xff] %v5706
    %5733 = vst [vmem:[#allocation17 + $0x68] sm:$0xff] %v5709
    %5734 = vst [vmem:[#allocation17 + $0x70] sm:$0xff] %v5714
    %5735 = vst [vmem:[#allocation17 + $0x78] sm:$0xff] %v5717
    // Predicated region
    $region94: #{tpu_custom_call.1} parent=1 // pred_check
      _
    $region95: #{tpu_custom_call.1} parent=1 // pred_check_branch
      %5737 = sbr.rel (0) target = $region97
    $region96: #{tpu_custom_call.1} parent=1 // pred_region
      %s5739 = ssub.s32 2048, 2048
      %5740 = vsyncadd [#allocation4], %s5739
      %s5741 = sshll.u32 [#allocation17], 4
      %s5742 = int_to_ptr.vmem [resolvable:$true] %s5741
      %5747 = dma.vmem_to_hbm [thread:$0]  %s5742, 2048, %s14, [#allocation4], 128, 128, 8
    $region97: #{tpu_custom_call.1} parent=1 // pred_fallthru
      _
    // Predicated region
    $region98: #{tpu_custom_call.1} parent=1 // pred_check
      _
    $region99: #{tpu_custom_call.1} parent=1 // pred_check_branch
      %5749 = sbr.rel (0) target = $region101
    $region100: #{tpu_custom_call.1} parent=1 // pred_region
      %5750 = dma.done [#allocation4], 2048
    $region101: #{tpu_custom_call.1} parent=1 // pred_fallthru
      _
    %5751 = vsyncpa [#allocation3], 1
    %5752 = vsyncpa [#allocation6], 1
    %5753 = vsyncpa [#allocation9], 1
    %5754 = vsyncpa [#allocation12], 1
    %5755 = vsyncpa [#allocation15], 1
    %5756 = vsyncpa [#allocation4], 1

</llo_original>
